<compile_context>
chip_gen: v7x
topology: tpu7x:2x2x1
jax: 0.10.0
libtpu: 0.0.40
codegen_flags: <defaults>
</compile_context>

<pallas_src>
import jax
import jax.numpy as jnp
from jax.experimental import pallas as pl
from jax.experimental.pallas import tpu as pltpu

M, K, N = 64, 256, 64  # shapes fixed by the reference PyTorch script


def _kernel(x_ref, w_ref, o_ref):
    tb, m, k = x_ref.shape
    n = o_ref.shape[-1]

    # Single MXU pass over all TB items: (TB*M, K) @ (K, 3N).
    # The (TB, M) -> (TB*M,) fold is sublane-aligned (M % 8 == 0) -> free.
    x2 = x_ref[...].reshape(tb * m, k)
    xw = jnp.dot(x2, w_ref[...], preferred_element_type=jnp.float32)  # (TB*M, 3N)
    xw = xw.reshape(tb, m, 3 * n)
    xq = xw[:, :, :n]           # (TB, M, N)
    xk = xw[:, :, n:2 * n]      # (TB, M, N)
    xv = xw[:, :, 2 * n:]       # (TB, M, N), starts on a 128-lane boundary

    # qk = (x@q) @ (x@k) per item (valid because M == N).
    qk = jnp.einsum('bmc,bcn->bmn', xq, xk, preferred_element_type=jnp.float32)

    # softmax(qk, dim=-1): row_max subtraction is required (logits reach ~4e6);
    # all f32, reciprocal on the EUP.
    row_max = jnp.max(qk, axis=-1, keepdims=True)
    e = jnp.exp(qk - row_max)
    p = e * pl.reciprocal(jnp.sum(e, axis=-1, keepdims=True), approx=True)

    # out = softmax(qk) @ (x@v), stored directly at width N (no lane padding).
    o_ref[...] = jnp.einsum('bmn,bnd->bmd', p, xv,
                            preferred_element_type=jnp.float32).astype(o_ref.dtype)


def make_fused_w(q, k, v):
    """Fused projection weights [q | k | v] -> (K, 3N). Precompute once if q/k/v are reused."""
    return jnp.concatenate([q, k, v], axis=1).astype(jnp.float32)


def _choose_tb(b, tb_max=8):
    if b <= 1:
        return 1
    # Keep >= 2 grid steps whenever the batch allows it (v7x megacore),
    # while filling the MXU rows (TB*M >= 256) once B >= 8.
    return max(1, min(tb_max, pl.cdiv(b, 2)))


def mmult_batched_fused(x_b, w, *, tb=None):
    """x_b: (B, M, K) f32; w: (K, 3N) fused weights. Returns (B, M, N) f32."""
    B, m, k_ = x_b.shape
    kw, w_cols = w.shape
    assert kw == k_ and w_cols % 3 == 0
    n = w_cols // 3
    assert m == n, "qk = (x@q) @ (x@k) requires M == N"

    if x_b.dtype != jnp.float32:
        x_b = x_b.astype(jnp.float32)
    if w.dtype != jnp.float32:
        w = w.astype(jnp.float32)

    tb = _choose_tb(B) if tb is None else max(1, min(tb, B))
    steps = pl.cdiv(B, tb)
    b_pad = steps * tb
    if b_pad != B:
        # Zero-pad a partial last block; zero rows are numerically benign.
        x_b = jnp.pad(x_b, ((0, b_pad - B), (0, 0), (0, 0)))

    flops = (2 * b_pad * m * k_ * w_cols      # fused projection
             + 2 * b_pad * m * n * m          # qk
             + 2 * b_pad * m * m * n)         # softmax(qk) @ xv
    bytes_accessed = 4 * (b_pad * m * k_ + k_ * w_cols + b_pad * m * n)
    transcendentals = b_pad * m * m

    out = pl.pallas_call(
        _kernel,
        out_shape=jax.ShapeDtypeStruct((b_pad, m, n), jnp.float32),
        grid=(steps,),
        in_specs=[
            pl.BlockSpec((tb, m, k_), lambda i: (i, 0, 0)),   # TB x-items per step
            pl.BlockSpec((k_, w_cols), lambda i: (0, 0)),     # fused weights, VMEM-resident
        ],
        out_specs=pl.BlockSpec((tb, m, n), lambda i: (i, 0, 0)),
        compiler_params=pltpu.CompilerParams(
            dimension_semantics=("parallel",),                # megacore split on v7x
        ),
        cost_estimate=pl.CostEstimate(
            flops=flops,
            transcendentals=transcendentals,
            bytes_accessed=bytes_accessed,
        ),
    )(x_b, w)

    return out if b_pad == B else out[:B]


def mmult_batched(x_b, q, k, v, *, tb=None):
    return mmult_batched_fused(x_b, make_fused_w(q, k, v), tb=tb)


def mmult(x, q, k, v):
    """Single-problem entry point matching torch mmult.forward(x, q, k, v)."""
    return mmult_batched(x[None], q, k, v)[0]


def _mmult_ref(x, q, k, v):
    qk = (x @ q) @ (x @ k)
    return jax.nn.softmax(qk, axis=-1) @ (x @ v)


if __name__ == "__main__":
    B = 32
    key = jax.random.PRNGKey(0)
    kx, kq, kk_, kv = jax.random.split(key, 4)
    # torch.rand -> uniform [0, 1)
    xb = jax.random.uniform(kx, (B, M, K), dtype=jnp.float32)
    q = jax.random.uniform(kq, (K, N), dtype=jnp.float32)
    k = jax.random.uniform(kk_, (K, N), dtype=jnp.float32)
    v = jax.random.uniform(kv, (K, N), dtype=jnp.float32)

    ref_b = jax.vmap(_mmult_ref, in_axes=(0, None, None, None))(xb, q, k, v)

    # Batched path: TB=8 items/step, grid=(4,) -> feeds both v7x TensorCores.
    out_b = jax.jit(mmult_batched)(xb, q, k, v)
    jax.block_until_ready(out_b)
    assert out_b.shape == (B, M, N)
    assert jnp.allclose(out_b, ref_b, rtol=1e-3, atol=1e-3)

    # Ragged batch (B % TB != 0) exercises the zero-pad path.
    out_r = jax.jit(mmult_batched)(xb[:5], q, k, v)
    jax.block_until_ready(out_r)
    assert jnp.allclose(out_r, ref_b[:5], rtol=1e-3, atol=1e-3)

    # Single-problem path (same signature/semantics as the PyTorch module).
    out_1 = jax.jit(mmult)(xb[0], q, k, v)
    jax.block_until_ready(out_1)
    assert out_1.shape == (M, N)
    assert jnp.allclose(out_1, ref_b[0], rtol=1e-3, atol=1e-3)

    print("KERNEL_OK")
</pallas_src>

<mosaic_0001>
module attributes {stable_mosaic.version = 11 : i64} {
  func.func @_kernel(%arg0: i32, %arg1: memref<8x64x256xf32, #tpu.memory_space<vmem>>, %arg2: memref<256x192xf32, #tpu.memory_space<vmem>>, %arg3: memref<8x64x64xf32, #tpu.memory_space<vmem>>) attributes {dimension_semantics = [#tpu.dimension_semantics<parallel>], iteration_bounds = array<i64: 4>, scalar_prefetch = 0 : i64, scratch_operands = 0 : i64, tpu.core_type = #tpu.core_type<tc>, window_params = [{transform_indices = @transform_0, window_bounds = array<i64: 8, 64, 256>}, {pipeline_mode = #tpu.pipeline_mode<synchronous>, transform_indices = @transform_1, window_bounds = array<i64: 256, 192>}, {transform_indices = @transform_2, window_bounds = array<i64: 8, 64, 64>}]} {
    %c0 = arith.constant 0 : index
    %c0_0 = arith.constant 0 : index
    %c0_1 = arith.constant 0 : index
    %0 = vector.load %arg1[%c0, %c0_0, %c0_1] : memref<8x64x256xf32, #tpu.memory_space<vmem>>, vector<8x64x256xf32>
    %1 = vector.shape_cast %0 : vector<8x64x256xf32> to vector<512x256xf32>
    %c0_2 = arith.constant 0 : index
    %c0_3 = arith.constant 0 : index
    %2 = vector.load %arg2[%c0_2, %c0_3] : memref<256x192xf32, #tpu.memory_space<vmem>>, vector<256x192xf32>
    %cst = arith.constant dense<0.000000e+00> : vector<512x192xf32>
    %3 = tpu.matmul %1, %2, %cst {dimension_numbers = #tpu.dot_dimension_numbers<[1], [0], [0], [1], [0, 0, 1, 1], [], []>} : vector<512x256xf32>, vector<256x192xf32>, vector<512x192xf32> -> vector<512x192xf32>
    %4 = vector.shape_cast %3 : vector<512x192xf32> to vector<8x64x192xf32>
    %5 = vector.extract_strided_slice %4 {offsets = [0, 0, 0], sizes = [8, 64, 64], strides = [1, 1, 1]} : vector<8x64x192xf32> to vector<8x64x64xf32>
    %6 = vector.extract_strided_slice %4 {offsets = [0, 0, 64], sizes = [8, 64, 64], strides = [1, 1, 1]} : vector<8x64x192xf32> to vector<8x64x64xf32>
    %7 = vector.extract_strided_slice %4 {offsets = [0, 0, 128], sizes = [8, 64, 64], strides = [1, 1, 1]} : vector<8x64x192xf32> to vector<8x64x64xf32>
    "tpu.trace_start"() <{level = 10 : i32, message = "bmc,bcn->bmn"}> : () -> ()
    %cst_4 = arith.constant dense<0.000000e+00> : vector<8x64x64xf32>
    %8 = tpu.matmul %5, %6, %cst_4 {dimension_numbers = #tpu.dot_dimension_numbers<[2], [1], [1], [2], [0, 0, 0, 1, 1, 2], [0], [0]>} : vector<8x64x64xf32>, vector<8x64x64xf32>, vector<8x64x64xf32> -> vector<8x64x64xf32>
    "tpu.trace_stop"() : () -> ()
    %cst_5 = arith.constant dense<0xFF800000> : vector<8x64xf32>
    %9 = vector.multi_reduction <maximumf>, %8, %cst_5 [2] : vector<8x64x64xf32> to vector<8x64xf32>
    %10 = vector.shape_cast %9 : vector<8x64xf32> to vector<8x64x1xf32>
    %11 = vector.broadcast %10 : vector<8x64x1xf32> to vector<8x64x64xf32>
    %12 = arith.subf %8, %11 : vector<8x64x64xf32>
    %13 = math.exp %12 : vector<8x64x64xf32>
    %cst_6 = arith.constant dense<0.000000e+00> : vector<8x64xf32>
    %14 = vector.multi_reduction <add>, %13, %cst_6 [2] : vector<8x64x64xf32> to vector<8x64xf32>
    %15 = vector.shape_cast %14 : vector<8x64xf32> to vector<8x64x1xf32>
    %16 = tpu.reciprocal %15 {approx = true} : vector<8x64x1xf32> -> vector<8x64x1xf32>
    %17 = vector.broadcast %16 : vector<8x64x1xf32> to vector<8x64x64xf32>
    %18 = arith.mulf %13, %17 : vector<8x64x64xf32>
    "tpu.trace_start"() <{level = 10 : i32, message = "bmn,bnd->bmd"}> : () -> ()
    %cst_7 = arith.constant dense<0.000000e+00> : vector<8x64x64xf32>
    %19 = tpu.matmul %18, %7, %cst_7 {dimension_numbers = #tpu.dot_dimension_numbers<[2], [1], [1], [2], [0, 0, 0, 1, 1, 2], [0], [0]>} : vector<8x64x64xf32>, vector<8x64x64xf32>, vector<8x64x64xf32> -> vector<8x64x64xf32>
    "tpu.trace_stop"() : () -> ()
    %c0_8 = arith.constant 0 : index
    %c0_9 = arith.constant 0 : index
    %c0_10 = arith.constant 0 : index
    %20 = vector.load %arg3[%c0_8, %c0_9, %c0_10] : memref<8x64x64xf32, #tpu.memory_space<vmem>>, vector<8x64x64xf32>
    tpu.vector_store %arg3[%c0_8, %c0_9, %c0_10], %19 {strides = array<i32>} : memref<8x64x64xf32, #tpu.memory_space<vmem>>, vector<8x64x64xf32>,
    return
  }
  func.func @transform_0(%arg0: i32) -> (i32, i32, i32) {
    %c0_i32 = arith.constant 0 : i32
    %c0_i32_0 = arith.constant 0 : i32
    %c0_i32_1 = arith.constant 0 : i32
    return %arg0, %c0_i32, %c0_i32_0 : i32, i32, i32
  }
  func.func @transform_1(%arg0: i32) -> (i32, i32) {
    %c0_i32 = arith.constant 0 : i32
    %c0_i32_0 = arith.constant 0 : i32
    %c0_i32_1 = arith.constant 0 : i32
    return %c0_i32, %c0_i32_0 : i32, i32
  }
  func.func @transform_2(%arg0: i32) -> (i32, i32, i32) {
    %c0_i32 = arith.constant 0 : i32
    %c0_i32_0 = arith.constant 0 : i32
    %c0_i32_1 = arith.constant 0 : i32
    return %arg0, %c0_i32, %c0_i32_0 : i32, i32, i32
  }
}

</mosaic_0001>

<llo_original>
// kernel: mmult_batched.1
$region0: #{mmult_batched.1}
  #allocation0 [shape = 'u32[]', space=smem, size = 0x4, offset = 0x4, fixed_abs, tag = 'smem constant byte address 0x4 - core index']
  #allocation1 [shape = 'u32[144,128]{1,0:T(1,128)}', space=vmem, size = 0x12000, scoped, tag = 'internal scratch']
  %s0 = inlined_call_operand.hbm [shape: f32[32,64,256], index: 0, kind: input, shape index: {}]
  %s1 = inlined_call_operand.vmem [shape: f32[256,192], index: 1, kind: input, shape index: {}]
  %s2 = inlined_call_operand.hbm [shape: f32[32,64,64], index: 2, kind: output, shape index: {}]
  %s3 = sld [smem:[#allocation0]]
  $region45: #{mmult_batched.1} parent=0
    _
  %s5 = ssub.s32 1, %s3
  %s6 = scalar_select 0, %s5, %s3
  $region1: #{mmult_batched.1} parent=0
    #allocation2 [shape = 'u8[1048576]{0}', space=vmem, size = 0x100000, scoped, tag = 'input window, operand 0']
    #allocation3 [shape = 's32[2]{0}', space=sflag, size = 0x8, scoped, tag = 'scoped memory for mmult_batched.1']
    #allocation4 [shape = 's32[2]{0}', space=sflag, size = 0x8, scoped, tag = 'scoped memory for mmult_batched.1']
    #allocation5 [shape = 'u8[524288]{0}', space=vmem, size = 0x80000, scoped, tag = 'output window, operand 0']
    %7 = vsyncpa [#allocation3], 0
    %s8 = scalar_lea.sflag [#allocation3], 1
    %9 = vsyncpa %s8, 0
    %10 = vsyncpa [#allocation4], 0
    %s11 = scalar_lea.sflag [#allocation4], 1
    %12 = vsyncpa %s11, 0
    loop: start=0, step=1, limit=6
    $region2: #{mmult_batched.1} parent=1 // loop_pre_header
      _
    $region3: #{mmult_batched.1} parent=1 // loop_header
      %s14 = sphi 0, %s18
      %p15 = scmp.ge.s32.totalorder %s14, 6
      %s24 = sphi 0, %s26
      %s27 = sphi 0, %s24
      %s28 = sphi 0, %s27
      %s44 = sphi 0, %s28
      %s48 = sphi 0, %s48
      %s50 = sphi 0, %s48
      %s51 = sphi 0, %s50
      %s65 = sphi 0, %s51
      %s71 = sphi 0, %s73
      %s74 = sphi 0, %s71
      %s75 = sphi 0, %s74
      %s91 = sphi 0, %s75
    $region4: #{mmult_batched.1} parent=1 // loop_header_branch
      %17 = sbr.rel (%p15) target = $region8
    $region5: #{mmult_batched.1} parent=1 // loop_body
      %s19 = ssub.s32 %s14, 1
      %s20 = ssub.s32 %s14, 2
      %s21 = sadd.s32 %s14, 1
      %s22 = ssub.s32 %s14, %s21
      %p23 = scmp.eq.s32.totalorder %s22, 0
      %s25 = sadd.s32 %s24, 1
      %s26 = scalar_select %p23, %s24, %s25
      %p29 = pneg %p23
      %p30 = scmp.eq.s32.totalorder %s14, 3
      %p31 = por %p29, %p30
      %p32 = scmp.ne.s32.totalorder %s24, %s27
      %p33 = scmp.eq.s32.totalorder %s14, 0
      %p34 = por %p32, %p33
      %p35 = scmp.ne.s32.totalorder %s24, %s27
      %p36 = scmp.eq.s32.totalorder %s19, 3
      %p37 = por %p35, %p36
      %p38 = scmp.ne.s32.totalorder %s27, %s28
      %p39 = scmp.eq.s32.totalorder %s19, 0
      %p40 = por %p38, %p39
      %p41 = scmp.ne.s32.totalorder %s27, %s28
      %p42 = scmp.eq.s32.totalorder %s20, 3
      %p43 = por %p41, %p42
      %p45 = scmp.ne.s32.totalorder %s28, %s44
      %p46 = scmp.eq.s32.totalorder %s20, 0
      %p47 = por %p45, %p46
      %s49 = sadd.s32 %s48, 1
      %p52 = scmp.eq.s32.totalorder %s14, 3
      %p53 = scmp.ne.s32.totalorder %s48, %s50
      %p54 = scmp.eq.s32.totalorder %s14, 0
      %p55 = por %p53, %p54
      %p56 = scmp.ne.s32.totalorder %s48, %s50
      %p57 = scmp.eq.s32.totalorder %s19, 3
      %p58 = por %p56, %p57
      %p59 = scmp.ne.s32.totalorder %s50, %s51
      %p60 = scmp.eq.s32.totalorder %s19, 0
      %p61 = por %p59, %p60
      %p62 = scmp.ne.s32.totalorder %s50, %s51
      %p63 = scmp.eq.s32.totalorder %s20, 3
      %p64 = por %p62, %p63
      %p66 = scmp.ne.s32.totalorder %s51, %s65
      %p67 = scmp.eq.s32.totalorder %s20, 0
      %p68 = por %p66, %p67
      %s69 = ssub.s32 %s14, %s21
      %p70 = scmp.eq.s32.totalorder %s69, 0
      %s72 = sadd.s32 %s71, 1
      %s73 = scalar_select %p70, %s71, %s72
      %p76 = pneg %p70
      %p77 = scmp.eq.s32.totalorder %s14, 3
      %p78 = por %p76, %p77
      %p79 = scmp.ne.s32.totalorder %s71, %s74
      %p80 = scmp.eq.s32.totalorder %s14, 0
      %p81 = por %p79, %p80
      %p82 = scmp.ne.s32.totalorder %s71, %s74
      %p83 = scmp.eq.s32.totalorder %s19, 3
      %p84 = por %p82, %p83
      %p85 = scmp.ne.s32.totalorder %s74, %s75
      %p86 = scmp.eq.s32.totalorder %s19, 0
      %p87 = por %p85, %p86
      %p88 = scmp.ne.s32.totalorder %s74, %s75
      %p89 = scmp.eq.s32.totalorder %s20, 3
      %p90 = por %p88, %p89
      %p92 = scmp.ne.s32.totalorder %s75, %s91
      %p93 = scmp.eq.s32.totalorder %s20, 0
      %p94 = por %p92, %p93
      %p95 = scmp.le.s32.totalorder 1, %s14
      %p96 = scmp.lt.s32.totalorder %s14, 5
      %p97 = pnand %p95, %p96
      %p98 = pneg %p97
      // Predicated region
      $region9: #{mmult_batched.1} parent=5 // pred_check
        _
      $region10: #{mmult_batched.1} parent=5 // pred_check_branch
        %100 = sbr.rel (%p97) target = $region12
      $region11: #{mmult_batched.1} parent=5 // pred_region
        %s101 = ssub.s32 %s14, 1
        // Predicated region
        $region13: #{mmult_batched.1} parent=11 // pred_check
          %p102 = pneg %p61
        $region14: #{mmult_batched.1} parent=11 // pred_check_branch
          %104 = sbr.rel (%p102) target = $region16
        $region15: #{mmult_batched.1} parent=11 // pred_region
          _
        $region16: #{mmult_batched.1} parent=11 // pred_fallthru
          _
      $region12: #{mmult_batched.1} parent=5 // pred_fallthru
        _
      %p105 = scmp.lt.s32.totalorder %s14, 4
      // Predicated region
      $region17: #{mmult_batched.1} parent=5 // pred_check
        %p106 = pneg %p105
      $region18: #{mmult_batched.1} parent=5 // pred_check_branch
        %108 = sbr.rel (%p106) target = $region20
      $region19: #{mmult_batched.1} parent=5 // pred_region
        // Predicated region
        $region21: #{mmult_batched.1} parent=19 // pred_check
          %p109 = pneg %p34
        $region22: #{mmult_batched.1} parent=19 // pred_check_branch
          %111 = sbr.rel (%p109) target = $region24
        $region23: #{mmult_batched.1} parent=19 // pred_region
          %s112 = sand.u32 %s24, 1
          %s113 = scalar_lea.sflag [#allocation3], %s112
          %s114 = sand.u32 %s24, 1
          %s115 = smul.addr %s114, 1024
          %s116 = scalar_lea.vmem [#allocation2], %s115
          %s117 = smul.u32 8, %s14
          %s119 = ssub.s32 16384, 16384
          %120 = vsyncadd %s113, %s119
          %s121 = smul.addr %s117, 16
          %s122 = smul.addr %s121, 128
          %s123 = scalar_lea.hbm %s0, %s122
          %s124 = sshll.u32 %s116, 4
          %s125 = int_to_ptr.vmem [resolvable:$true] %s124
          %130 = dma.hbm_to_vmem [thread:$0]  %s123, 16384, %s125, %s113, 256, 256, 16
        $region24: #{mmult_batched.1} parent=19 // pred_fallthru
          _
      $region20: #{mmult_batched.1} parent=5 // pred_fallthru
        _
      %p131 = scmp.le.s32.totalorder 1, %s14
      %p132 = scmp.lt.s32.totalorder %s14, 5
      %p133 = pnand %p131, %p132
      %p134 = pneg %p133
      // Predicated region
      $region25: #{mmult_batched.1} parent=5 // pred_check
        _
      $region26: #{mmult_batched.1} parent=5 // pred_check_branch
        %136 = sbr.rel (%p133) target = $region28
      $region27: #{mmult_batched.1} parent=5 // pred_region
        %s137 = ssub.s32 %s14, 1
        %s138 = sand.u32 %s27, 1
        %s139 = scalar_lea.sflag [#allocation3], %s138
        %s140 = sand.u32 %s27, 1
        %s141 = smul.addr %s140, 1024
        %s142 = scalar_lea.vmem [#allocation2], %s141
        // Predicated region
        $region29: #{mmult_batched.1} parent=27 // pred_check
          %p143 = pneg %p40
        $region30: #{mmult_batched.1} parent=27 // pred_check_branch
          %145 = sbr.rel (%p143) target = $region32
        $region31: #{mmult_batched.1} parent=27 // pred_region
          %146 = dma.done %s139, 16384
        $region32: #{mmult_batched.1} parent=27 // pred_fallthru
          _
        %s147 = sand.u32 %s27, 1
        %s148 = scalar_lea.sflag [#allocation3], %s147
        %s149 = sand.u32 %s27, 1
        %s150 = smul.addr %s149, 1024
        %s151 = scalar_lea.vmem [#allocation2], %s150
        %p152 = pneg %p40
        %p153 = pneg %p37
        %p154 = pneg %p61
        %p155 = pneg %p58
        %p156 = pneg %p87
        %p157 = pneg %p84
        %s158 = sand.u32 %s74, 1
        %s159 = scalar_lea.sflag [#allocation4], %s158
        %s160 = sand.u32 %s74, 1
        %s161 = smul.addr %s160, 512
        %s162 = scalar_lea.vmem [#allocation5], %s161
        %s163 = smul.u32 8, %s19
        %s164 = smul.u32 8, %s19
        %v165 = vld [vmem:[%s142] sm:$0xff]
        %v166 = vld [vmem:[%s142 + $0x8] sm:$0xff]
        %v167 = vld [vmem:[%s142 + $0x10] sm:$0xff]
        %v168 = vld [vmem:[%s142 + $0x18] sm:$0xff]
        %v169 = vld [vmem:[%s142 + $0x20] sm:$0xff]
        %v170 = vld [vmem:[%s142 + $0x28] sm:$0xff]
        %v171 = vld [vmem:[%s142 + $0x30] sm:$0xff]
        %v172 = vld [vmem:[%s142 + $0x38] sm:$0xff]
        %v173 = vld [vmem:[%s142 + $0x40] sm:$0xff]
        %v174 = vld [vmem:[%s142 + $0x48] sm:$0xff]
        %v175 = vld [vmem:[%s142 + $0x50] sm:$0xff]
        %v176 = vld [vmem:[%s142 + $0x58] sm:$0xff]
        %v177 = vld [vmem:[%s142 + $0x60] sm:$0xff]
        %v178 = vld [vmem:[%s142 + $0x68] sm:$0xff]
        %v179 = vld [vmem:[%s142 + $0x70] sm:$0xff]
        %v180 = vld [vmem:[%s142 + $0x78] sm:$0xff]
        %v181 = vld [vmem:[%s142 + $0x80] sm:$0xff]
        %v182 = vld [vmem:[%s142 + $0x88] sm:$0xff]
        %v183 = vld [vmem:[%s142 + $0x90] sm:$0xff]
        %v184 = vld [vmem:[%s142 + $0x98] sm:$0xff]
        %v185 = vld [vmem:[%s142 + $0xa0] sm:$0xff]
        %v186 = vld [vmem:[%s142 + $0xa8] sm:$0xff]
        %v187 = vld [vmem:[%s142 + $0xb0] sm:$0xff]
        %v188 = vld [vmem:[%s142 + $0xb8] sm:$0xff]
        %v189 = vld [vmem:[%s142 + $0xc0] sm:$0xff]
        %v190 = vld [vmem:[%s142 + $0xc8] sm:$0xff]
        %v191 = vld [vmem:[%s142 + $0xd0] sm:$0xff]
        %v192 = vld [vmem:[%s142 + $0xd8] sm:$0xff]
        %v193 = vld [vmem:[%s142 + $0xe0] sm:$0xff]
        %v194 = vld [vmem:[%s142 + $0xe8] sm:$0xff]
        %v195 = vld [vmem:[%s142 + $0xf0] sm:$0xff]
        %v196 = vld [vmem:[%s142 + $0xf8] sm:$0xff]
        %v197 = vld [vmem:[%s142 + $0x100] sm:$0xff]
        %v198 = vld [vmem:[%s142 + $0x108] sm:$0xff]
        %v199 = vld [vmem:[%s142 + $0x110] sm:$0xff]
        %v200 = vld [vmem:[%s142 + $0x118] sm:$0xff]
        %v201 = vld [vmem:[%s142 + $0x120] sm:$0xff]
        %v202 = vld [vmem:[%s142 + $0x128] sm:$0xff]
        %v203 = vld [vmem:[%s142 + $0x130] sm:$0xff]
        %v204 = vld [vmem:[%s142 + $0x138] sm:$0xff]
        %v205 = vld [vmem:[%s142 + $0x140] sm:$0xff]
        %v206 = vld [vmem:[%s142 + $0x148] sm:$0xff]
        %v207 = vld [vmem:[%s142 + $0x150] sm:$0xff]
        %v208 = vld [vmem:[%s142 + $0x158] sm:$0xff]
        %v209 = vld [vmem:[%s142 + $0x160] sm:$0xff]
        %v210 = vld [vmem:[%s142 + $0x168] sm:$0xff]
        %v211 = vld [vmem:[%s142 + $0x170] sm:$0xff]
        %v212 = vld [vmem:[%s142 + $0x178] sm:$0xff]
        %v213 = vld [vmem:[%s142 + $0x180] sm:$0xff]
        %v214 = vld [vmem:[%s142 + $0x188] sm:$0xff]
        %v215 = vld [vmem:[%s142 + $0x190] sm:$0xff]
        %v216 = vld [vmem:[%s142 + $0x198] sm:$0xff]
        %v217 = vld [vmem:[%s142 + $0x1a0] sm:$0xff]
        %v218 = vld [vmem:[%s142 + $0x1a8] sm:$0xff]
        %v219 = vld [vmem:[%s142 + $0x1b0] sm:$0xff]
        %v220 = vld [vmem:[%s142 + $0x1b8] sm:$0xff]
        %v221 = vld [vmem:[%s142 + $0x1c0] sm:$0xff]
        %v222 = vld [vmem:[%s142 + $0x1c8] sm:$0xff]
        %v223 = vld [vmem:[%s142 + $0x1d0] sm:$0xff]
        %v224 = vld [vmem:[%s142 + $0x1d8] sm:$0xff]
        %v225 = vld [vmem:[%s142 + $0x1e0] sm:$0xff]
        %v226 = vld [vmem:[%s142 + $0x1e8] sm:$0xff]
        %v227 = vld [vmem:[%s142 + $0x1f0] sm:$0xff]
        %v228 = vld [vmem:[%s142 + $0x1f8] sm:$0xff]
        %v229 = vld [vmem:[%s142 + $0x200] sm:$0xff]
        %v230 = vld [vmem:[%s142 + $0x208] sm:$0xff]
        %v231 = vld [vmem:[%s142 + $0x210] sm:$0xff]
        %v232 = vld [vmem:[%s142 + $0x218] sm:$0xff]
        %v233 = vld [vmem:[%s142 + $0x220] sm:$0xff]
        %v234 = vld [vmem:[%s142 + $0x228] sm:$0xff]
        %v235 = vld [vmem:[%s142 + $0x230] sm:$0xff]
        %v236 = vld [vmem:[%s142 + $0x238] sm:$0xff]
        %v237 = vld [vmem:[%s142 + $0x240] sm:$0xff]
        %v238 = vld [vmem:[%s142 + $0x248] sm:$0xff]
        %v239 = vld [vmem:[%s142 + $0x250] sm:$0xff]
        %v240 = vld [vmem:[%s142 + $0x258] sm:$0xff]
        %v241 = vld [vmem:[%s142 + $0x260] sm:$0xff]
        %v242 = vld [vmem:[%s142 + $0x268] sm:$0xff]
        %v243 = vld [vmem:[%s142 + $0x270] sm:$0xff]
        %v244 = vld [vmem:[%s142 + $0x278] sm:$0xff]
        %v245 = vld [vmem:[%s142 + $0x280] sm:$0xff]
        %v246 = vld [vmem:[%s142 + $0x288] sm:$0xff]
        %v247 = vld [vmem:[%s142 + $0x290] sm:$0xff]
        %v248 = vld [vmem:[%s142 + $0x298] sm:$0xff]
        %v249 = vld [vmem:[%s142 + $0x2a0] sm:$0xff]
        %v250 = vld [vmem:[%s142 + $0x2a8] sm:$0xff]
        %v251 = vld [vmem:[%s142 + $0x2b0] sm:$0xff]
        %v252 = vld [vmem:[%s142 + $0x2b8] sm:$0xff]
        %v253 = vld [vmem:[%s142 + $0x2c0] sm:$0xff]
        %v254 = vld [vmem:[%s142 + $0x2c8] sm:$0xff]
        %v255 = vld [vmem:[%s142 + $0x2d0] sm:$0xff]
        %v256 = vld [vmem:[%s142 + $0x2d8] sm:$0xff]
        %v257 = vld [vmem:[%s142 + $0x2e0] sm:$0xff]
        %v258 = vld [vmem:[%s142 + $0x2e8] sm:$0xff]
        %v259 = vld [vmem:[%s142 + $0x2f0] sm:$0xff]
        %v260 = vld [vmem:[%s142 + $0x2f8] sm:$0xff]
        %v261 = vld [vmem:[%s142 + $0x300] sm:$0xff]
        %v262 = vld [vmem:[%s142 + $0x308] sm:$0xff]
        %v263 = vld [vmem:[%s142 + $0x310] sm:$0xff]
        %v264 = vld [vmem:[%s142 + $0x318] sm:$0xff]
        %v265 = vld [vmem:[%s142 + $0x320] sm:$0xff]
        %v266 = vld [vmem:[%s142 + $0x328] sm:$0xff]
        %v267 = vld [vmem:[%s142 + $0x330] sm:$0xff]
        %v268 = vld [vmem:[%s142 + $0x338] sm:$0xff]
        %v269 = vld [vmem:[%s142 + $0x340] sm:$0xff]
        %v270 = vld [vmem:[%s142 + $0x348] sm:$0xff]
        %v271 = vld [vmem:[%s142 + $0x350] sm:$0xff]
        %v272 = vld [vmem:[%s142 + $0x358] sm:$0xff]
        %v273 = vld [vmem:[%s142 + $0x360] sm:$0xff]
        %v274 = vld [vmem:[%s142 + $0x368] sm:$0xff]
        %v275 = vld [vmem:[%s142 + $0x370] sm:$0xff]
        %v276 = vld [vmem:[%s142 + $0x378] sm:$0xff]
        %v277 = vld [vmem:[%s142 + $0x380] sm:$0xff]
        %v278 = vld [vmem:[%s142 + $0x388] sm:$0xff]
        %v279 = vld [vmem:[%s142 + $0x390] sm:$0xff]
        %v280 = vld [vmem:[%s142 + $0x398] sm:$0xff]
        %v281 = vld [vmem:[%s142 + $0x3a0] sm:$0xff]
        %v282 = vld [vmem:[%s142 + $0x3a8] sm:$0xff]
        %v283 = vld [vmem:[%s142 + $0x3b0] sm:$0xff]
        %v284 = vld [vmem:[%s142 + $0x3b8] sm:$0xff]
        %v285 = vld [vmem:[%s142 + $0x3c0] sm:$0xff]
        %v286 = vld [vmem:[%s142 + $0x3c8] sm:$0xff]
        %v287 = vld [vmem:[%s142 + $0x3d0] sm:$0xff]
        %v288 = vld [vmem:[%s142 + $0x3d8] sm:$0xff]
        %v289 = vld [vmem:[%s142 + $0x3e0] sm:$0xff]
        %v290 = vld [vmem:[%s142 + $0x3e8] sm:$0xff]
        %v291 = vld [vmem:[%s142 + $0x3f0] sm:$0xff]
        %v292 = vld [vmem:[%s142 + $0x3f8] sm:$0xff]
        %v293 = vld [vmem:[%s1] sm:$0xff]
        %v294 = vld [vmem:[%s1 + $0x8] sm:$0xff]
        %v295 = vld [vmem:[%s1 + $0x10] sm:$0xff]
        %v296 = vld [vmem:[%s1 + $0x18] sm:$0xff]
        %v297 = vld [vmem:[%s1 + $0x20] sm:$0xff]
        %v298 = vld [vmem:[%s1 + $0x28] sm:$0xff]
        %v299 = vld [vmem:[%s1 + $0x30] sm:$0xff]
        %v300 = vld [vmem:[%s1 + $0x38] sm:$0xff]
        %v301 = vld [vmem:[%s1 + $0x40] sm:$0xff]
        %v302 = vld [vmem:[%s1 + $0x48] sm:$0xff]
        %v303 = vld [vmem:[%s1 + $0x50] sm:$0xff]
        %v304 = vld [vmem:[%s1 + $0x58] sm:$0xff]
        %v305 = vld [vmem:[%s1 + $0x60] sm:$0xff]
        %v306 = vld [vmem:[%s1 + $0x68] sm:$0xff]
        %v307 = vld [vmem:[%s1 + $0x70] sm:$0xff]
        %v308 = vld [vmem:[%s1 + $0x78] sm:$0xff]
        %v309 = vld [vmem:[%s1 + $0x80] sm:$0xff]
        %v310 = vld [vmem:[%s1 + $0x88] sm:$0xff]
        %v311 = vld [vmem:[%s1 + $0x90] sm:$0xff]
        %v312 = vld [vmem:[%s1 + $0x98] sm:$0xff]
        %v313 = vld [vmem:[%s1 + $0xa0] sm:$0xff]
        %v314 = vld [vmem:[%s1 + $0xa8] sm:$0xff]
        %v315 = vld [vmem:[%s1 + $0xb0] sm:$0xff]
        %v316 = vld [vmem:[%s1 + $0xb8] sm:$0xff]
        %v317 = vld [vmem:[%s1 + $0xc0] sm:$0xff]
        %v318 = vld [vmem:[%s1 + $0xc8] sm:$0xff]
        %v319 = vld [vmem:[%s1 + $0xd0] sm:$0xff]
        %v320 = vld [vmem:[%s1 + $0xd8] sm:$0xff]
        %v321 = vld [vmem:[%s1 + $0xe0] sm:$0xff]
        %v322 = vld [vmem:[%s1 + $0xe8] sm:$0xff]
        %v323 = vld [vmem:[%s1 + $0xf0] sm:$0xff]
        %v324 = vld [vmem:[%s1 + $0xf8] sm:$0xff]
        %v325 = vld [vmem:[%s1 + $0x100] sm:$0xff]
        %v326 = vld [vmem:[%s1 + $0x108] sm:$0xff]
        %v327 = vld [vmem:[%s1 + $0x110] sm:$0xff]
        %v328 = vld [vmem:[%s1 + $0x118] sm:$0xff]
        %v329 = vld [vmem:[%s1 + $0x120] sm:$0xff]
        %v330 = vld [vmem:[%s1 + $0x128] sm:$0xff]
        %v331 = vld [vmem:[%s1 + $0x130] sm:$0xff]
        %v332 = vld [vmem:[%s1 + $0x138] sm:$0xff]
        %v333 = vld [vmem:[%s1 + $0x140] sm:$0xff]
        %v334 = vld [vmem:[%s1 + $0x148] sm:$0xff]
        %v335 = vld [vmem:[%s1 + $0x150] sm:$0xff]
        %v336 = vld [vmem:[%s1 + $0x158] sm:$0xff]
        %v337 = vld [vmem:[%s1 + $0x160] sm:$0xff]
        %v338 = vld [vmem:[%s1 + $0x168] sm:$0xff]
        %v339 = vld [vmem:[%s1 + $0x170] sm:$0xff]
        %v340 = vld [vmem:[%s1 + $0x178] sm:$0xff]
        %v341 = vld [vmem:[%s1 + $0x180] sm:$0xff]
        %v342 = vld [vmem:[%s1 + $0x188] sm:$0xff]
        %v343 = vld [vmem:[%s1 + $0x190] sm:$0xff]
        %v344 = vld [vmem:[%s1 + $0x198] sm:$0xff]
        %v345 = vld [vmem:[%s1 + $0x1a0] sm:$0xff]
        %v346 = vld [vmem:[%s1 + $0x1a8] sm:$0xff]
        %v347 = vld [vmem:[%s1 + $0x1b0] sm:$0xff]
        %v348 = vld [vmem:[%s1 + $0x1b8] sm:$0xff]
        %v349 = vld [vmem:[%s1 + $0x1c0] sm:$0xff]
        %v350 = vld [vmem:[%s1 + $0x1c8] sm:$0xff]
        %v351 = vld [vmem:[%s1 + $0x1d0] sm:$0xff]
        %v352 = vld [vmem:[%s1 + $0x1d8] sm:$0xff]
        %v353 = vld [vmem:[%s1 + $0x1e0] sm:$0xff]
        %v354 = vld [vmem:[%s1 + $0x1e8] sm:$0xff]
        %v355 = vld [vmem:[%s1 + $0x1f0] sm:$0xff]
        %v356 = vld [vmem:[%s1 + $0x1f8] sm:$0xff]
        %357 = vmatprep.subr.mxu0 %v294
        %358 = vmatpush1.msra.mxu0 %v293
        %359 = vmatprep.subr.mxu0 %v296
        %360 = vmatpush1.msra.mxu0 %v295
        %361 = vmatprep.subr.mxu0 %v298
        %362 = vmatpush1.msra.mxu0 %v297
        %363 = vmatprep.subr.mxu0 %v300
        %364 = vmatpush1.msra.mxu0 %v299
        %365 = vmatprep.subr.mxu0 %v302
        %366 = vmatpush1.msra.mxu0 %v301
        %367 = vmatprep.subr.mxu0 %v304
        %368 = vmatpush1.msra.mxu0 %v303
        %369 = vmatprep.subr.mxu0 %v306
        %370 = vmatpush1.msra.mxu0 %v305
        %371 = vmatprep.subr.mxu0 %v308
        %372 = vmatpush1.msra.mxu0 %v307
        %373 = vmatprep.subr.mxu0 %v310
        %374 = vmatpush1.msra.mxu0 %v309
        %375 = vmatprep.subr.mxu0 %v312
        %376 = vmatpush1.msra.mxu0 %v311
        %377 = vmatprep.subr.mxu0 %v314
        %378 = vmatpush1.msra.mxu0 %v313
        %379 = vmatprep.subr.mxu0 %v316
        %380 = vmatpush1.msra.mxu0 %v315
        %381 = vmatprep.subr.mxu0 %v318
        %382 = vmatpush1.msra.mxu0 %v317
        %383 = vmatprep.subr.mxu0 %v320
        %384 = vmatpush1.msra.mxu0 %v319
        %385 = vmatprep.subr.mxu0 %v322
        %386 = vmatpush1.msra.mxu0 %v321
        %387 = vmatprep.subr.mxu0 %v324
        %388 = vmatpush1.msra.mxu0 %v323
        %389 = vmatprep.subr.mxu0 %v326
        %390 = vmatpush1.msra.mxu0 %v325
        %391 = vmatprep.subr.mxu0 %v328
        %392 = vmatpush1.msra.mxu0 %v327
        %393 = vmatprep.subr.mxu0 %v330
        %394 = vmatpush1.msra.mxu0 %v329
        %395 = vmatprep.subr.mxu0 %v332
        %396 = vmatpush1.msra.mxu0 %v331
        %397 = vmatprep.subr.mxu0 %v334
        %398 = vmatpush1.msra.mxu0 %v333
        %399 = vmatprep.subr.mxu0 %v336
        %400 = vmatpush1.msra.mxu0 %v335
        %401 = vmatprep.subr.mxu0 %v338
        %402 = vmatpush1.msra.mxu0 %v337
        %403 = vmatprep.subr.mxu0 %v340
        %404 = vmatpush1.msra.mxu0 %v339
        %405 = vmatprep.subr.mxu0 %v342
        %406 = vmatpush1.msra.mxu0 %v341
        %407 = vmatprep.subr.mxu0 %v344
        %408 = vmatpush1.msra.mxu0 %v343
        %409 = vmatprep.subr.mxu0 %v346
        %410 = vmatpush1.msra.mxu0 %v345
        %411 = vmatprep.subr.mxu0 %v348
        %412 = vmatpush1.msra.mxu0 %v347
        %413 = vmatprep.subr.mxu0 %v350
        %414 = vmatpush1.msra.mxu0 %v349
        %415 = vmatprep.subr.mxu0 %v352
        %416 = vmatpush1.msra.mxu0 %v351
        %417 = vmatprep.subr.mxu0 %v354
        %418 = vmatpush1.msra.mxu0 %v353
        %419 = vmatprep.subr.mxu0 %v356
        %420 = vmatpush1.msra.mxu0 %v355
        %421 = vmatprep.mubr.f32.mxu0 %v166
        %422 = vmatmul.mubr.f32.gmra.mrb[0].mxu0 %v165
        %v423 = vpop.f32.mrb[0].mxu0
        %v424 = vadd.f32 0.0, %v423
        %v425 = vpop.f32.mrb[0].mxu0
        %v426 = vadd.f32 0.0, %v425
        %427 = vmatprep.mubr.f32.mxu0 %v168
        %428 = vmatmul.mubr.f32.gmra.mrb[0].mxu0 %v167
        %v429 = vpop.f32.mrb[0].mxu0
        %v430 = vadd.f32 0.0, %v429
        %v431 = vpop.f32.mrb[0].mxu0
        %v432 = vadd.f32 0.0, %v431
        %433 = vmatprep.mubr.f32.mxu0 %v170
        %434 = vmatmul.mubr.f32.gmra.mrb[0].mxu0 %v169
        %v435 = vpop.f32.mrb[0].mxu0
        %v436 = vadd.f32 0.0, %v435
        %v437 = vpop.f32.mrb[0].mxu0
        %v438 = vadd.f32 0.0, %v437
        %439 = vmatprep.mubr.f32.mxu0 %v172
        %440 = vmatmul.mubr.f32.gmra.mrb[0].mxu0 %v171
        %v441 = vpop.f32.mrb[0].mxu0
        %v442 = vadd.f32 0.0, %v441
        %v443 = vpop.f32.mrb[0].mxu0
        %v444 = vadd.f32 0.0, %v443
        %445 = vmatprep.mubr.f32.mxu0 %v174
        %446 = vmatmul.mubr.f32.gmra.mrb[0].mxu0 %v173
        %v447 = vpop.f32.mrb[0].mxu0
        %v448 = vadd.f32 0.0, %v447
        %v449 = vpop.f32.mrb[0].mxu0
        %v450 = vadd.f32 0.0, %v449
        %451 = vmatprep.mubr.f32.mxu0 %v176
        %452 = vmatmul.mubr.f32.gmra.mrb[0].mxu0 %v175
        %v453 = vpop.f32.mrb[0].mxu0
        %v454 = vadd.f32 0.0, %v453
        %v455 = vpop.f32.mrb[0].mxu0
        %v456 = vadd.f32 0.0, %v455
        %457 = vmatprep.mubr.f32.mxu0 %v178
        %458 = vmatmul.mubr.f32.gmra.mrb[0].mxu0 %v177
        %v459 = vpop.f32.mrb[0].mxu0
        %v460 = vadd.f32 0.0, %v459
        %v461 = vpop.f32.mrb[0].mxu0
        %v462 = vadd.f32 0.0, %v461
        %463 = vmatprep.mubr.f32.mxu0 %v180
        %464 = vmatmul.mubr.f32.gmra.mrb[0].mxu0 %v179
        %v465 = vpop.f32.mrb[0].mxu0
        %v466 = vadd.f32 0.0, %v465
        %v467 = vpop.f32.mrb[0].mxu0
        %v468 = vadd.f32 0.0, %v467
        %469 = vmatprep.mubr.f32.mxu0 %v182
        %470 = vmatmul.mubr.f32.gmra.mrb[0].mxu0 %v181
        %v471 = vpop.f32.mrb[0].mxu0
        %v472 = vadd.f32 0.0, %v471
        %v473 = vpop.f32.mrb[0].mxu0
        %v474 = vadd.f32 0.0, %v473
        %475 = vmatprep.mubr.f32.mxu0 %v184
        %476 = vmatmul.mubr.f32.gmra.mrb[0].mxu0 %v183
        %v477 = vpop.f32.mrb[0].mxu0
        %v478 = vadd.f32 0.0, %v477
        %v479 = vpop.f32.mrb[0].mxu0
        %v480 = vadd.f32 0.0, %v479
        %481 = vmatprep.mubr.f32.mxu0 %v186
        %482 = vmatmul.mubr.f32.gmra.mrb[0].mxu0 %v185
        %v483 = vpop.f32.mrb[0].mxu0
        %v484 = vadd.f32 0.0, %v483
        %v485 = vpop.f32.mrb[0].mxu0
        %v486 = vadd.f32 0.0, %v485
        %487 = vmatprep.mubr.f32.mxu0 %v188
        %488 = vmatmul.mubr.f32.gmra.mrb[0].mxu0 %v187
        %v489 = vpop.f32.mrb[0].mxu0
        %v490 = vadd.f32 0.0, %v489
        %v491 = vpop.f32.mrb[0].mxu0
        %v492 = vadd.f32 0.0, %v491
        %493 = vmatprep.mubr.f32.mxu0 %v190
        %494 = vmatmul.mubr.f32.gmra.mrb[0].mxu0 %v189
        %v495 = vpop.f32.mrb[0].mxu0
        %v496 = vadd.f32 0.0, %v495
        %v497 = vpop.f32.mrb[0].mxu0
        %v498 = vadd.f32 0.0, %v497
        %499 = vmatprep.mubr.f32.mxu0 %v192
        %500 = vmatmul.mubr.f32.gmra.mrb[0].mxu0 %v191
        %v501 = vpop.f32.mrb[0].mxu0
        %v502 = vadd.f32 0.0, %v501
        %v503 = vpop.f32.mrb[0].mxu0
        %v504 = vadd.f32 0.0, %v503
        %505 = vmatprep.mubr.f32.mxu0 %v194
        %506 = vmatmul.mubr.f32.gmra.mrb[0].mxu0 %v193
        %v507 = vpop.f32.mrb[0].mxu0
        %v508 = vadd.f32 0.0, %v507
        %v509 = vpop.f32.mrb[0].mxu0
        %v510 = vadd.f32 0.0, %v509
        %511 = vmatprep.mubr.f32.mxu0 %v196
        %512 = vmatmul.mubr.f32.gmra.mrb[0].mxu0 %v195
        %v513 = vpop.f32.mrb[0].mxu0
        %v514 = vadd.f32 0.0, %v513
        %v515 = vpop.f32.mrb[0].mxu0
        %v516 = vadd.f32 0.0, %v515
        %517 = vmatprep.mubr.f32.mxu0 %v198
        %518 = vmatmul.mubr.f32.gmra.mrb[0].mxu0 %v197
        %v519 = vpop.f32.mrb[0].mxu0
        %v520 = vadd.f32 0.0, %v519
        %v521 = vpop.f32.mrb[0].mxu0
        %v522 = vadd.f32 0.0, %v521
        %523 = vmatprep.mubr.f32.mxu0 %v200
        %524 = vmatmul.mubr.f32.gmra.mrb[0].mxu0 %v199
        %v525 = vpop.f32.mrb[0].mxu0
        %v526 = vadd.f32 0.0, %v525
        %v527 = vpop.f32.mrb[0].mxu0
        %v528 = vadd.f32 0.0, %v527
        %529 = vmatprep.mubr.f32.mxu0 %v202
        %530 = vmatmul.mubr.f32.gmra.mrb[0].mxu0 %v201
        %v531 = vpop.f32.mrb[0].mxu0
        %v532 = vadd.f32 0.0, %v531
        %v533 = vpop.f32.mrb[0].mxu0
        %v534 = vadd.f32 0.0, %v533
        %535 = vmatprep.mubr.f32.mxu0 %v204
        %536 = vmatmul.mubr.f32.gmra.mrb[0].mxu0 %v203
        %v537 = vpop.f32.mrb[0].mxu0
        %v538 = vadd.f32 0.0, %v537
        %v539 = vpop.f32.mrb[0].mxu0
        %v540 = vadd.f32 0.0, %v539
        %541 = vmatprep.mubr.f32.mxu0 %v206
        %542 = vmatmul.mubr.f32.gmra.mrb[0].mxu0 %v205
        %v543 = vpop.f32.mrb[0].mxu0
        %v544 = vadd.f32 0.0, %v543
        %v545 = vpop.f32.mrb[0].mxu0
        %v546 = vadd.f32 0.0, %v545
        %547 = vmatprep.mubr.f32.mxu0 %v208
        %548 = vmatmul.mubr.f32.gmra.mrb[0].mxu0 %v207
        %v549 = vpop.f32.mrb[0].mxu0
        %v550 = vadd.f32 0.0, %v549
        %v551 = vpop.f32.mrb[0].mxu0
        %v552 = vadd.f32 0.0, %v551
        %553 = vmatprep.mubr.f32.mxu0 %v210
        %554 = vmatmul.mubr.f32.gmra.mrb[0].mxu0 %v209
        %v555 = vpop.f32.mrb[0].mxu0
        %v556 = vadd.f32 0.0, %v555
        %v557 = vpop.f32.mrb[0].mxu0
        %v558 = vadd.f32 0.0, %v557
        %559 = vmatprep.mubr.f32.mxu0 %v212
        %560 = vmatmul.mubr.f32.gmra.mrb[0].mxu0 %v211
        %v561 = vpop.f32.mrb[0].mxu0
        %v562 = vadd.f32 0.0, %v561
        %v563 = vpop.f32.mrb[0].mxu0
        %v564 = vadd.f32 0.0, %v563
        %565 = vmatprep.mubr.f32.mxu0 %v214
        %566 = vmatmul.mubr.f32.gmra.mrb[0].mxu0 %v213
        %v567 = vpop.f32.mrb[0].mxu0
        %v568 = vadd.f32 0.0, %v567
        %v569 = vpop.f32.mrb[0].mxu0
        %v570 = vadd.f32 0.0, %v569
        %571 = vmatprep.mubr.f32.mxu0 %v216
        %572 = vmatmul.mubr.f32.gmra.mrb[0].mxu0 %v215
        %v573 = vpop.f32.mrb[0].mxu0
        %v574 = vadd.f32 0.0, %v573
        %v575 = vpop.f32.mrb[0].mxu0
        %v576 = vadd.f32 0.0, %v575
        %577 = vmatprep.mubr.f32.mxu0 %v218
        %578 = vmatmul.mubr.f32.gmra.mrb[0].mxu0 %v217
        %v579 = vpop.f32.mrb[0].mxu0
        %v580 = vadd.f32 0.0, %v579
        %v581 = vpop.f32.mrb[0].mxu0
        %v582 = vadd.f32 0.0, %v581
        %583 = vmatprep.mubr.f32.mxu0 %v220
        %584 = vmatmul.mubr.f32.gmra.mrb[0].mxu0 %v219
        %v585 = vpop.f32.mrb[0].mxu0
        %v586 = vadd.f32 0.0, %v585
        %v587 = vpop.f32.mrb[0].mxu0
        %v588 = vadd.f32 0.0, %v587
        %589 = vmatprep.mubr.f32.mxu0 %v222
        %590 = vmatmul.mubr.f32.gmra.mrb[0].mxu0 %v221
        %v591 = vpop.f32.mrb[0].mxu0
        %v592 = vadd.f32 0.0, %v591
        %v593 = vpop.f32.mrb[0].mxu0
        %v594 = vadd.f32 0.0, %v593
        %595 = vmatprep.mubr.f32.mxu0 %v224
        %596 = vmatmul.mubr.f32.gmra.mrb[0].mxu0 %v223
        %v597 = vpop.f32.mrb[0].mxu0
        %v598 = vadd.f32 0.0, %v597
        %v599 = vpop.f32.mrb[0].mxu0
        %v600 = vadd.f32 0.0, %v599
        %601 = vmatprep.mubr.f32.mxu0 %v226
        %602 = vmatmul.mubr.f32.gmra.mrb[0].mxu0 %v225
        %v603 = vpop.f32.mrb[0].mxu0
        %v604 = vadd.f32 0.0, %v603
        %v605 = vpop.f32.mrb[0].mxu0
        %v606 = vadd.f32 0.0, %v605
        %607 = vmatprep.mubr.f32.mxu0 %v228
        %608 = vmatmul.mubr.f32.gmra.mrb[0].mxu0 %v227
        %v609 = vpop.f32.mrb[0].mxu0
        %v610 = vadd.f32 0.0, %v609
        %v611 = vpop.f32.mrb[0].mxu0
        %v612 = vadd.f32 0.0, %v611
        %613 = vmatprep.mubr.f32.mxu0 %v230
        %614 = vmatmul.mubr.f32.gmra.mrb[0].mxu0 %v229
        %v615 = vpop.f32.mrb[0].mxu0
        %v616 = vadd.f32 0.0, %v615
        %v617 = vpop.f32.mrb[0].mxu0
        %v618 = vadd.f32 0.0, %v617
        %619 = vmatprep.mubr.f32.mxu0 %v232
        %620 = vmatmul.mubr.f32.gmra.mrb[0].mxu0 %v231
        %v621 = vpop.f32.mrb[0].mxu0
        %v622 = vadd.f32 0.0, %v621
        %v623 = vpop.f32.mrb[0].mxu0
        %v624 = vadd.f32 0.0, %v623
        %625 = vmatprep.mubr.f32.mxu0 %v234
        %626 = vmatmul.mubr.f32.gmra.mrb[0].mxu0 %v233
        %v627 = vpop.f32.mrb[0].mxu0
        %v628 = vadd.f32 0.0, %v627
        %v629 = vpop.f32.mrb[0].mxu0
        %v630 = vadd.f32 0.0, %v629
        %631 = vmatprep.mubr.f32.mxu0 %v236
        %632 = vmatmul.mubr.f32.gmra.mrb[0].mxu0 %v235
        %v633 = vpop.f32.mrb[0].mxu0
        %v634 = vadd.f32 0.0, %v633
        %v635 = vpop.f32.mrb[0].mxu0
        %v636 = vadd.f32 0.0, %v635
        %637 = vmatprep.mubr.f32.mxu0 %v238
        %638 = vmatmul.mubr.f32.gmra.mrb[0].mxu0 %v237
        %v639 = vpop.f32.mrb[0].mxu0
        %v640 = vadd.f32 0.0, %v639
        %v641 = vpop.f32.mrb[0].mxu0
        %v642 = vadd.f32 0.0, %v641
        %643 = vmatprep.mubr.f32.mxu0 %v240
        %644 = vmatmul.mubr.f32.gmra.mrb[0].mxu0 %v239
        %v645 = vpop.f32.mrb[0].mxu0
        %v646 = vadd.f32 0.0, %v645
        %v647 = vpop.f32.mrb[0].mxu0
        %v648 = vadd.f32 0.0, %v647
        %649 = vmatprep.mubr.f32.mxu0 %v242
        %650 = vmatmul.mubr.f32.gmra.mrb[0].mxu0 %v241
        %v651 = vpop.f32.mrb[0].mxu0
        %v652 = vadd.f32 0.0, %v651
        %v653 = vpop.f32.mrb[0].mxu0
        %v654 = vadd.f32 0.0, %v653
        %655 = vmatprep.mubr.f32.mxu0 %v244
        %656 = vmatmul.mubr.f32.gmra.mrb[0].mxu0 %v243
        %v657 = vpop.f32.mrb[0].mxu0
        %v658 = vadd.f32 0.0, %v657
        %v659 = vpop.f32.mrb[0].mxu0
        %v660 = vadd.f32 0.0, %v659
        %661 = vmatprep.mubr.f32.mxu0 %v246
        %662 = vmatmul.mubr.f32.gmra.mrb[0].mxu0 %v245
        %v663 = vpop.f32.mrb[0].mxu0
        %v664 = vadd.f32 0.0, %v663
        %v665 = vpop.f32.mrb[0].mxu0
        %v666 = vadd.f32 0.0, %v665
        %667 = vmatprep.mubr.f32.mxu0 %v248
        %668 = vmatmul.mubr.f32.gmra.mrb[0].mxu0 %v247
        %v669 = vpop.f32.mrb[0].mxu0
        %v670 = vadd.f32 0.0, %v669
        %v671 = vpop.f32.mrb[0].mxu0
        %v672 = vadd.f32 0.0, %v671
        %673 = vmatprep.mubr.f32.mxu0 %v250
        %674 = vmatmul.mubr.f32.gmra.mrb[0].mxu0 %v249
        %v675 = vpop.f32.mrb[0].mxu0
        %v676 = vadd.f32 0.0, %v675
        %v677 = vpop.f32.mrb[0].mxu0
        %v678 = vadd.f32 0.0, %v677
        %679 = vmatprep.mubr.f32.mxu0 %v252
        %680 = vmatmul.mubr.f32.gmra.mrb[0].mxu0 %v251
        %v681 = vpop.f32.mrb[0].mxu0
        %v682 = vadd.f32 0.0, %v681
        %v683 = vpop.f32.mrb[0].mxu0
        %v684 = vadd.f32 0.0, %v683
        %685 = vmatprep.mubr.f32.mxu0 %v254
        %686 = vmatmul.mubr.f32.gmra.mrb[0].mxu0 %v253
        %v687 = vpop.f32.mrb[0].mxu0
        %v688 = vadd.f32 0.0, %v687
        %v689 = vpop.f32.mrb[0].mxu0
        %v690 = vadd.f32 0.0, %v689
        %691 = vmatprep.mubr.f32.mxu0 %v256
        %692 = vmatmul.mubr.f32.gmra.mrb[0].mxu0 %v255
        %v693 = vpop.f32.mrb[0].mxu0
        %v694 = vadd.f32 0.0, %v693
        %v695 = vpop.f32.mrb[0].mxu0
        %v696 = vadd.f32 0.0, %v695
        %697 = vmatprep.mubr.f32.mxu0 %v258
        %698 = vmatmul.mubr.f32.gmra.mrb[0].mxu0 %v257
        %v699 = vpop.f32.mrb[0].mxu0
        %v700 = vadd.f32 0.0, %v699
        %v701 = vpop.f32.mrb[0].mxu0
        %v702 = vadd.f32 0.0, %v701
        %703 = vmatprep.mubr.f32.mxu0 %v260
        %704 = vmatmul.mubr.f32.gmra.mrb[0].mxu0 %v259
        %v705 = vpop.f32.mrb[0].mxu0
        %v706 = vadd.f32 0.0, %v705
        %v707 = vpop.f32.mrb[0].mxu0
        %v708 = vadd.f32 0.0, %v707
        %709 = vmatprep.mubr.f32.mxu0 %v262
        %710 = vmatmul.mubr.f32.gmra.mrb[0].mxu0 %v261
        %v711 = vpop.f32.mrb[0].mxu0
        %v712 = vadd.f32 0.0, %v711
        %v713 = vpop.f32.mrb[0].mxu0
        %v714 = vadd.f32 0.0, %v713
        %715 = vmatprep.mubr.f32.mxu0 %v264
        %716 = vmatmul.mubr.f32.gmra.mrb[0].mxu0 %v263
        %v717 = vpop.f32.mrb[0].mxu0
        %v718 = vadd.f32 0.0, %v717
        %v719 = vpop.f32.mrb[0].mxu0
        %v720 = vadd.f32 0.0, %v719
        %721 = vmatprep.mubr.f32.mxu0 %v266
        %722 = vmatmul.mubr.f32.gmra.mrb[0].mxu0 %v265
        %v723 = vpop.f32.mrb[0].mxu0
        %v724 = vadd.f32 0.0, %v723
        %v725 = vpop.f32.mrb[0].mxu0
        %v726 = vadd.f32 0.0, %v725
        %727 = vmatprep.mubr.f32.mxu0 %v268
        %728 = vmatmul.mubr.f32.gmra.mrb[0].mxu0 %v267
        %v729 = vpop.f32.mrb[0].mxu0
        %v730 = vadd.f32 0.0, %v729
        %v731 = vpop.f32.mrb[0].mxu0
        %v732 = vadd.f32 0.0, %v731
        %733 = vmatprep.mubr.f32.mxu0 %v270
        %734 = vmatmul.mubr.f32.gmra.mrb[0].mxu0 %v269
        %v735 = vpop.f32.mrb[0].mxu0
        %v736 = vadd.f32 0.0, %v735
        %v737 = vpop.f32.mrb[0].mxu0
        %v738 = vadd.f32 0.0, %v737
        %739 = vmatprep.mubr.f32.mxu0 %v272
        %740 = vmatmul.mubr.f32.gmra.mrb[0].mxu0 %v271
        %v741 = vpop.f32.mrb[0].mxu0
        %v742 = vadd.f32 0.0, %v741
        %v743 = vpop.f32.mrb[0].mxu0
        %v744 = vadd.f32 0.0, %v743
        %745 = vmatprep.mubr.f32.mxu0 %v274
        %746 = vmatmul.mubr.f32.gmra.mrb[0].mxu0 %v273
        %v747 = vpop.f32.mrb[0].mxu0
        %v748 = vadd.f32 0.0, %v747
        %v749 = vpop.f32.mrb[0].mxu0
        %v750 = vadd.f32 0.0, %v749
        %751 = vmatprep.mubr.f32.mxu0 %v276
        %752 = vmatmul.mubr.f32.gmra.mrb[0].mxu0 %v275
        %v753 = vpop.f32.mrb[0].mxu0
        %v754 = vadd.f32 0.0, %v753
        %v755 = vpop.f32.mrb[0].mxu0
        %v756 = vadd.f32 0.0, %v755
        %757 = vmatprep.mubr.f32.mxu0 %v278
        %758 = vmatmul.mubr.f32.gmra.mrb[0].mxu0 %v277
        %v759 = vpop.f32.mrb[0].mxu0
        %v760 = vadd.f32 0.0, %v759
        %v761 = vpop.f32.mrb[0].mxu0
        %v762 = vadd.f32 0.0, %v761
        %763 = vmatprep.mubr.f32.mxu0 %v280
        %764 = vmatmul.mubr.f32.gmra.mrb[0].mxu0 %v279
        %v765 = vpop.f32.mrb[0].mxu0
        %v766 = vadd.f32 0.0, %v765
        %v767 = vpop.f32.mrb[0].mxu0
        %v768 = vadd.f32 0.0, %v767
        %769 = vmatprep.mubr.f32.mxu0 %v282
        %770 = vmatmul.mubr.f32.gmra.mrb[0].mxu0 %v281
        %v771 = vpop.f32.mrb[0].mxu0
        %v772 = vadd.f32 0.0, %v771
        %v773 = vpop.f32.mrb[0].mxu0
        %v774 = vadd.f32 0.0, %v773
        %775 = vmatprep.mubr.f32.mxu0 %v284
        %776 = vmatmul.mubr.f32.gmra.mrb[0].mxu0 %v283
        %v777 = vpop.f32.mrb[0].mxu0
        %v778 = vadd.f32 0.0, %v777
        %v779 = vpop.f32.mrb[0].mxu0
        %v780 = vadd.f32 0.0, %v779
        %781 = vmatprep.mubr.f32.mxu0 %v286
        %782 = vmatmul.mubr.f32.gmra.mrb[0].mxu0 %v285
        %v783 = vpop.f32.mrb[0].mxu0
        %v784 = vadd.f32 0.0, %v783
        %v785 = vpop.f32.mrb[0].mxu0
        %v786 = vadd.f32 0.0, %v785
        %787 = vmatprep.mubr.f32.mxu0 %v288
        %788 = vmatmul.mubr.f32.gmra.mrb[0].mxu0 %v287
        %v789 = vpop.f32.mrb[0].mxu0
        %v790 = vadd.f32 0.0, %v789
        %v791 = vpop.f32.mrb[0].mxu0
        %v792 = vadd.f32 0.0, %v791
        %793 = vmatprep.mubr.f32.mxu0 %v290
        %794 = vmatmul.mubr.f32.gmra.mrb[0].mxu0 %v289
        %v795 = vpop.f32.mrb[0].mxu0
        %v796 = vadd.f32 0.0, %v795
        %v797 = vpop.f32.mrb[0].mxu0
        %v798 = vadd.f32 0.0, %v797
        %799 = vmatprep.mubr.f32.mxu0 %v292
        %800 = vmatmul.mubr.f32.gmra.mrb[0].mxu0 %v291
        %v801 = vpop.f32.mrb[0].mxu0
        %v802 = vadd.f32 0.0, %v801
        %v803 = vpop.f32.mrb[0].mxu0
        %v804 = vadd.f32 0.0, %v803
        %805 = vdwg.mxu0
        %814 = vrot.lane.b32.xlu0 %v424, 64
        %v815 = vpop.permute.xlu0 %814
        %816 = vrot.lane.b32.xlu0 %v430, 64
        %v817 = vpop.permute.xlu0 %816
        %818 = vrot.lane.b32.xlu0 %v436, 64
        %v819 = vpop.permute.xlu0 %818
        %820 = vrot.lane.b32.xlu0 %v442, 64
        %v821 = vpop.permute.xlu0 %820
        %822 = vrot.lane.b32.xlu0 %v448, 64
        %v823 = vpop.permute.xlu0 %822
        %824 = vrot.lane.b32.xlu0 %v454, 64
        %v825 = vpop.permute.xlu0 %824
        %826 = vrot.lane.b32.xlu0 %v460, 64
        %v827 = vpop.permute.xlu0 %826
        %828 = vrot.lane.b32.xlu0 %v466, 64
        %v829 = vpop.permute.xlu0 %828
        %vm838 = vcmask 523264
        %v839 = vsel %vm838, %v424, 0
        %v841 = vsel %vm838, %v430, 0
        %v843 = vsel %vm838, %v436, 0
        %v845 = vsel %vm838, %v442, 0
        %v847 = vsel %vm838, %v448, 0
        %v849 = vsel %vm838, %v454, 0
        %v851 = vsel %vm838, %v460, 0
        %v853 = vsel %vm838, %v466, 0
        %855 = vmatprep.subr.mxu0 0.0
        %856 = vmatpush1.msra.mxu0 %v815
        %857 = vmatprep.subr.mxu0 0.0
        %858 = vmatpush1.msra.mxu0 %v817
        %859 = vmatprep.subr.mxu0 0.0
        %860 = vmatpush1.msra.mxu0 %v819
        %861 = vmatprep.subr.mxu0 0.0
        %862 = vmatpush1.msra.mxu0 %v821
        %863 = vmatprep.subr.mxu0 0.0
        %864 = vmatpush1.msra.mxu0 %v823
        %865 = vmatprep.subr.mxu0 0.0
        %866 = vmatpush1.msra.mxu0 %v825
        %867 = vmatprep.subr.mxu0 0.0
        %868 = vmatpush1.msra.mxu0 %v827
        %869 = vmatprep.subr.mxu0 0.0
        %870 = vmatpush1.msra.mxu0 %v829
        %871 = vmatprep.subr.mxu0 0.0
        %872 = vmatpush1.msra.mxu0 0.0
        %873 = vmatprep.subr.mxu0 0.0
        %874 = vmatpush1.msra.mxu0 0.0
        %875 = vmatprep.subr.mxu0 0.0
        %876 = vmatpush1.msra.mxu0 0.0
        %877 = vmatprep.subr.mxu0 0.0
        %878 = vmatpush1.msra.mxu0 0.0
        %879 = vmatprep.subr.mxu0 0.0
        %880 = vmatpush1.msra.mxu0 0.0
        %881 = vmatprep.subr.mxu0 0.0
        %882 = vmatpush1.msra.mxu0 0.0
        %883 = vmatprep.subr.mxu0 0.0
        %884 = vmatpush1.msra.mxu0 0.0
        %885 = vmatprep.subr.mxu0 0.0
        %886 = vmatpush1.msra.mxu0 0.0
        %887 = vmatprep.subr.mxu0 0.0
        %888 = vmatpush1.msra.mxu0 0.0
        %889 = vmatprep.subr.mxu0 0.0
        %890 = vmatpush1.msra.mxu0 0.0
        %891 = vmatprep.subr.mxu0 0.0
        %892 = vmatpush1.msra.mxu0 0.0
        %893 = vmatprep.subr.mxu0 0.0
        %894 = vmatpush1.msra.mxu0 0.0
        %895 = vmatprep.subr.mxu0 0.0
        %896 = vmatpush1.msra.mxu0 0.0
        %897 = vmatprep.subr.mxu0 0.0
        %898 = vmatpush1.msra.mxu0 0.0
        %899 = vmatprep.subr.mxu0 0.0
        %900 = vmatpush1.msra.mxu0 0.0
        %901 = vmatprep.subr.mxu0 0.0
        %902 = vmatpush1.msra.mxu0 0.0
        %903 = vmatprep.subr.mxu0 0.0
        %904 = vmatpush1.msra.mxu0 0.0
        %905 = vmatprep.subr.mxu0 0.0
        %906 = vmatpush1.msra.mxu0 0.0
        %907 = vmatprep.subr.mxu0 0.0
        %908 = vmatpush1.msra.mxu0 0.0
        %909 = vmatprep.subr.mxu0 0.0
        %910 = vmatpush1.msra.mxu0 0.0
        %911 = vmatprep.subr.mxu0 0.0
        %912 = vmatpush1.msra.mxu0 0.0
        %913 = vmatprep.subr.mxu0 0.0
        %914 = vmatpush1.msra.mxu0 0.0
        %915 = vmatprep.subr.mxu0 0.0
        %916 = vmatpush1.msra.mxu0 0.0
        %917 = vmatprep.subr.mxu0 0.0
        %918 = vmatpush1.msra.mxu0 0.0
        %919 = vmatprep.mubr.f32.mxu0 0.0
        %920 = vmatmul.mubr.f32.gmra.mrb[0].mxu0 %v839
        %v921 = vpop.f32.mrb[0].mxu0
        %v922 = vadd.f32 0.0, %v921
        %v923 = vpop.f32.mrb[0].mxu0
        %924 = vmatprep.mubr.f32.mxu0 0.0
        %925 = vmatmul.mubr.f32.gmra.mrb[0].mxu0 %v841
        %v926 = vpop.f32.mrb[0].mxu0
        %v927 = vadd.f32 0.0, %v926
        %v928 = vpop.f32.mrb[0].mxu0
        %929 = vmatprep.mubr.f32.mxu0 0.0
        %930 = vmatmul.mubr.f32.gmra.mrb[0].mxu0 %v843
        %v931 = vpop.f32.mrb[0].mxu0
        %v932 = vadd.f32 0.0, %v931
        %v933 = vpop.f32.mrb[0].mxu0
        %934 = vmatprep.mubr.f32.mxu0 0.0
        %935 = vmatmul.mubr.f32.gmra.mrb[0].mxu0 %v845
        %v936 = vpop.f32.mrb[0].mxu0
        %v937 = vadd.f32 0.0, %v936
        %v938 = vpop.f32.mrb[0].mxu0
        %939 = vmatprep.mubr.f32.mxu0 0.0
        %940 = vmatmul.mubr.f32.gmra.mrb[0].mxu0 %v847
        %v941 = vpop.f32.mrb[0].mxu0
        %v942 = vadd.f32 0.0, %v941
        %v943 = vpop.f32.mrb[0].mxu0
        %944 = vmatprep.mubr.f32.mxu0 0.0
        %945 = vmatmul.mubr.f32.gmra.mrb[0].mxu0 %v849
        %v946 = vpop.f32.mrb[0].mxu0
        %v947 = vadd.f32 0.0, %v946
        %v948 = vpop.f32.mrb[0].mxu0
        %949 = vmatprep.mubr.f32.mxu0 0.0
        %950 = vmatmul.mubr.f32.gmra.mrb[0].mxu0 %v851
        %v951 = vpop.f32.mrb[0].mxu0
        %v952 = vadd.f32 0.0, %v951
        %v953 = vpop.f32.mrb[0].mxu0
        %954 = vmatprep.mubr.f32.mxu0 0.0
        %955 = vmatmul.mubr.f32.gmra.mrb[0].mxu0 %v853
        %v956 = vpop.f32.mrb[0].mxu0
        %v957 = vadd.f32 0.0, %v956
        %v958 = vpop.f32.mrb[0].mxu0
        %959 = vdwg.mxu0
        %968 = vrot.lane.b32.xlu0 %v472, 64
        %v969 = vpop.permute.xlu0 %968
        %970 = vrot.lane.b32.xlu0 %v478, 64
        %v971 = vpop.permute.xlu0 %970
        %972 = vrot.lane.b32.xlu0 %v484, 64
        %v973 = vpop.permute.xlu0 %972
        %974 = vrot.lane.b32.xlu0 %v490, 64
        %v975 = vpop.permute.xlu0 %974
        %976 = vrot.lane.b32.xlu0 %v496, 64
        %v977 = vpop.permute.xlu0 %976
        %978 = vrot.lane.b32.xlu0 %v502, 64
        %v979 = vpop.permute.xlu0 %978
        %980 = vrot.lane.b32.xlu0 %v508, 64
        %v981 = vpop.permute.xlu0 %980
        %982 = vrot.lane.b32.xlu0 %v514, 64
        %v983 = vpop.permute.xlu0 %982
        %v992 = vsel %vm838, %v472, 0
        %v994 = vsel %vm838, %v478, 0
        %v996 = vsel %vm838, %v484, 0
        %v998 = vsel %vm838, %v490, 0
        %v1000 = vsel %vm838, %v496, 0
        %v1002 = vsel %vm838, %v502, 0
        %v1004 = vsel %vm838, %v508, 0
        %v1006 = vsel %vm838, %v514, 0
        %1008 = vmatprep.subr.mxu0 0.0
        %1009 = vmatpush1.msra.mxu0 %v969
        %1010 = vmatprep.subr.mxu0 0.0
        %1011 = vmatpush1.msra.mxu0 %v971
        %1012 = vmatprep.subr.mxu0 0.0
        %1013 = vmatpush1.msra.mxu0 %v973
        %1014 = vmatprep.subr.mxu0 0.0
        %1015 = vmatpush1.msra.mxu0 %v975
        %1016 = vmatprep.subr.mxu0 0.0
        %1017 = vmatpush1.msra.mxu0 %v977
        %1018 = vmatprep.subr.mxu0 0.0
        %1019 = vmatpush1.msra.mxu0 %v979
        %1020 = vmatprep.subr.mxu0 0.0
        %1021 = vmatpush1.msra.mxu0 %v981
        %1022 = vmatprep.subr.mxu0 0.0
        %1023 = vmatpush1.msra.mxu0 %v983
        %1024 = vmatprep.subr.mxu0 0.0
        %1025 = vmatpush1.msra.mxu0 0.0
        %1026 = vmatprep.subr.mxu0 0.0
        %1027 = vmatpush1.msra.mxu0 0.0
        %1028 = vmatprep.subr.mxu0 0.0
        %1029 = vmatpush1.msra.mxu0 0.0
        %1030 = vmatprep.subr.mxu0 0.0
        %1031 = vmatpush1.msra.mxu0 0.0
        %1032 = vmatprep.subr.mxu0 0.0
        %1033 = vmatpush1.msra.mxu0 0.0
        %1034 = vmatprep.subr.mxu0 0.0
        %1035 = vmatpush1.msra.mxu0 0.0
        %1036 = vmatprep.subr.mxu0 0.0
        %1037 = vmatpush1.msra.mxu0 0.0
        %1038 = vmatprep.subr.mxu0 0.0
        %1039 = vmatpush1.msra.mxu0 0.0
        %1040 = vmatprep.subr.mxu0 0.0
        %1041 = vmatpush1.msra.mxu0 0.0
        %1042 = vmatprep.subr.mxu0 0.0
        %1043 = vmatpush1.msra.mxu0 0.0
        %1044 = vmatprep.subr.mxu0 0.0
        %1045 = vmatpush1.msra.mxu0 0.0
        %1046 = vmatprep.subr.mxu0 0.0
        %1047 = vmatpush1.msra.mxu0 0.0
        %1048 = vmatprep.subr.mxu0 0.0
        %1049 = vmatpush1.msra.mxu0 0.0
        %1050 = vmatprep.subr.mxu0 0.0
        %1051 = vmatpush1.msra.mxu0 0.0
        %1052 = vmatprep.subr.mxu0 0.0
        %1053 = vmatpush1.msra.mxu0 0.0
        %1054 = vmatprep.subr.mxu0 0.0
        %1055 = vmatpush1.msra.mxu0 0.0
        %1056 = vmatprep.subr.mxu0 0.0
        %1057 = vmatpush1.msra.mxu0 0.0
        %1058 = vmatprep.subr.mxu0 0.0
        %1059 = vmatpush1.msra.mxu0 0.0
        %1060 = vmatprep.subr.mxu0 0.0
        %1061 = vmatpush1.msra.mxu0 0.0
        %1062 = vmatprep.subr.mxu0 0.0
        %1063 = vmatpush1.msra.mxu0 0.0
        %1064 = vmatprep.subr.mxu0 0.0
        %1065 = vmatpush1.msra.mxu0 0.0
        %1066 = vmatprep.subr.mxu0 0.0
        %1067 = vmatpush1.msra.mxu0 0.0
        %1068 = vmatprep.subr.mxu0 0.0
        %1069 = vmatpush1.msra.mxu0 0.0
        %1070 = vmatprep.subr.mxu0 0.0
        %1071 = vmatpush1.msra.mxu0 0.0
        %1072 = vmatprep.mubr.f32.mxu0 0.0
        %1073 = vmatmul.mubr.f32.gmra.mrb[0].mxu0 %v992
        %v1074 = vpop.f32.mrb[0].mxu0
        %v1075 = vadd.f32 0.0, %v1074
        %v1076 = vpop.f32.mrb[0].mxu0
        %1077 = vmatprep.mubr.f32.mxu0 0.0
        %1078 = vmatmul.mubr.f32.gmra.mrb[0].mxu0 %v994
        %v1079 = vpop.f32.mrb[0].mxu0
        %v1080 = vadd.f32 0.0, %v1079
        %v1081 = vpop.f32.mrb[0].mxu0
        %1082 = vmatprep.mubr.f32.mxu0 0.0
        %1083 = vmatmul.mubr.f32.gmra.mrb[0].mxu0 %v996
        %v1084 = vpop.f32.mrb[0].mxu0
        %v1085 = vadd.f32 0.0, %v1084
        %v1086 = vpop.f32.mrb[0].mxu0
        %1087 = vmatprep.mubr.f32.mxu0 0.0
        %1088 = vmatmul.mubr.f32.gmra.mrb[0].mxu0 %v998
        %v1089 = vpop.f32.mrb[0].mxu0
        %v1090 = vadd.f32 0.0, %v1089
        %v1091 = vpop.f32.mrb[0].mxu0
        %1092 = vmatprep.mubr.f32.mxu0 0.0
        %1093 = vmatmul.mubr.f32.gmra.mrb[0].mxu0 %v1000
        %v1094 = vpop.f32.mrb[0].mxu0
        %v1095 = vadd.f32 0.0, %v1094
        %v1096 = vpop.f32.mrb[0].mxu0
        %1097 = vmatprep.mubr.f32.mxu0 0.0
        %1098 = vmatmul.mubr.f32.gmra.mrb[0].mxu0 %v1002
        %v1099 = vpop.f32.mrb[0].mxu0
        %v1100 = vadd.f32 0.0, %v1099
        %v1101 = vpop.f32.mrb[0].mxu0
        %1102 = vmatprep.mubr.f32.mxu0 0.0
        %1103 = vmatmul.mubr.f32.gmra.mrb[0].mxu0 %v1004
        %v1104 = vpop.f32.mrb[0].mxu0
        %v1105 = vadd.f32 0.0, %v1104
        %v1106 = vpop.f32.mrb[0].mxu0
        %1107 = vmatprep.mubr.f32.mxu0 0.0
        %1108 = vmatmul.mubr.f32.gmra.mrb[0].mxu0 %v1006
        %v1109 = vpop.f32.mrb[0].mxu0
        %v1110 = vadd.f32 0.0, %v1109
        %v1111 = vpop.f32.mrb[0].mxu0
        %1112 = vdwg.mxu0
        %1121 = vrot.lane.b32.xlu0 %v520, 64
        %v1122 = vpop.permute.xlu0 %1121
        %1123 = vrot.lane.b32.xlu0 %v526, 64
        %v1124 = vpop.permute.xlu0 %1123
        %1125 = vrot.lane.b32.xlu0 %v532, 64
        %v1126 = vpop.permute.xlu0 %1125
        %1127 = vrot.lane.b32.xlu0 %v538, 64
        %v1128 = vpop.permute.xlu0 %1127
        %1129 = vrot.lane.b32.xlu0 %v544, 64
        %v1130 = vpop.permute.xlu0 %1129
        %1131 = vrot.lane.b32.xlu0 %v550, 64
        %v1132 = vpop.permute.xlu0 %1131
        %1133 = vrot.lane.b32.xlu0 %v556, 64
        %v1134 = vpop.permute.xlu0 %1133
        %1135 = vrot.lane.b32.xlu0 %v562, 64
        %v1136 = vpop.permute.xlu0 %1135
        %v1145 = vsel %vm838, %v520, 0
        %v1147 = vsel %vm838, %v526, 0
        %v1149 = vsel %vm838, %v532, 0
        %v1151 = vsel %vm838, %v538, 0
        %v1153 = vsel %vm838, %v544, 0
        %v1155 = vsel %vm838, %v550, 0
        %v1157 = vsel %vm838, %v556, 0
        %v1159 = vsel %vm838, %v562, 0
        %1161 = vmatprep.subr.mxu0 0.0
        %1162 = vmatpush1.msra.mxu0 %v1122
        %1163 = vmatprep.subr.mxu0 0.0
        %1164 = vmatpush1.msra.mxu0 %v1124
        %1165 = vmatprep.subr.mxu0 0.0
        %1166 = vmatpush1.msra.mxu0 %v1126
        %1167 = vmatprep.subr.mxu0 0.0
        %1168 = vmatpush1.msra.mxu0 %v1128
        %1169 = vmatprep.subr.mxu0 0.0
        %1170 = vmatpush1.msra.mxu0 %v1130
        %1171 = vmatprep.subr.mxu0 0.0
        %1172 = vmatpush1.msra.mxu0 %v1132
        %1173 = vmatprep.subr.mxu0 0.0
        %1174 = vmatpush1.msra.mxu0 %v1134
        %1175 = vmatprep.subr.mxu0 0.0
        %1176 = vmatpush1.msra.mxu0 %v1136
        %1177 = vmatprep.subr.mxu0 0.0
        %1178 = vmatpush1.msra.mxu0 0.0
        %1179 = vmatprep.subr.mxu0 0.0
        %1180 = vmatpush1.msra.mxu0 0.0
        %1181 = vmatprep.subr.mxu0 0.0
        %1182 = vmatpush1.msra.mxu0 0.0
        %1183 = vmatprep.subr.mxu0 0.0
        %1184 = vmatpush1.msra.mxu0 0.0
        %1185 = vmatprep.subr.mxu0 0.0
        %1186 = vmatpush1.msra.mxu0 0.0
        %1187 = vmatprep.subr.mxu0 0.0
        %1188 = vmatpush1.msra.mxu0 0.0
        %1189 = vmatprep.subr.mxu0 0.0
        %1190 = vmatpush1.msra.mxu0 0.0
        %1191 = vmatprep.subr.mxu0 0.0
        %1192 = vmatpush1.msra.mxu0 0.0
        %1193 = vmatprep.subr.mxu0 0.0
        %1194 = vmatpush1.msra.mxu0 0.0
        %1195 = vmatprep.subr.mxu0 0.0
        %1196 = vmatpush1.msra.mxu0 0.0
        %1197 = vmatprep.subr.mxu0 0.0
        %1198 = vmatpush1.msra.mxu0 0.0
        %1199 = vmatprep.subr.mxu0 0.0
        %1200 = vmatpush1.msra.mxu0 0.0
        %1201 = vmatprep.subr.mxu0 0.0
        %1202 = vmatpush1.msra.mxu0 0.0
        %1203 = vmatprep.subr.mxu0 0.0
        %1204 = vmatpush1.msra.mxu0 0.0
        %1205 = vmatprep.subr.mxu0 0.0
        %1206 = vmatpush1.msra.mxu0 0.0
        %1207 = vmatprep.subr.mxu0 0.0
        %1208 = vmatpush1.msra.mxu0 0.0
        %1209 = vmatprep.subr.mxu0 0.0
        %1210 = vmatpush1.msra.mxu0 0.0
        %1211 = vmatprep.subr.mxu0 0.0
        %1212 = vmatpush1.msra.mxu0 0.0
        %1213 = vmatprep.subr.mxu0 0.0
        %1214 = vmatpush1.msra.mxu0 0.0
        %1215 = vmatprep.subr.mxu0 0.0
        %1216 = vmatpush1.msra.mxu0 0.0
        %1217 = vmatprep.subr.mxu0 0.0
        %1218 = vmatpush1.msra.mxu0 0.0
        %1219 = vmatprep.subr.mxu0 0.0
        %1220 = vmatpush1.msra.mxu0 0.0
        %1221 = vmatprep.subr.mxu0 0.0
        %1222 = vmatpush1.msra.mxu0 0.0
        %1223 = vmatprep.subr.mxu0 0.0
        %1224 = vmatpush1.msra.mxu0 0.0
        %1225 = vmatprep.mubr.f32.mxu0 0.0
        %1226 = vmatmul.mubr.f32.gmra.mrb[0].mxu0 %v1145
        %v1227 = vpop.f32.mrb[0].mxu0
        %v1228 = vadd.f32 0.0, %v1227
        %v1229 = vpop.f32.mrb[0].mxu0
        %1230 = vmatprep.mubr.f32.mxu0 0.0
        %1231 = vmatmul.mubr.f32.gmra.mrb[0].mxu0 %v1147
        %v1232 = vpop.f32.mrb[0].mxu0
        %v1233 = vadd.f32 0.0, %v1232
        %v1234 = vpop.f32.mrb[0].mxu0
        %1235 = vmatprep.mubr.f32.mxu0 0.0
        %1236 = vmatmul.mubr.f32.gmra.mrb[0].mxu0 %v1149
        %v1237 = vpop.f32.mrb[0].mxu0
        %v1238 = vadd.f32 0.0, %v1237
        %v1239 = vpop.f32.mrb[0].mxu0
        %1240 = vmatprep.mubr.f32.mxu0 0.0
        %1241 = vmatmul.mubr.f32.gmra.mrb[0].mxu0 %v1151
        %v1242 = vpop.f32.mrb[0].mxu0
        %v1243 = vadd.f32 0.0, %v1242
        %v1244 = vpop.f32.mrb[0].mxu0
        %1245 = vmatprep.mubr.f32.mxu0 0.0
        %1246 = vmatmul.mubr.f32.gmra.mrb[0].mxu0 %v1153
        %v1247 = vpop.f32.mrb[0].mxu0
        %v1248 = vadd.f32 0.0, %v1247
        %v1249 = vpop.f32.mrb[0].mxu0
        %1250 = vmatprep.mubr.f32.mxu0 0.0
        %1251 = vmatmul.mubr.f32.gmra.mrb[0].mxu0 %v1155
        %v1252 = vpop.f32.mrb[0].mxu0
        %v1253 = vadd.f32 0.0, %v1252
        %v1254 = vpop.f32.mrb[0].mxu0
        %1255 = vmatprep.mubr.f32.mxu0 0.0
        %1256 = vmatmul.mubr.f32.gmra.mrb[0].mxu0 %v1157
        %v1257 = vpop.f32.mrb[0].mxu0
        %v1258 = vadd.f32 0.0, %v1257
        %v1259 = vpop.f32.mrb[0].mxu0
        %1260 = vmatprep.mubr.f32.mxu0 0.0
        %1261 = vmatmul.mubr.f32.gmra.mrb[0].mxu0 %v1159
        %v1262 = vpop.f32.mrb[0].mxu0
        %v1263 = vadd.f32 0.0, %v1262
        %v1264 = vpop.f32.mrb[0].mxu0
        %1265 = vdwg.mxu0
        %1274 = vrot.lane.b32.xlu0 %v568, 64
        %v1275 = vpop.permute.xlu0 %1274
        %1276 = vrot.lane.b32.xlu0 %v574, 64
        %v1277 = vpop.permute.xlu0 %1276
        %1278 = vrot.lane.b32.xlu0 %v580, 64
        %v1279 = vpop.permute.xlu0 %1278
        %1280 = vrot.lane.b32.xlu0 %v586, 64
        %v1281 = vpop.permute.xlu0 %1280
        %1282 = vrot.lane.b32.xlu0 %v592, 64
        %v1283 = vpop.permute.xlu0 %1282
        %1284 = vrot.lane.b32.xlu0 %v598, 64
        %v1285 = vpop.permute.xlu0 %1284
        %1286 = vrot.lane.b32.xlu0 %v604, 64
        %v1287 = vpop.permute.xlu0 %1286
        %1288 = vrot.lane.b32.xlu0 %v610, 64
        %v1289 = vpop.permute.xlu0 %1288
        %v1298 = vsel %vm838, %v568, 0
        %v1300 = vsel %vm838, %v574, 0
        %v1302 = vsel %vm838, %v580, 0
        %v1304 = vsel %vm838, %v586, 0
        %v1306 = vsel %vm838, %v592, 0
        %v1308 = vsel %vm838, %v598, 0
        %v1310 = vsel %vm838, %v604, 0
        %v1312 = vsel %vm838, %v610, 0
        %1314 = vmatprep.subr.mxu0 0.0
        %1315 = vmatpush1.msra.mxu0 %v1275
        %1316 = vmatprep.subr.mxu0 0.0
        %1317 = vmatpush1.msra.mxu0 %v1277
        %1318 = vmatprep.subr.mxu0 0.0
        %1319 = vmatpush1.msra.mxu0 %v1279
        %1320 = vmatprep.subr.mxu0 0.0
        %1321 = vmatpush1.msra.mxu0 %v1281
        %1322 = vmatprep.subr.mxu0 0.0
        %1323 = vmatpush1.msra.mxu0 %v1283
        %1324 = vmatprep.subr.mxu0 0.0
        %1325 = vmatpush1.msra.mxu0 %v1285
        %1326 = vmatprep.subr.mxu0 0.0
        %1327 = vmatpush1.msra.mxu0 %v1287
        %1328 = vmatprep.subr.mxu0 0.0
        %1329 = vmatpush1.msra.mxu0 %v1289
        %1330 = vmatprep.subr.mxu0 0.0
        %1331 = vmatpush1.msra.mxu0 0.0
        %1332 = vmatprep.subr.mxu0 0.0
        %1333 = vmatpush1.msra.mxu0 0.0
        %1334 = vmatprep.subr.mxu0 0.0
        %1335 = vmatpush1.msra.mxu0 0.0
        %1336 = vmatprep.subr.mxu0 0.0
        %1337 = vmatpush1.msra.mxu0 0.0
        %1338 = vmatprep.subr.mxu0 0.0
        %1339 = vmatpush1.msra.mxu0 0.0
        %1340 = vmatprep.subr.mxu0 0.0
        %1341 = vmatpush1.msra.mxu0 0.0
        %1342 = vmatprep.subr.mxu0 0.0
        %1343 = vmatpush1.msra.mxu0 0.0
        %1344 = vmatprep.subr.mxu0 0.0
        %1345 = vmatpush1.msra.mxu0 0.0
        %1346 = vmatprep.subr.mxu0 0.0
        %1347 = vmatpush1.msra.mxu0 0.0
        %1348 = vmatprep.subr.mxu0 0.0
        %1349 = vmatpush1.msra.mxu0 0.0
        %1350 = vmatprep.subr.mxu0 0.0
        %1351 = vmatpush1.msra.mxu0 0.0
        %1352 = vmatprep.subr.mxu0 0.0
        %1353 = vmatpush1.msra.mxu0 0.0
        %1354 = vmatprep.subr.mxu0 0.0
        %1355 = vmatpush1.msra.mxu0 0.0
        %1356 = vmatprep.subr.mxu0 0.0
        %1357 = vmatpush1.msra.mxu0 0.0
        %1358 = vmatprep.subr.mxu0 0.0
        %1359 = vmatpush1.msra.mxu0 0.0
        %1360 = vmatprep.subr.mxu0 0.0
        %1361 = vmatpush1.msra.mxu0 0.0
        %1362 = vmatprep.subr.mxu0 0.0
        %1363 = vmatpush1.msra.mxu0 0.0
        %1364 = vmatprep.subr.mxu0 0.0
        %1365 = vmatpush1.msra.mxu0 0.0
        %1366 = vmatprep.subr.mxu0 0.0
        %1367 = vmatpush1.msra.mxu0 0.0
        %1368 = vmatprep.subr.mxu0 0.0
        %1369 = vmatpush1.msra.mxu0 0.0
        %1370 = vmatprep.subr.mxu0 0.0
        %1371 = vmatpush1.msra.mxu0 0.0
        %1372 = vmatprep.subr.mxu0 0.0
        %1373 = vmatpush1.msra.mxu0 0.0
        %1374 = vmatprep.subr.mxu0 0.0
        %1375 = vmatpush1.msra.mxu0 0.0
        %1376 = vmatprep.subr.mxu0 0.0
        %1377 = vmatpush1.msra.mxu0 0.0
        %1378 = vmatprep.mubr.f32.mxu0 0.0
        %1379 = vmatmul.mubr.f32.gmra.mrb[0].mxu0 %v1298
        %v1380 = vpop.f32.mrb[0].mxu0
        %v1381 = vadd.f32 0.0, %v1380
        %v1382 = vpop.f32.mrb[0].mxu0
        %1383 = vmatprep.mubr.f32.mxu0 0.0
        %1384 = vmatmul.mubr.f32.gmra.mrb[0].mxu0 %v1300
        %v1385 = vpop.f32.mrb[0].mxu0
        %v1386 = vadd.f32 0.0, %v1385
        %v1387 = vpop.f32.mrb[0].mxu0
        %1388 = vmatprep.mubr.f32.mxu0 0.0
        %1389 = vmatmul.mubr.f32.gmra.mrb[0].mxu0 %v1302
        %v1390 = vpop.f32.mrb[0].mxu0
        %v1391 = vadd.f32 0.0, %v1390
        %v1392 = vpop.f32.mrb[0].mxu0
        %1393 = vmatprep.mubr.f32.mxu0 0.0
        %1394 = vmatmul.mubr.f32.gmra.mrb[0].mxu0 %v1304
        %v1395 = vpop.f32.mrb[0].mxu0
        %v1396 = vadd.f32 0.0, %v1395
        %v1397 = vpop.f32.mrb[0].mxu0
        %1398 = vmatprep.mubr.f32.mxu0 0.0
        %1399 = vmatmul.mubr.f32.gmra.mrb[0].mxu0 %v1306
        %v1400 = vpop.f32.mrb[0].mxu0
        %v1401 = vadd.f32 0.0, %v1400
        %v1402 = vpop.f32.mrb[0].mxu0
        %1403 = vmatprep.mubr.f32.mxu0 0.0
        %1404 = vmatmul.mubr.f32.gmra.mrb[0].mxu0 %v1308
        %v1405 = vpop.f32.mrb[0].mxu0
        %v1406 = vadd.f32 0.0, %v1405
        %v1407 = vpop.f32.mrb[0].mxu0
        %1408 = vmatprep.mubr.f32.mxu0 0.0
        %1409 = vmatmul.mubr.f32.gmra.mrb[0].mxu0 %v1310
        %v1410 = vpop.f32.mrb[0].mxu0
        %v1411 = vadd.f32 0.0, %v1410
        %v1412 = vpop.f32.mrb[0].mxu0
        %1413 = vmatprep.mubr.f32.mxu0 0.0
        %1414 = vmatmul.mubr.f32.gmra.mrb[0].mxu0 %v1312
        %v1415 = vpop.f32.mrb[0].mxu0
        %v1416 = vadd.f32 0.0, %v1415
        %v1417 = vpop.f32.mrb[0].mxu0
        %1418 = vdwg.mxu0
        %1427 = vrot.lane.b32.xlu0 %v616, 64
        %v1428 = vpop.permute.xlu0 %1427
        %1429 = vrot.lane.b32.xlu0 %v622, 64
        %v1430 = vpop.permute.xlu0 %1429
        %1431 = vrot.lane.b32.xlu0 %v628, 64
        %v1432 = vpop.permute.xlu0 %1431
        %1433 = vrot.lane.b32.xlu0 %v634, 64
        %v1434 = vpop.permute.xlu0 %1433
        %1435 = vrot.lane.b32.xlu0 %v640, 64
        %v1436 = vpop.permute.xlu0 %1435
        %1437 = vrot.lane.b32.xlu0 %v646, 64
        %v1438 = vpop.permute.xlu0 %1437
        %1439 = vrot.lane.b32.xlu0 %v652, 64
        %v1440 = vpop.permute.xlu0 %1439
        %1441 = vrot.lane.b32.xlu0 %v658, 64
        %v1442 = vpop.permute.xlu0 %1441
        %v1451 = vsel %vm838, %v616, 0
        %v1453 = vsel %vm838, %v622, 0
        %v1455 = vsel %vm838, %v628, 0
        %v1457 = vsel %vm838, %v634, 0
        %v1459 = vsel %vm838, %v640, 0
        %v1461 = vsel %vm838, %v646, 0
        %v1463 = vsel %vm838, %v652, 0
        %v1465 = vsel %vm838, %v658, 0
        %1467 = vmatprep.subr.mxu0 0.0
        %1468 = vmatpush1.msra.mxu0 %v1428
        %1469 = vmatprep.subr.mxu0 0.0
        %1470 = vmatpush1.msra.mxu0 %v1430
        %1471 = vmatprep.subr.mxu0 0.0
        %1472 = vmatpush1.msra.mxu0 %v1432
        %1473 = vmatprep.subr.mxu0 0.0
        %1474 = vmatpush1.msra.mxu0 %v1434
        %1475 = vmatprep.subr.mxu0 0.0
        %1476 = vmatpush1.msra.mxu0 %v1436
        %1477 = vmatprep.subr.mxu0 0.0
        %1478 = vmatpush1.msra.mxu0 %v1438
        %1479 = vmatprep.subr.mxu0 0.0
        %1480 = vmatpush1.msra.mxu0 %v1440
        %1481 = vmatprep.subr.mxu0 0.0
        %1482 = vmatpush1.msra.mxu0 %v1442
        %1483 = vmatprep.subr.mxu0 0.0
        %1484 = vmatpush1.msra.mxu0 0.0
        %1485 = vmatprep.subr.mxu0 0.0
        %1486 = vmatpush1.msra.mxu0 0.0
        %1487 = vmatprep.subr.mxu0 0.0
        %1488 = vmatpush1.msra.mxu0 0.0
        %1489 = vmatprep.subr.mxu0 0.0
        %1490 = vmatpush1.msra.mxu0 0.0
        %1491 = vmatprep.subr.mxu0 0.0
        %1492 = vmatpush1.msra.mxu0 0.0
        %1493 = vmatprep.subr.mxu0 0.0
        %1494 = vmatpush1.msra.mxu0 0.0
        %1495 = vmatprep.subr.mxu0 0.0
        %1496 = vmatpush1.msra.mxu0 0.0
        %1497 = vmatprep.subr.mxu0 0.0
        %1498 = vmatpush1.msra.mxu0 0.0
        %1499 = vmatprep.subr.mxu0 0.0
        %1500 = vmatpush1.msra.mxu0 0.0
        %1501 = vmatprep.subr.mxu0 0.0
        %1502 = vmatpush1.msra.mxu0 0.0
        %1503 = vmatprep.subr.mxu0 0.0
        %1504 = vmatpush1.msra.mxu0 0.0
        %1505 = vmatprep.subr.mxu0 0.0
        %1506 = vmatpush1.msra.mxu0 0.0
        %1507 = vmatprep.subr.mxu0 0.0
        %1508 = vmatpush1.msra.mxu0 0.0
        %1509 = vmatprep.subr.mxu0 0.0
        %1510 = vmatpush1.msra.mxu0 0.0
        %1511 = vmatprep.subr.mxu0 0.0
        %1512 = vmatpush1.msra.mxu0 0.0
        %1513 = vmatprep.subr.mxu0 0.0
        %1514 = vmatpush1.msra.mxu0 0.0
        %1515 = vmatprep.subr.mxu0 0.0
        %1516 = vmatpush1.msra.mxu0 0.0
        %1517 = vmatprep.subr.mxu0 0.0
        %1518 = vmatpush1.msra.mxu0 0.0
        %1519 = vmatprep.subr.mxu0 0.0
        %1520 = vmatpush1.msra.mxu0 0.0
        %1521 = vmatprep.subr.mxu0 0.0
        %1522 = vmatpush1.msra.mxu0 0.0
        %1523 = vmatprep.subr.mxu0 0.0
        %1524 = vmatpush1.msra.mxu0 0.0
        %1525 = vmatprep.subr.mxu0 0.0
        %1526 = vmatpush1.msra.mxu0 0.0
        %1527 = vmatprep.subr.mxu0 0.0
        %1528 = vmatpush1.msra.mxu0 0.0
        %1529 = vmatprep.subr.mxu0 0.0
        %1530 = vmatpush1.msra.mxu0 0.0
        %1531 = vmatprep.mubr.f32.mxu0 0.0
        %1532 = vmatmul.mubr.f32.gmra.mrb[0].mxu0 %v1451
        %v1533 = vpop.f32.mrb[0].mxu0
        %v1534 = vadd.f32 0.0, %v1533
        %v1535 = vpop.f32.mrb[0].mxu0
        %1536 = vmatprep.mubr.f32.mxu0 0.0
        %1537 = vmatmul.mubr.f32.gmra.mrb[0].mxu0 %v1453
        %v1538 = vpop.f32.mrb[0].mxu0
        %v1539 = vadd.f32 0.0, %v1538
        %v1540 = vpop.f32.mrb[0].mxu0
        %1541 = vmatprep.mubr.f32.mxu0 0.0
        %1542 = vmatmul.mubr.f32.gmra.mrb[0].mxu0 %v1455
        %v1543 = vpop.f32.mrb[0].mxu0
        %v1544 = vadd.f32 0.0, %v1543
        %v1545 = vpop.f32.mrb[0].mxu0
        %1546 = vmatprep.mubr.f32.mxu0 0.0
        %1547 = vmatmul.mubr.f32.gmra.mrb[0].mxu0 %v1457
        %v1548 = vpop.f32.mrb[0].mxu0
        %v1549 = vadd.f32 0.0, %v1548
        %v1550 = vpop.f32.mrb[0].mxu0
        %1551 = vmatprep.mubr.f32.mxu0 0.0
        %1552 = vmatmul.mubr.f32.gmra.mrb[0].mxu0 %v1459
        %v1553 = vpop.f32.mrb[0].mxu0
        %v1554 = vadd.f32 0.0, %v1553
        %v1555 = vpop.f32.mrb[0].mxu0
        %1556 = vmatprep.mubr.f32.mxu0 0.0
        %1557 = vmatmul.mubr.f32.gmra.mrb[0].mxu0 %v1461
        %v1558 = vpop.f32.mrb[0].mxu0
        %v1559 = vadd.f32 0.0, %v1558
        %v1560 = vpop.f32.mrb[0].mxu0
        %1561 = vmatprep.mubr.f32.mxu0 0.0
        %1562 = vmatmul.mubr.f32.gmra.mrb[0].mxu0 %v1463
        %v1563 = vpop.f32.mrb[0].mxu0
        %v1564 = vadd.f32 0.0, %v1563
        %v1565 = vpop.f32.mrb[0].mxu0
        %1566 = vmatprep.mubr.f32.mxu0 0.0
        %1567 = vmatmul.mubr.f32.gmra.mrb[0].mxu0 %v1465
        %v1568 = vpop.f32.mrb[0].mxu0
        %v1569 = vadd.f32 0.0, %v1568
        %v1570 = vpop.f32.mrb[0].mxu0
        %1571 = vdwg.mxu0
        %1580 = vrot.lane.b32.xlu0 %v664, 64
        %v1581 = vpop.permute.xlu0 %1580
        %1582 = vrot.lane.b32.xlu0 %v670, 64
        %v1583 = vpop.permute.xlu0 %1582
        %1584 = vrot.lane.b32.xlu0 %v676, 64
        %v1585 = vpop.permute.xlu0 %1584
        %1586 = vrot.lane.b32.xlu0 %v682, 64
        %v1587 = vpop.permute.xlu0 %1586
        %1588 = vrot.lane.b32.xlu0 %v688, 64
        %v1589 = vpop.permute.xlu0 %1588
        %1590 = vrot.lane.b32.xlu0 %v694, 64
        %v1591 = vpop.permute.xlu0 %1590
        %1592 = vrot.lane.b32.xlu0 %v700, 64
        %v1593 = vpop.permute.xlu0 %1592
        %1594 = vrot.lane.b32.xlu0 %v706, 64
        %v1595 = vpop.permute.xlu0 %1594
        %v1604 = vsel %vm838, %v664, 0
        %v1606 = vsel %vm838, %v670, 0
        %v1608 = vsel %vm838, %v676, 0
        %v1610 = vsel %vm838, %v682, 0
        %v1612 = vsel %vm838, %v688, 0
        %v1614 = vsel %vm838, %v694, 0
        %v1616 = vsel %vm838, %v700, 0
        %v1618 = vsel %vm838, %v706, 0
        %1620 = vmatprep.subr.mxu0 0.0
        %1621 = vmatpush1.msra.mxu0 %v1581
        %1622 = vmatprep.subr.mxu0 0.0
        %1623 = vmatpush1.msra.mxu0 %v1583
        %1624 = vmatprep.subr.mxu0 0.0
        %1625 = vmatpush1.msra.mxu0 %v1585
        %1626 = vmatprep.subr.mxu0 0.0
        %1627 = vmatpush1.msra.mxu0 %v1587
        %1628 = vmatprep.subr.mxu0 0.0
        %1629 = vmatpush1.msra.mxu0 %v1589
        %1630 = vmatprep.subr.mxu0 0.0
        %1631 = vmatpush1.msra.mxu0 %v1591
        %1632 = vmatprep.subr.mxu0 0.0
        %1633 = vmatpush1.msra.mxu0 %v1593
        %1634 = vmatprep.subr.mxu0 0.0
        %1635 = vmatpush1.msra.mxu0 %v1595
        %1636 = vmatprep.subr.mxu0 0.0
        %1637 = vmatpush1.msra.mxu0 0.0
        %1638 = vmatprep.subr.mxu0 0.0
        %1639 = vmatpush1.msra.mxu0 0.0
        %1640 = vmatprep.subr.mxu0 0.0
        %1641 = vmatpush1.msra.mxu0 0.0
        %1642 = vmatprep.subr.mxu0 0.0
        %1643 = vmatpush1.msra.mxu0 0.0
        %1644 = vmatprep.subr.mxu0 0.0
        %1645 = vmatpush1.msra.mxu0 0.0
        %1646 = vmatprep.subr.mxu0 0.0
        %1647 = vmatpush1.msra.mxu0 0.0
        %1648 = vmatprep.subr.mxu0 0.0
        %1649 = vmatpush1.msra.mxu0 0.0
        %1650 = vmatprep.subr.mxu0 0.0
        %1651 = vmatpush1.msra.mxu0 0.0
        %1652 = vmatprep.subr.mxu0 0.0
        %1653 = vmatpush1.msra.mxu0 0.0
        %1654 = vmatprep.subr.mxu0 0.0
        %1655 = vmatpush1.msra.mxu0 0.0
        %1656 = vmatprep.subr.mxu0 0.0
        %1657 = vmatpush1.msra.mxu0 0.0
        %1658 = vmatprep.subr.mxu0 0.0
        %1659 = vmatpush1.msra.mxu0 0.0
        %1660 = vmatprep.subr.mxu0 0.0
        %1661 = vmatpush1.msra.mxu0 0.0
        %1662 = vmatprep.subr.mxu0 0.0
        %1663 = vmatpush1.msra.mxu0 0.0
        %1664 = vmatprep.subr.mxu0 0.0
        %1665 = vmatpush1.msra.mxu0 0.0
        %1666 = vmatprep.subr.mxu0 0.0
        %1667 = vmatpush1.msra.mxu0 0.0
        %1668 = vmatprep.subr.mxu0 0.0
        %1669 = vmatpush1.msra.mxu0 0.0
        %1670 = vmatprep.subr.mxu0 0.0
        %1671 = vmatpush1.msra.mxu0 0.0
        %1672 = vmatprep.subr.mxu0 0.0
        %1673 = vmatpush1.msra.mxu0 0.0
        %1674 = vmatprep.subr.mxu0 0.0
        %1675 = vmatpush1.msra.mxu0 0.0
        %1676 = vmatprep.subr.mxu0 0.0
        %1677 = vmatpush1.msra.mxu0 0.0
        %1678 = vmatprep.subr.mxu0 0.0
        %1679 = vmatpush1.msra.mxu0 0.0
        %1680 = vmatprep.subr.mxu0 0.0
        %1681 = vmatpush1.msra.mxu0 0.0
        %1682 = vmatprep.subr.mxu0 0.0
        %1683 = vmatpush1.msra.mxu0 0.0
        %1684 = vmatprep.mubr.f32.mxu0 0.0
        %1685 = vmatmul.mubr.f32.gmra.mrb[0].mxu0 %v1604
        %v1686 = vpop.f32.mrb[0].mxu0
        %v1687 = vadd.f32 0.0, %v1686
        %v1688 = vpop.f32.mrb[0].mxu0
        %1689 = vmatprep.mubr.f32.mxu0 0.0
        %1690 = vmatmul.mubr.f32.gmra.mrb[0].mxu0 %v1606
        %v1691 = vpop.f32.mrb[0].mxu0
        %v1692 = vadd.f32 0.0, %v1691
        %v1693 = vpop.f32.mrb[0].mxu0
        %1694 = vmatprep.mubr.f32.mxu0 0.0
        %1695 = vmatmul.mubr.f32.gmra.mrb[0].mxu0 %v1608
        %v1696 = vpop.f32.mrb[0].mxu0
        %v1697 = vadd.f32 0.0, %v1696
        %v1698 = vpop.f32.mrb[0].mxu0
        %1699 = vmatprep.mubr.f32.mxu0 0.0
        %1700 = vmatmul.mubr.f32.gmra.mrb[0].mxu0 %v1610
        %v1701 = vpop.f32.mrb[0].mxu0
        %v1702 = vadd.f32 0.0, %v1701
        %v1703 = vpop.f32.mrb[0].mxu0
        %1704 = vmatprep.mubr.f32.mxu0 0.0
        %1705 = vmatmul.mubr.f32.gmra.mrb[0].mxu0 %v1612
        %v1706 = vpop.f32.mrb[0].mxu0
        %v1707 = vadd.f32 0.0, %v1706
        %v1708 = vpop.f32.mrb[0].mxu0
        %1709 = vmatprep.mubr.f32.mxu0 0.0
        %1710 = vmatmul.mubr.f32.gmra.mrb[0].mxu0 %v1614
        %v1711 = vpop.f32.mrb[0].mxu0
        %v1712 = vadd.f32 0.0, %v1711
        %v1713 = vpop.f32.mrb[0].mxu0
        %1714 = vmatprep.mubr.f32.mxu0 0.0
        %1715 = vmatmul.mubr.f32.gmra.mrb[0].mxu0 %v1616
        %v1716 = vpop.f32.mrb[0].mxu0
        %v1717 = vadd.f32 0.0, %v1716
        %v1718 = vpop.f32.mrb[0].mxu0
        %1719 = vmatprep.mubr.f32.mxu0 0.0
        %1720 = vmatmul.mubr.f32.gmra.mrb[0].mxu0 %v1618
        %v1721 = vpop.f32.mrb[0].mxu0
        %v1722 = vadd.f32 0.0, %v1721
        %v1723 = vpop.f32.mrb[0].mxu0
        %1724 = vdwg.mxu0
        %1733 = vrot.lane.b32.xlu0 %v712, 64
        %v1734 = vpop.permute.xlu0 %1733
        %1735 = vrot.lane.b32.xlu0 %v718, 64
        %v1736 = vpop.permute.xlu0 %1735
        %1737 = vrot.lane.b32.xlu0 %v724, 64
        %v1738 = vpop.permute.xlu0 %1737
        %1739 = vrot.lane.b32.xlu0 %v730, 64
        %v1740 = vpop.permute.xlu0 %1739
        %1741 = vrot.lane.b32.xlu0 %v736, 64
        %v1742 = vpop.permute.xlu0 %1741
        %1743 = vrot.lane.b32.xlu0 %v742, 64
        %v1744 = vpop.permute.xlu0 %1743
        %1745 = vrot.lane.b32.xlu0 %v748, 64
        %v1746 = vpop.permute.xlu0 %1745
        %1747 = vrot.lane.b32.xlu0 %v754, 64
        %v1748 = vpop.permute.xlu0 %1747
        %v1757 = vsel %vm838, %v712, 0
        %v1759 = vsel %vm838, %v718, 0
        %v1761 = vsel %vm838, %v724, 0
        %v1763 = vsel %vm838, %v730, 0
        %v1765 = vsel %vm838, %v736, 0
        %v1767 = vsel %vm838, %v742, 0
        %v1769 = vsel %vm838, %v748, 0
        %v1771 = vsel %vm838, %v754, 0
        %1773 = vmatprep.subr.mxu0 0.0
        %1774 = vmatpush1.msra.mxu0 %v1734
        %1775 = vmatprep.subr.mxu0 0.0
        %1776 = vmatpush1.msra.mxu0 %v1736
        %1777 = vmatprep.subr.mxu0 0.0
        %1778 = vmatpush1.msra.mxu0 %v1738
        %1779 = vmatprep.subr.mxu0 0.0
        %1780 = vmatpush1.msra.mxu0 %v1740
        %1781 = vmatprep.subr.mxu0 0.0
        %1782 = vmatpush1.msra.mxu0 %v1742
        %1783 = vmatprep.subr.mxu0 0.0
        %1784 = vmatpush1.msra.mxu0 %v1744
        %1785 = vmatprep.subr.mxu0 0.0
        %1786 = vmatpush1.msra.mxu0 %v1746
        %1787 = vmatprep.subr.mxu0 0.0
        %1788 = vmatpush1.msra.mxu0 %v1748
        %1789 = vmatprep.subr.mxu0 0.0
        %1790 = vmatpush1.msra.mxu0 0.0
        %1791 = vmatprep.subr.mxu0 0.0
        %1792 = vmatpush1.msra.mxu0 0.0
        %1793 = vmatprep.subr.mxu0 0.0
        %1794 = vmatpush1.msra.mxu0 0.0
        %1795 = vmatprep.subr.mxu0 0.0
        %1796 = vmatpush1.msra.mxu0 0.0
        %1797 = vmatprep.subr.mxu0 0.0
        %1798 = vmatpush1.msra.mxu0 0.0
        %1799 = vmatprep.subr.mxu0 0.0
        %1800 = vmatpush1.msra.mxu0 0.0
        %1801 = vmatprep.subr.mxu0 0.0
        %1802 = vmatpush1.msra.mxu0 0.0
        %1803 = vmatprep.subr.mxu0 0.0
        %1804 = vmatpush1.msra.mxu0 0.0
        %1805 = vmatprep.subr.mxu0 0.0
        %1806 = vmatpush1.msra.mxu0 0.0
        %1807 = vmatprep.subr.mxu0 0.0
        %1808 = vmatpush1.msra.mxu0 0.0
        %1809 = vmatprep.subr.mxu0 0.0
        %1810 = vmatpush1.msra.mxu0 0.0
        %1811 = vmatprep.subr.mxu0 0.0
        %1812 = vmatpush1.msra.mxu0 0.0
        %1813 = vmatprep.subr.mxu0 0.0
        %1814 = vmatpush1.msra.mxu0 0.0
        %1815 = vmatprep.subr.mxu0 0.0
        %1816 = vmatpush1.msra.mxu0 0.0
        %1817 = vmatprep.subr.mxu0 0.0
        %1818 = vmatpush1.msra.mxu0 0.0
        %1819 = vmatprep.subr.mxu0 0.0
        %1820 = vmatpush1.msra.mxu0 0.0
        %1821 = vmatprep.subr.mxu0 0.0
        %1822 = vmatpush1.msra.mxu0 0.0
        %1823 = vmatprep.subr.mxu0 0.0
        %1824 = vmatpush1.msra.mxu0 0.0
        %1825 = vmatprep.subr.mxu0 0.0
        %1826 = vmatpush1.msra.mxu0 0.0
        %1827 = vmatprep.subr.mxu0 0.0
        %1828 = vmatpush1.msra.mxu0 0.0
        %1829 = vmatprep.subr.mxu0 0.0
        %1830 = vmatpush1.msra.mxu0 0.0
        %1831 = vmatprep.subr.mxu0 0.0
        %1832 = vmatpush1.msra.mxu0 0.0
        %1833 = vmatprep.subr.mxu0 0.0
        %1834 = vmatpush1.msra.mxu0 0.0
        %1835 = vmatprep.subr.mxu0 0.0
        %1836 = vmatpush1.msra.mxu0 0.0
        %1837 = vmatprep.mubr.f32.mxu0 0.0
        %1838 = vmatmul.mubr.f32.gmra.mrb[0].mxu0 %v1757
        %v1839 = vpop.f32.mrb[0].mxu0
        %v1840 = vadd.f32 0.0, %v1839
        %v1841 = vpop.f32.mrb[0].mxu0
        %1842 = vmatprep.mubr.f32.mxu0 0.0
        %1843 = vmatmul.mubr.f32.gmra.mrb[0].mxu0 %v1759
        %v1844 = vpop.f32.mrb[0].mxu0
        %v1845 = vadd.f32 0.0, %v1844
        %v1846 = vpop.f32.mrb[0].mxu0
        %1847 = vmatprep.mubr.f32.mxu0 0.0
        %1848 = vmatmul.mubr.f32.gmra.mrb[0].mxu0 %v1761
        %v1849 = vpop.f32.mrb[0].mxu0
        %v1850 = vadd.f32 0.0, %v1849
        %v1851 = vpop.f32.mrb[0].mxu0
        %1852 = vmatprep.mubr.f32.mxu0 0.0
        %1853 = vmatmul.mubr.f32.gmra.mrb[0].mxu0 %v1763
        %v1854 = vpop.f32.mrb[0].mxu0
        %v1855 = vadd.f32 0.0, %v1854
        %v1856 = vpop.f32.mrb[0].mxu0
        %1857 = vmatprep.mubr.f32.mxu0 0.0
        %1858 = vmatmul.mubr.f32.gmra.mrb[0].mxu0 %v1765
        %v1859 = vpop.f32.mrb[0].mxu0
        %v1860 = vadd.f32 0.0, %v1859
        %v1861 = vpop.f32.mrb[0].mxu0
        %1862 = vmatprep.mubr.f32.mxu0 0.0
        %1863 = vmatmul.mubr.f32.gmra.mrb[0].mxu0 %v1767
        %v1864 = vpop.f32.mrb[0].mxu0
        %v1865 = vadd.f32 0.0, %v1864
        %v1866 = vpop.f32.mrb[0].mxu0
        %1867 = vmatprep.mubr.f32.mxu0 0.0
        %1868 = vmatmul.mubr.f32.gmra.mrb[0].mxu0 %v1769
        %v1869 = vpop.f32.mrb[0].mxu0
        %v1870 = vadd.f32 0.0, %v1869
        %v1871 = vpop.f32.mrb[0].mxu0
        %1872 = vmatprep.mubr.f32.mxu0 0.0
        %1873 = vmatmul.mubr.f32.gmra.mrb[0].mxu0 %v1771
        %v1874 = vpop.f32.mrb[0].mxu0
        %v1875 = vadd.f32 0.0, %v1874
        %v1876 = vpop.f32.mrb[0].mxu0
        %1877 = vdwg.mxu0
        %1886 = vrot.lane.b32.xlu0 %v760, 64
        %v1887 = vpop.permute.xlu0 %1886
        %1888 = vrot.lane.b32.xlu0 %v766, 64
        %v1889 = vpop.permute.xlu0 %1888
        %1890 = vrot.lane.b32.xlu0 %v772, 64
        %v1891 = vpop.permute.xlu0 %1890
        %1892 = vrot.lane.b32.xlu0 %v778, 64
        %v1893 = vpop.permute.xlu0 %1892
        %1894 = vrot.lane.b32.xlu0 %v784, 64
        %v1895 = vpop.permute.xlu0 %1894
        %1896 = vrot.lane.b32.xlu0 %v790, 64
        %v1897 = vpop.permute.xlu0 %1896
        %1898 = vrot.lane.b32.xlu0 %v796, 64
        %v1899 = vpop.permute.xlu0 %1898
        %1900 = vrot.lane.b32.xlu0 %v802, 64
        %v1901 = vpop.permute.xlu0 %1900
        %v1910 = vsel %vm838, %v760, 0
        %v1912 = vsel %vm838, %v766, 0
        %v1914 = vsel %vm838, %v772, 0
        %v1916 = vsel %vm838, %v778, 0
        %v1918 = vsel %vm838, %v784, 0
        %v1920 = vsel %vm838, %v790, 0
        %v1922 = vsel %vm838, %v796, 0
        %v1924 = vsel %vm838, %v802, 0
        %1926 = vmatprep.subr.mxu0 0.0
        %1927 = vmatpush1.msra.mxu0 %v1887
        %1928 = vmatprep.subr.mxu0 0.0
        %1929 = vmatpush1.msra.mxu0 %v1889
        %1930 = vmatprep.subr.mxu0 0.0
        %1931 = vmatpush1.msra.mxu0 %v1891
        %1932 = vmatprep.subr.mxu0 0.0
        %1933 = vmatpush1.msra.mxu0 %v1893
        %1934 = vmatprep.subr.mxu0 0.0
        %1935 = vmatpush1.msra.mxu0 %v1895
        %1936 = vmatprep.subr.mxu0 0.0
        %1937 = vmatpush1.msra.mxu0 %v1897
        %1938 = vmatprep.subr.mxu0 0.0
        %1939 = vmatpush1.msra.mxu0 %v1899
        %1940 = vmatprep.subr.mxu0 0.0
        %1941 = vmatpush1.msra.mxu0 %v1901
        %1942 = vmatprep.subr.mxu0 0.0
        %1943 = vmatpush1.msra.mxu0 0.0
        %1944 = vmatprep.subr.mxu0 0.0
        %1945 = vmatpush1.msra.mxu0 0.0
        %1946 = vmatprep.subr.mxu0 0.0
        %1947 = vmatpush1.msra.mxu0 0.0
        %1948 = vmatprep.subr.mxu0 0.0
        %1949 = vmatpush1.msra.mxu0 0.0
        %1950 = vmatprep.subr.mxu0 0.0
        %1951 = vmatpush1.msra.mxu0 0.0
        %1952 = vmatprep.subr.mxu0 0.0
        %1953 = vmatpush1.msra.mxu0 0.0
        %1954 = vmatprep.subr.mxu0 0.0
        %1955 = vmatpush1.msra.mxu0 0.0
        %1956 = vmatprep.subr.mxu0 0.0
        %1957 = vmatpush1.msra.mxu0 0.0
        %1958 = vmatprep.subr.mxu0 0.0
        %1959 = vmatpush1.msra.mxu0 0.0
        %1960 = vmatprep.subr.mxu0 0.0
        %1961 = vmatpush1.msra.mxu0 0.0
        %1962 = vmatprep.subr.mxu0 0.0
        %1963 = vmatpush1.msra.mxu0 0.0
        %1964 = vmatprep.subr.mxu0 0.0
        %1965 = vmatpush1.msra.mxu0 0.0
        %1966 = vmatprep.subr.mxu0 0.0
        %1967 = vmatpush1.msra.mxu0 0.0
        %1968 = vmatprep.subr.mxu0 0.0
        %1969 = vmatpush1.msra.mxu0 0.0
        %1970 = vmatprep.subr.mxu0 0.0
        %1971 = vmatpush1.msra.mxu0 0.0
        %1972 = vmatprep.subr.mxu0 0.0
        %1973 = vmatpush1.msra.mxu0 0.0
        %1974 = vmatprep.subr.mxu0 0.0
        %1975 = vmatpush1.msra.mxu0 0.0
        %1976 = vmatprep.subr.mxu0 0.0
        %1977 = vmatpush1.msra.mxu0 0.0
        %1978 = vmatprep.subr.mxu0 0.0
        %1979 = vmatpush1.msra.mxu0 0.0
        %1980 = vmatprep.subr.mxu0 0.0
        %1981 = vmatpush1.msra.mxu0 0.0
        %1982 = vmatprep.subr.mxu0 0.0
        %1983 = vmatpush1.msra.mxu0 0.0
        %1984 = vmatprep.subr.mxu0 0.0
        %1985 = vmatpush1.msra.mxu0 0.0
        %1986 = vmatprep.subr.mxu0 0.0
        %1987 = vmatpush1.msra.mxu0 0.0
        %1988 = vmatprep.subr.mxu0 0.0
        %1989 = vmatpush1.msra.mxu0 0.0
        %1990 = vmatprep.mubr.f32.mxu0 0.0
        %1991 = vmatmul.mubr.f32.gmra.mrb[0].mxu0 %v1910
        %v1992 = vpop.f32.mrb[0].mxu0
        %v1993 = vadd.f32 0.0, %v1992
        %v1994 = vpop.f32.mrb[0].mxu0
        %1995 = vmatprep.mubr.f32.mxu0 0.0
        %1996 = vmatmul.mubr.f32.gmra.mrb[0].mxu0 %v1912
        %v1997 = vpop.f32.mrb[0].mxu0
        %v1998 = vadd.f32 0.0, %v1997
        %v1999 = vpop.f32.mrb[0].mxu0
        %2000 = vmatprep.mubr.f32.mxu0 0.0
        %2001 = vmatmul.mubr.f32.gmra.mrb[0].mxu0 %v1914
        %v2002 = vpop.f32.mrb[0].mxu0
        %v2003 = vadd.f32 0.0, %v2002
        %v2004 = vpop.f32.mrb[0].mxu0
        %2005 = vmatprep.mubr.f32.mxu0 0.0
        %2006 = vmatmul.mubr.f32.gmra.mrb[0].mxu0 %v1916
        %v2007 = vpop.f32.mrb[0].mxu0
        %v2008 = vadd.f32 0.0, %v2007
        %v2009 = vpop.f32.mrb[0].mxu0
        %2010 = vmatprep.mubr.f32.mxu0 0.0
        %2011 = vmatmul.mubr.f32.gmra.mrb[0].mxu0 %v1918
        %v2012 = vpop.f32.mrb[0].mxu0
        %v2013 = vadd.f32 0.0, %v2012
        %v2014 = vpop.f32.mrb[0].mxu0
        %2015 = vmatprep.mubr.f32.mxu0 0.0
        %2016 = vmatmul.mubr.f32.gmra.mrb[0].mxu0 %v1920
        %v2017 = vpop.f32.mrb[0].mxu0
        %v2018 = vadd.f32 0.0, %v2017
        %v2019 = vpop.f32.mrb[0].mxu0
        %2020 = vmatprep.mubr.f32.mxu0 0.0
        %2021 = vmatmul.mubr.f32.gmra.mrb[0].mxu0 %v1922
        %v2022 = vpop.f32.mrb[0].mxu0
        %v2023 = vadd.f32 0.0, %v2022
        %v2024 = vpop.f32.mrb[0].mxu0
        %2025 = vmatprep.mubr.f32.mxu0 0.0
        %2026 = vmatmul.mubr.f32.gmra.mrb[0].mxu0 %v1924
        %v2027 = vpop.f32.mrb[0].mxu0
        %v2028 = vadd.f32 0.0, %v2027
        %v2029 = vpop.f32.mrb[0].mxu0
        %2030 = vdwg.mxu0
        %v2031 = vsel %vm838, %v922, -inf
        %2032 = vmax.xlane.f32.xlu0 %v2031
        %v2033 = vpop.xlane.xlu0 %2032
        %v2034 = vsel %vm838, %v927, -inf
        %2035 = vmax.xlane.f32.xlu0 %v2034
        %v2036 = vpop.xlane.xlu0 %2035
        %v2037 = vsel %vm838, %v932, -inf
        %2038 = vmax.xlane.f32.xlu0 %v2037
        %v2039 = vpop.xlane.xlu0 %2038
        %v2040 = vsel %vm838, %v937, -inf
        %2041 = vmax.xlane.f32.xlu0 %v2040
        %v2042 = vpop.xlane.xlu0 %2041
        %v2043 = vsel %vm838, %v942, -inf
        %2044 = vmax.xlane.f32.xlu0 %v2043
        %v2045 = vpop.xlane.xlu0 %2044
        %v2046 = vsel %vm838, %v947, -inf
        %2047 = vmax.xlane.f32.xlu0 %v2046
        %v2048 = vpop.xlane.xlu0 %2047
        %v2049 = vsel %vm838, %v952, -inf
        %2050 = vmax.xlane.f32.xlu0 %v2049
        %v2051 = vpop.xlane.xlu0 %2050
        %v2052 = vsel %vm838, %v957, -inf
        %2053 = vmax.xlane.f32.xlu0 %v2052
        %v2054 = vpop.xlane.xlu0 %2053
        %v2055 = vsel %vm838, %v1075, -inf
        %2056 = vmax.xlane.f32.xlu0 %v2055
        %v2057 = vpop.xlane.xlu0 %2056
        %v2058 = vsel %vm838, %v1080, -inf
        %2059 = vmax.xlane.f32.xlu0 %v2058
        %v2060 = vpop.xlane.xlu0 %2059
        %v2061 = vsel %vm838, %v1085, -inf
        %2062 = vmax.xlane.f32.xlu0 %v2061
        %v2063 = vpop.xlane.xlu0 %2062
        %v2064 = vsel %vm838, %v1090, -inf
        %2065 = vmax.xlane.f32.xlu0 %v2064
        %v2066 = vpop.xlane.xlu0 %2065
        %v2067 = vsel %vm838, %v1095, -inf
        %2068 = vmax.xlane.f32.xlu0 %v2067
        %v2069 = vpop.xlane.xlu0 %2068
        %v2070 = vsel %vm838, %v1100, -inf
        %2071 = vmax.xlane.f32.xlu0 %v2070
        %v2072 = vpop.xlane.xlu0 %2071
        %v2073 = vsel %vm838, %v1105, -inf
        %2074 = vmax.xlane.f32.xlu0 %v2073
        %v2075 = vpop.xlane.xlu0 %2074
        %v2076 = vsel %vm838, %v1110, -inf
        %2077 = vmax.xlane.f32.xlu0 %v2076
        %v2078 = vpop.xlane.xlu0 %2077
        %v2079 = vsel %vm838, %v1228, -inf
        %2080 = vmax.xlane.f32.xlu0 %v2079
        %v2081 = vpop.xlane.xlu0 %2080
        %v2082 = vsel %vm838, %v1233, -inf
        %2083 = vmax.xlane.f32.xlu0 %v2082
        %v2084 = vpop.xlane.xlu0 %2083
        %v2085 = vsel %vm838, %v1238, -inf
        %2086 = vmax.xlane.f32.xlu0 %v2085
        %v2087 = vpop.xlane.xlu0 %2086
        %v2088 = vsel %vm838, %v1243, -inf
        %2089 = vmax.xlane.f32.xlu0 %v2088
        %v2090 = vpop.xlane.xlu0 %2089
        %v2091 = vsel %vm838, %v1248, -inf
        %2092 = vmax.xlane.f32.xlu0 %v2091
        %v2093 = vpop.xlane.xlu0 %2092
        %v2094 = vsel %vm838, %v1253, -inf
        %2095 = vmax.xlane.f32.xlu0 %v2094
        %v2096 = vpop.xlane.xlu0 %2095
        %v2097 = vsel %vm838, %v1258, -inf
        %2098 = vmax.xlane.f32.xlu0 %v2097
        %v2099 = vpop.xlane.xlu0 %2098
        %v2100 = vsel %vm838, %v1263, -inf
        %2101 = vmax.xlane.f32.xlu0 %v2100
        %v2102 = vpop.xlane.xlu0 %2101
        %v2103 = vsel %vm838, %v1381, -inf
        %2104 = vmax.xlane.f32.xlu0 %v2103
        %v2105 = vpop.xlane.xlu0 %2104
        %v2106 = vsel %vm838, %v1386, -inf
        %2107 = vmax.xlane.f32.xlu0 %v2106
        %v2108 = vpop.xlane.xlu0 %2107
        %v2109 = vsel %vm838, %v1391, -inf
        %2110 = vmax.xlane.f32.xlu0 %v2109
        %v2111 = vpop.xlane.xlu0 %2110
        %v2112 = vsel %vm838, %v1396, -inf
        %2113 = vmax.xlane.f32.xlu0 %v2112
        %v2114 = vpop.xlane.xlu0 %2113
        %v2115 = vsel %vm838, %v1401, -inf
        %2116 = vmax.xlane.f32.xlu0 %v2115
        %v2117 = vpop.xlane.xlu0 %2116
        %v2118 = vsel %vm838, %v1406, -inf
        %2119 = vmax.xlane.f32.xlu0 %v2118
        %v2120 = vpop.xlane.xlu0 %2119
        %v2121 = vsel %vm838, %v1411, -inf
        %2122 = vmax.xlane.f32.xlu0 %v2121
        %v2123 = vpop.xlane.xlu0 %2122
        %v2124 = vsel %vm838, %v1416, -inf
        %2125 = vmax.xlane.f32.xlu0 %v2124
        %v2126 = vpop.xlane.xlu0 %2125
        %v2127 = vsel %vm838, %v1534, -inf
        %2128 = vmax.xlane.f32.xlu0 %v2127
        %v2129 = vpop.xlane.xlu0 %2128
        %v2130 = vsel %vm838, %v1539, -inf
        %2131 = vmax.xlane.f32.xlu0 %v2130
        %v2132 = vpop.xlane.xlu0 %2131
        %v2133 = vsel %vm838, %v1544, -inf
        %2134 = vmax.xlane.f32.xlu0 %v2133
        %v2135 = vpop.xlane.xlu0 %2134
        %v2136 = vsel %vm838, %v1549, -inf
        %2137 = vmax.xlane.f32.xlu0 %v2136
        %v2138 = vpop.xlane.xlu0 %2137
        %v2139 = vsel %vm838, %v1554, -inf
        %2140 = vmax.xlane.f32.xlu0 %v2139
        %v2141 = vpop.xlane.xlu0 %2140
        %v2142 = vsel %vm838, %v1559, -inf
        %2143 = vmax.xlane.f32.xlu0 %v2142
        %v2144 = vpop.xlane.xlu0 %2143
        %v2145 = vsel %vm838, %v1564, -inf
        %2146 = vmax.xlane.f32.xlu0 %v2145
        %v2147 = vpop.xlane.xlu0 %2146
        %v2148 = vsel %vm838, %v1569, -inf
        %2149 = vmax.xlane.f32.xlu0 %v2148
        %v2150 = vpop.xlane.xlu0 %2149
        %v2151 = vsel %vm838, %v1687, -inf
        %2152 = vmax.xlane.f32.xlu0 %v2151
        %v2153 = vpop.xlane.xlu0 %2152
        %v2154 = vsel %vm838, %v1692, -inf
        %2155 = vmax.xlane.f32.xlu0 %v2154
        %v2156 = vpop.xlane.xlu0 %2155
        %v2157 = vsel %vm838, %v1697, -inf
        %2158 = vmax.xlane.f32.xlu0 %v2157
        %v2159 = vpop.xlane.xlu0 %2158
        %v2160 = vsel %vm838, %v1702, -inf
        %2161 = vmax.xlane.f32.xlu0 %v2160
        %v2162 = vpop.xlane.xlu0 %2161
        %v2163 = vsel %vm838, %v1707, -inf
        %2164 = vmax.xlane.f32.xlu0 %v2163
        %v2165 = vpop.xlane.xlu0 %2164
        %v2166 = vsel %vm838, %v1712, -inf
        %2167 = vmax.xlane.f32.xlu0 %v2166
        %v2168 = vpop.xlane.xlu0 %2167
        %v2169 = vsel %vm838, %v1717, -inf
        %2170 = vmax.xlane.f32.xlu0 %v2169
        %v2171 = vpop.xlane.xlu0 %2170
        %v2172 = vsel %vm838, %v1722, -inf
        %2173 = vmax.xlane.f32.xlu0 %v2172
        %v2174 = vpop.xlane.xlu0 %2173
        %v2175 = vsel %vm838, %v1840, -inf
        %2176 = vmax.xlane.f32.xlu0 %v2175
        %v2177 = vpop.xlane.xlu0 %2176
        %v2178 = vsel %vm838, %v1845, -inf
        %2179 = vmax.xlane.f32.xlu0 %v2178
        %v2180 = vpop.xlane.xlu0 %2179
        %v2181 = vsel %vm838, %v1850, -inf
        %2182 = vmax.xlane.f32.xlu0 %v2181
        %v2183 = vpop.xlane.xlu0 %2182
        %v2184 = vsel %vm838, %v1855, -inf
        %2185 = vmax.xlane.f32.xlu0 %v2184
        %v2186 = vpop.xlane.xlu0 %2185
        %v2187 = vsel %vm838, %v1860, -inf
        %2188 = vmax.xlane.f32.xlu0 %v2187
        %v2189 = vpop.xlane.xlu0 %2188
        %v2190 = vsel %vm838, %v1865, -inf
        %2191 = vmax.xlane.f32.xlu0 %v2190
        %v2192 = vpop.xlane.xlu0 %2191
        %v2193 = vsel %vm838, %v1870, -inf
        %2194 = vmax.xlane.f32.xlu0 %v2193
        %v2195 = vpop.xlane.xlu0 %2194
        %v2196 = vsel %vm838, %v1875, -inf
        %2197 = vmax.xlane.f32.xlu0 %v2196
        %v2198 = vpop.xlane.xlu0 %2197
        %v2199 = vsel %vm838, %v1993, -inf
        %2200 = vmax.xlane.f32.xlu0 %v2199
        %v2201 = vpop.xlane.xlu0 %2200
        %v2202 = vsel %vm838, %v1998, -inf
        %2203 = vmax.xlane.f32.xlu0 %v2202
        %v2204 = vpop.xlane.xlu0 %2203
        %v2205 = vsel %vm838, %v2003, -inf
        %2206 = vmax.xlane.f32.xlu0 %v2205
        %v2207 = vpop.xlane.xlu0 %2206
        %v2208 = vsel %vm838, %v2008, -inf
        %2209 = vmax.xlane.f32.xlu0 %v2208
        %v2210 = vpop.xlane.xlu0 %2209
        %v2211 = vsel %vm838, %v2013, -inf
        %2212 = vmax.xlane.f32.xlu0 %v2211
        %v2213 = vpop.xlane.xlu0 %2212
        %v2214 = vsel %vm838, %v2018, -inf
        %2215 = vmax.xlane.f32.xlu0 %v2214
        %v2216 = vpop.xlane.xlu0 %2215
        %v2217 = vsel %vm838, %v2023, -inf
        %2218 = vmax.xlane.f32.xlu0 %v2217
        %v2219 = vpop.xlane.xlu0 %2218
        %v2220 = vsel %vm838, %v2028, -inf
        %2221 = vmax.xlane.f32.xlu0 %v2220
        %v2222 = vpop.xlane.xlu0 %2221
        %v2223 = vsub.f32 %v922, %v2033
        %v2224 = vsub.f32 %v927, %v2036
        %v2225 = vsub.f32 %v932, %v2039
        %v2226 = vsub.f32 %v937, %v2042
        %v2227 = vsub.f32 %v942, %v2045
        %v2228 = vsub.f32 %v947, %v2048
        %v2229 = vsub.f32 %v952, %v2051
        %v2230 = vsub.f32 %v957, %v2054
        %v2231 = vsub.f32 %v1075, %v2057
        %v2232 = vsub.f32 %v1080, %v2060
        %v2233 = vsub.f32 %v1085, %v2063
        %v2234 = vsub.f32 %v1090, %v2066
        %v2235 = vsub.f32 %v1095, %v2069
        %v2236 = vsub.f32 %v1100, %v2072
        %v2237 = vsub.f32 %v1105, %v2075
        %v2238 = vsub.f32 %v1110, %v2078
        %v2239 = vsub.f32 %v1228, %v2081
        %v2240 = vsub.f32 %v1233, %v2084
        %v2241 = vsub.f32 %v1238, %v2087
        %v2242 = vsub.f32 %v1243, %v2090
        %v2243 = vsub.f32 %v1248, %v2093
        %v2244 = vsub.f32 %v1253, %v2096
        %v2245 = vsub.f32 %v1258, %v2099
        %v2246 = vsub.f32 %v1263, %v2102
        %v2247 = vsub.f32 %v1381, %v2105
        %v2248 = vsub.f32 %v1386, %v2108
        %v2249 = vsub.f32 %v1391, %v2111
        %v2250 = vsub.f32 %v1396, %v2114
        %v2251 = vsub.f32 %v1401, %v2117
        %v2252 = vsub.f32 %v1406, %v2120
        %v2253 = vsub.f32 %v1411, %v2123
        %v2254 = vsub.f32 %v1416, %v2126
        %v2255 = vsub.f32 %v1534, %v2129
        %v2256 = vsub.f32 %v1539, %v2132
        %v2257 = vsub.f32 %v1544, %v2135
        %v2258 = vsub.f32 %v1549, %v2138
        %v2259 = vsub.f32 %v1554, %v2141
        %v2260 = vsub.f32 %v1559, %v2144
        %v2261 = vsub.f32 %v1564, %v2147
        %v2262 = vsub.f32 %v1569, %v2150
        %v2263 = vsub.f32 %v1687, %v2153
        %v2264 = vsub.f32 %v1692, %v2156
        %v2265 = vsub.f32 %v1697, %v2159
        %v2266 = vsub.f32 %v1702, %v2162
        %v2267 = vsub.f32 %v1707, %v2165
        %v2268 = vsub.f32 %v1712, %v2168
        %v2269 = vsub.f32 %v1717, %v2171
        %v2270 = vsub.f32 %v1722, %v2174
        %v2271 = vsub.f32 %v1840, %v2177
        %v2272 = vsub.f32 %v1845, %v2180
        %v2273 = vsub.f32 %v1850, %v2183
        %v2274 = vsub.f32 %v1855, %v2186
        %v2275 = vsub.f32 %v1860, %v2189
        %v2276 = vsub.f32 %v1865, %v2192
        %v2277 = vsub.f32 %v1870, %v2195
        %v2278 = vsub.f32 %v1875, %v2198
        %v2279 = vsub.f32 %v1993, %v2201
        %v2280 = vsub.f32 %v1998, %v2204
        %v2281 = vsub.f32 %v2003, %v2207
        %v2282 = vsub.f32 %v2008, %v2210
        %v2283 = vsub.f32 %v2013, %v2213
        %v2284 = vsub.f32 %v2018, %v2216
        %v2285 = vsub.f32 %v2023, %v2219
        %v2286 = vsub.f32 %v2028, %v2222
        %v2287 = vmul.f32 %v2223, 1.442695
        %v2288 = vpow.pop %v2287
        %v2289 = vmul.f32 %v2224, 1.442695
        %v2290 = vpow.pop %v2289
        %v2291 = vmul.f32 %v2225, 1.442695
        %v2292 = vpow.pop %v2291
        %v2293 = vmul.f32 %v2226, 1.442695
        %v2294 = vpow.pop %v2293
        %v2295 = vmul.f32 %v2227, 1.442695
        %v2296 = vpow.pop %v2295
        %v2297 = vmul.f32 %v2228, 1.442695
        %v2298 = vpow.pop %v2297
        %v2299 = vmul.f32 %v2229, 1.442695
        %v2300 = vpow.pop %v2299
        %v2301 = vmul.f32 %v2230, 1.442695
        %v2302 = vpow.pop %v2301
        %v2303 = vmul.f32 %v2231, 1.442695
        %v2304 = vpow.pop %v2303
        %v2305 = vmul.f32 %v2232, 1.442695
        %v2306 = vpow.pop %v2305
        %v2307 = vmul.f32 %v2233, 1.442695
        %v2308 = vpow.pop %v2307
        %v2309 = vmul.f32 %v2234, 1.442695
        %v2310 = vpow.pop %v2309
        %v2311 = vmul.f32 %v2235, 1.442695
        %v2312 = vpow.pop %v2311
        %v2313 = vmul.f32 %v2236, 1.442695
        %v2314 = vpow.pop %v2313
        %v2315 = vmul.f32 %v2237, 1.442695
        %v2316 = vpow.pop %v2315
        %v2317 = vmul.f32 %v2238, 1.442695
        %v2318 = vpow.pop %v2317
        %v2319 = vmul.f32 %v2239, 1.442695
        %v2320 = vpow.pop %v2319
        %v2321 = vmul.f32 %v2240, 1.442695
        %v2322 = vpow.pop %v2321
        %v2323 = vmul.f32 %v2241, 1.442695
        %v2324 = vpow.pop %v2323
        %v2325 = vmul.f32 %v2242, 1.442695
        %v2326 = vpow.pop %v2325
        %v2327 = vmul.f32 %v2243, 1.442695
        %v2328 = vpow.pop %v2327
        %v2329 = vmul.f32 %v2244, 1.442695
        %v2330 = vpow.pop %v2329
        %v2331 = vmul.f32 %v2245, 1.442695
        %v2332 = vpow.pop %v2331
        %v2333 = vmul.f32 %v2246, 1.442695
        %v2334 = vpow.pop %v2333
        %v2335 = vmul.f32 %v2247, 1.442695
        %v2336 = vpow.pop %v2335
        %v2337 = vmul.f32 %v2248, 1.442695
        %v2338 = vpow.pop %v2337
        %v2339 = vmul.f32 %v2249, 1.442695
        %v2340 = vpow.pop %v2339
        %v2341 = vmul.f32 %v2250, 1.442695
        %v2342 = vpow.pop %v2341
        %v2343 = vmul.f32 %v2251, 1.442695
        %v2344 = vpow.pop %v2343
        %v2345 = vmul.f32 %v2252, 1.442695
        %v2346 = vpow.pop %v2345
        %v2347 = vmul.f32 %v2253, 1.442695
        %v2348 = vpow.pop %v2347
        %v2349 = vmul.f32 %v2254, 1.442695
        %v2350 = vpow.pop %v2349
        %v2351 = vmul.f32 %v2255, 1.442695
        %v2352 = vpow.pop %v2351
        %v2353 = vmul.f32 %v2256, 1.442695
        %v2354 = vpow.pop %v2353
        %v2355 = vmul.f32 %v2257, 1.442695
        %v2356 = vpow.pop %v2355
        %v2357 = vmul.f32 %v2258, 1.442695
        %v2358 = vpow.pop %v2357
        %v2359 = vmul.f32 %v2259, 1.442695
        %v2360 = vpow.pop %v2359
        %v2361 = vmul.f32 %v2260, 1.442695
        %v2362 = vpow.pop %v2361
        %v2363 = vmul.f32 %v2261, 1.442695
        %v2364 = vpow.pop %v2363
        %v2365 = vmul.f32 %v2262, 1.442695
        %v2366 = vpow.pop %v2365
        %v2367 = vmul.f32 %v2263, 1.442695
        %v2368 = vpow.pop %v2367
        %v2369 = vmul.f32 %v2264, 1.442695
        %v2370 = vpow.pop %v2369
        %v2371 = vmul.f32 %v2265, 1.442695
        %v2372 = vpow.pop %v2371
        %v2373 = vmul.f32 %v2266, 1.442695
        %v2374 = vpow.pop %v2373
        %v2375 = vmul.f32 %v2267, 1.442695
        %v2376 = vpow.pop %v2375
        %v2377 = vmul.f32 %v2268, 1.442695
        %v2378 = vpow.pop %v2377
        %v2379 = vmul.f32 %v2269, 1.442695
        %v2380 = vpow.pop %v2379
        %v2381 = vmul.f32 %v2270, 1.442695
        %v2382 = vpow.pop %v2381
        %v2383 = vmul.f32 %v2271, 1.442695
        %v2384 = vpow.pop %v2383
        %v2385 = vmul.f32 %v2272, 1.442695
        %v2386 = vpow.pop %v2385
        %v2387 = vmul.f32 %v2273, 1.442695
        %v2388 = vpow.pop %v2387
        %v2389 = vmul.f32 %v2274, 1.442695
        %v2390 = vpow.pop %v2389
        %v2391 = vmul.f32 %v2275, 1.442695
        %v2392 = vpow.pop %v2391
        %v2393 = vmul.f32 %v2276, 1.442695
        %v2394 = vpow.pop %v2393
        %v2395 = vmul.f32 %v2277, 1.442695
        %v2396 = vpow.pop %v2395
        %v2397 = vmul.f32 %v2278, 1.442695
        %v2398 = vpow.pop %v2397
        %v2399 = vmul.f32 %v2279, 1.442695
        %v2400 = vpow.pop %v2399
        %v2401 = vmul.f32 %v2280, 1.442695
        %v2402 = vpow.pop %v2401
        %v2403 = vmul.f32 %v2281, 1.442695
        %v2404 = vpow.pop %v2403
        %v2405 = vmul.f32 %v2282, 1.442695
        %v2406 = vpow.pop %v2405
        %v2407 = vmul.f32 %v2283, 1.442695
        %v2408 = vpow.pop %v2407
        %v2409 = vmul.f32 %v2284, 1.442695
        %v2410 = vpow.pop %v2409
        %v2411 = vmul.f32 %v2285, 1.442695
        %v2412 = vpow.pop %v2411
        %v2413 = vmul.f32 %v2286, 1.442695
        %v2414 = vpow.pop %v2413
        %v2415 = vsel %vm838, %v2288, 0.0
        %2416 = vadd.xlane.f32.xlu0 %v2415
        %v2417 = vpop.xlane.xlu0 %2416
        %v2418 = vsel %vm838, %v2290, 0.0
        %2419 = vadd.xlane.f32.xlu0 %v2418
        %v2420 = vpop.xlane.xlu0 %2419
        %v2421 = vsel %vm838, %v2292, 0.0
        %2422 = vadd.xlane.f32.xlu0 %v2421
        %v2423 = vpop.xlane.xlu0 %2422
        %v2424 = vsel %vm838, %v2294, 0.0
        %2425 = vadd.xlane.f32.xlu0 %v2424
        %v2426 = vpop.xlane.xlu0 %2425
        %v2427 = vsel %vm838, %v2296, 0.0
        %2428 = vadd.xlane.f32.xlu0 %v2427
        %v2429 = vpop.xlane.xlu0 %2428
        %v2430 = vsel %vm838, %v2298, 0.0
        %2431 = vadd.xlane.f32.xlu0 %v2430
        %v2432 = vpop.xlane.xlu0 %2431
        %v2433 = vsel %vm838, %v2300, 0.0
        %2434 = vadd.xlane.f32.xlu0 %v2433
        %v2435 = vpop.xlane.xlu0 %2434
        %v2436 = vsel %vm838, %v2302, 0.0
        %2437 = vadd.xlane.f32.xlu0 %v2436
        %v2438 = vpop.xlane.xlu0 %2437
        %v2439 = vsel %vm838, %v2304, 0.0
        %2440 = vadd.xlane.f32.xlu0 %v2439
        %v2441 = vpop.xlane.xlu0 %2440
        %v2442 = vsel %vm838, %v2306, 0.0
        %2443 = vadd.xlane.f32.xlu0 %v2442
        %v2444 = vpop.xlane.xlu0 %2443
        %v2445 = vsel %vm838, %v2308, 0.0
        %2446 = vadd.xlane.f32.xlu0 %v2445
        %v2447 = vpop.xlane.xlu0 %2446
        %v2448 = vsel %vm838, %v2310, 0.0
        %2449 = vadd.xlane.f32.xlu0 %v2448
        %v2450 = vpop.xlane.xlu0 %2449
        %v2451 = vsel %vm838, %v2312, 0.0
        %2452 = vadd.xlane.f32.xlu0 %v2451
        %v2453 = vpop.xlane.xlu0 %2452
        %v2454 = vsel %vm838, %v2314, 0.0
        %2455 = vadd.xlane.f32.xlu0 %v2454
        %v2456 = vpop.xlane.xlu0 %2455
        %v2457 = vsel %vm838, %v2316, 0.0
        %2458 = vadd.xlane.f32.xlu0 %v2457
        %v2459 = vpop.xlane.xlu0 %2458
        %v2460 = vsel %vm838, %v2318, 0.0
        %2461 = vadd.xlane.f32.xlu0 %v2460
        %v2462 = vpop.xlane.xlu0 %2461
        %v2463 = vsel %vm838, %v2320, 0.0
        %2464 = vadd.xlane.f32.xlu0 %v2463
        %v2465 = vpop.xlane.xlu0 %2464
        %v2466 = vsel %vm838, %v2322, 0.0
        %2467 = vadd.xlane.f32.xlu0 %v2466
        %v2468 = vpop.xlane.xlu0 %2467
        %v2469 = vsel %vm838, %v2324, 0.0
        %2470 = vadd.xlane.f32.xlu0 %v2469
        %v2471 = vpop.xlane.xlu0 %2470
        %v2472 = vsel %vm838, %v2326, 0.0
        %2473 = vadd.xlane.f32.xlu0 %v2472
        %v2474 = vpop.xlane.xlu0 %2473
        %v2475 = vsel %vm838, %v2328, 0.0
        %2476 = vadd.xlane.f32.xlu0 %v2475
        %v2477 = vpop.xlane.xlu0 %2476
        %v2478 = vsel %vm838, %v2330, 0.0
        %2479 = vadd.xlane.f32.xlu0 %v2478
        %v2480 = vpop.xlane.xlu0 %2479
        %v2481 = vsel %vm838, %v2332, 0.0
        %2482 = vadd.xlane.f32.xlu0 %v2481
        %v2483 = vpop.xlane.xlu0 %2482
        %v2484 = vsel %vm838, %v2334, 0.0
        %2485 = vadd.xlane.f32.xlu0 %v2484
        %v2486 = vpop.xlane.xlu0 %2485
        %v2487 = vsel %vm838, %v2336, 0.0
        %2488 = vadd.xlane.f32.xlu0 %v2487
        %v2489 = vpop.xlane.xlu0 %2488
        %v2490 = vsel %vm838, %v2338, 0.0
        %2491 = vadd.xlane.f32.xlu0 %v2490
        %v2492 = vpop.xlane.xlu0 %2491
        %v2493 = vsel %vm838, %v2340, 0.0
        %2494 = vadd.xlane.f32.xlu0 %v2493
        %v2495 = vpop.xlane.xlu0 %2494
        %v2496 = vsel %vm838, %v2342, 0.0
        %2497 = vadd.xlane.f32.xlu0 %v2496
        %v2498 = vpop.xlane.xlu0 %2497
        %v2499 = vsel %vm838, %v2344, 0.0
        %2500 = vadd.xlane.f32.xlu0 %v2499
        %v2501 = vpop.xlane.xlu0 %2500
        %v2502 = vsel %vm838, %v2346, 0.0
        %2503 = vadd.xlane.f32.xlu0 %v2502
        %v2504 = vpop.xlane.xlu0 %2503
        %v2505 = vsel %vm838, %v2348, 0.0
        %2506 = vadd.xlane.f32.xlu0 %v2505
        %v2507 = vpop.xlane.xlu0 %2506
        %v2508 = vsel %vm838, %v2350, 0.0
        %2509 = vadd.xlane.f32.xlu0 %v2508
        %v2510 = vpop.xlane.xlu0 %2509
        %v2511 = vsel %vm838, %v2352, 0.0
        %2512 = vadd.xlane.f32.xlu0 %v2511
        %v2513 = vpop.xlane.xlu0 %2512
        %v2514 = vsel %vm838, %v2354, 0.0
        %2515 = vadd.xlane.f32.xlu0 %v2514
        %v2516 = vpop.xlane.xlu0 %2515
        %v2517 = vsel %vm838, %v2356, 0.0
        %2518 = vadd.xlane.f32.xlu0 %v2517
        %v2519 = vpop.xlane.xlu0 %2518
        %v2520 = vsel %vm838, %v2358, 0.0
        %2521 = vadd.xlane.f32.xlu0 %v2520
        %v2522 = vpop.xlane.xlu0 %2521
        %v2523 = vsel %vm838, %v2360, 0.0
        %2524 = vadd.xlane.f32.xlu0 %v2523
        %v2525 = vpop.xlane.xlu0 %2524
        %v2526 = vsel %vm838, %v2362, 0.0
        %2527 = vadd.xlane.f32.xlu0 %v2526
        %v2528 = vpop.xlane.xlu0 %2527
        %v2529 = vsel %vm838, %v2364, 0.0
        %2530 = vadd.xlane.f32.xlu0 %v2529
        %v2531 = vpop.xlane.xlu0 %2530
        %v2532 = vsel %vm838, %v2366, 0.0
        %2533 = vadd.xlane.f32.xlu0 %v2532
        %v2534 = vpop.xlane.xlu0 %2533
        %v2535 = vsel %vm838, %v2368, 0.0
        %2536 = vadd.xlane.f32.xlu0 %v2535
        %v2537 = vpop.xlane.xlu0 %2536
        %v2538 = vsel %vm838, %v2370, 0.0
        %2539 = vadd.xlane.f32.xlu0 %v2538
        %v2540 = vpop.xlane.xlu0 %2539
        %v2541 = vsel %vm838, %v2372, 0.0
        %2542 = vadd.xlane.f32.xlu0 %v2541
        %v2543 = vpop.xlane.xlu0 %2542
        %v2544 = vsel %vm838, %v2374, 0.0
        %2545 = vadd.xlane.f32.xlu0 %v2544
        %v2546 = vpop.xlane.xlu0 %2545
        %v2547 = vsel %vm838, %v2376, 0.0
        %2548 = vadd.xlane.f32.xlu0 %v2547
        %v2549 = vpop.xlane.xlu0 %2548
        %v2550 = vsel %vm838, %v2378, 0.0
        %2551 = vadd.xlane.f32.xlu0 %v2550
        %v2552 = vpop.xlane.xlu0 %2551
        %v2553 = vsel %vm838, %v2380, 0.0
        %2554 = vadd.xlane.f32.xlu0 %v2553
        %v2555 = vpop.xlane.xlu0 %2554
        %v2556 = vsel %vm838, %v2382, 0.0
        %2557 = vadd.xlane.f32.xlu0 %v2556
        %v2558 = vpop.xlane.xlu0 %2557
        %v2559 = vsel %vm838, %v2384, 0.0
        %2560 = vadd.xlane.f32.xlu0 %v2559
        %v2561 = vpop.xlane.xlu0 %2560
        %v2562 = vsel %vm838, %v2386, 0.0
        %2563 = vadd.xlane.f32.xlu0 %v2562
        %v2564 = vpop.xlane.xlu0 %2563
        %v2565 = vsel %vm838, %v2388, 0.0
        %2566 = vadd.xlane.f32.xlu0 %v2565
        %v2567 = vpop.xlane.xlu0 %2566
        %v2568 = vsel %vm838, %v2390, 0.0
        %2569 = vadd.xlane.f32.xlu0 %v2568
        %v2570 = vpop.xlane.xlu0 %2569
        %v2571 = vsel %vm838, %v2392, 0.0
        %2572 = vadd.xlane.f32.xlu0 %v2571
        %v2573 = vpop.xlane.xlu0 %2572
        %v2574 = vsel %vm838, %v2394, 0.0
        %2575 = vadd.xlane.f32.xlu0 %v2574
        %v2576 = vpop.xlane.xlu0 %2575
        %v2577 = vsel %vm838, %v2396, 0.0
        %2578 = vadd.xlane.f32.xlu0 %v2577
        %v2579 = vpop.xlane.xlu0 %2578
        %v2580 = vsel %vm838, %v2398, 0.0
        %2581 = vadd.xlane.f32.xlu0 %v2580
        %v2582 = vpop.xlane.xlu0 %2581
        %v2583 = vsel %vm838, %v2400, 0.0
        %2584 = vadd.xlane.f32.xlu0 %v2583
        %v2585 = vpop.xlane.xlu0 %2584
        %v2586 = vsel %vm838, %v2402, 0.0
        %2587 = vadd.xlane.f32.xlu0 %v2586
        %v2588 = vpop.xlane.xlu0 %2587
        %v2589 = vsel %vm838, %v2404, 0.0
        %2590 = vadd.xlane.f32.xlu0 %v2589
        %v2591 = vpop.xlane.xlu0 %2590
        %v2592 = vsel %vm838, %v2406, 0.0
        %2593 = vadd.xlane.f32.xlu0 %v2592
        %v2594 = vpop.xlane.xlu0 %2593
        %v2595 = vsel %vm838, %v2408, 0.0
        %2596 = vadd.xlane.f32.xlu0 %v2595
        %v2597 = vpop.xlane.xlu0 %2596
        %v2598 = vsel %vm838, %v2410, 0.0
        %2599 = vadd.xlane.f32.xlu0 %v2598
        %v2600 = vpop.xlane.xlu0 %2599
        %v2601 = vsel %vm838, %v2412, 0.0
        %2602 = vadd.xlane.f32.xlu0 %v2601
        %v2603 = vpop.xlane.xlu0 %2602
        %v2604 = vsel %vm838, %v2414, 0.0
        %2605 = vadd.xlane.f32.xlu0 %v2604
        %v2606 = vpop.xlane.xlu0 %2605
        %v2607 = vrcp.pop %v2417
        %v2608 = vrcp.pop %v2420
        %v2609 = vrcp.pop %v2423
        %v2610 = vrcp.pop %v2426
        %v2611 = vrcp.pop %v2429
        %v2612 = vrcp.pop %v2432
        %v2613 = vrcp.pop %v2435
        %v2614 = vrcp.pop %v2438
        %v2615 = vrcp.pop %v2441
        %v2616 = vrcp.pop %v2444
        %v2617 = vrcp.pop %v2447
        %v2618 = vrcp.pop %v2450
        %v2619 = vrcp.pop %v2453
        %v2620 = vrcp.pop %v2456
        %v2621 = vrcp.pop %v2459
        %v2622 = vrcp.pop %v2462
        %v2623 = vrcp.pop %v2465
        %v2624 = vrcp.pop %v2468
        %v2625 = vrcp.pop %v2471
        %v2626 = vrcp.pop %v2474
        %v2627 = vrcp.pop %v2477
        %v2628 = vrcp.pop %v2480
        %v2629 = vrcp.pop %v2483
        %v2630 = vrcp.pop %v2486
        %v2631 = vrcp.pop %v2489
        %v2632 = vrcp.pop %v2492
        %v2633 = vrcp.pop %v2495
        %v2634 = vrcp.pop %v2498
        %v2635 = vrcp.pop %v2501
        %v2636 = vrcp.pop %v2504
        %v2637 = vrcp.pop %v2507
        %v2638 = vrcp.pop %v2510
        %v2639 = vrcp.pop %v2513
        %v2640 = vrcp.pop %v2516
        %v2641 = vrcp.pop %v2519
        %v2642 = vrcp.pop %v2522
        %v2643 = vrcp.pop %v2525
        %v2644 = vrcp.pop %v2528
        %v2645 = vrcp.pop %v2531
        %v2646 = vrcp.pop %v2534
        %v2647 = vrcp.pop %v2537
        %v2648 = vrcp.pop %v2540
        %v2649 = vrcp.pop %v2543
        %v2650 = vrcp.pop %v2546
        %v2651 = vrcp.pop %v2549
        %v2652 = vrcp.pop %v2552
        %v2653 = vrcp.pop %v2555
        %v2654 = vrcp.pop %v2558
        %v2655 = vrcp.pop %v2561
        %v2656 = vrcp.pop %v2564
        %v2657 = vrcp.pop %v2567
        %v2658 = vrcp.pop %v2570
        %v2659 = vrcp.pop %v2573
        %v2660 = vrcp.pop %v2576
        %v2661 = vrcp.pop %v2579
        %v2662 = vrcp.pop %v2582
        %v2663 = vrcp.pop %v2585
        %v2664 = vrcp.pop %v2588
        %v2665 = vrcp.pop %v2591
        %v2666 = vrcp.pop %v2594
        %v2667 = vrcp.pop %v2597
        %v2668 = vrcp.pop %v2600
        %v2669 = vrcp.pop %v2603
        %v2670 = vrcp.pop %v2606
        %v2671 = vmul.f32 %v2288, %v2607
        %v2672 = vmul.f32 %v2290, %v2608
        %v2673 = vmul.f32 %v2292, %v2609
        %v2674 = vmul.f32 %v2294, %v2610
        %v2675 = vmul.f32 %v2296, %v2611
        %v2676 = vmul.f32 %v2298, %v2612
        %v2677 = vmul.f32 %v2300, %v2613
        %v2678 = vmul.f32 %v2302, %v2614
        %v2679 = vmul.f32 %v2304, %v2615
        %v2680 = vmul.f32 %v2306, %v2616
        %v2681 = vmul.f32 %v2308, %v2617
        %v2682 = vmul.f32 %v2310, %v2618
        %v2683 = vmul.f32 %v2312, %v2619
        %v2684 = vmul.f32 %v2314, %v2620
        %v2685 = vmul.f32 %v2316, %v2621
        %v2686 = vmul.f32 %v2318, %v2622
        %v2687 = vmul.f32 %v2320, %v2623
        %v2688 = vmul.f32 %v2322, %v2624
        %v2689 = vmul.f32 %v2324, %v2625
        %v2690 = vmul.f32 %v2326, %v2626
        %v2691 = vmul.f32 %v2328, %v2627
        %v2692 = vmul.f32 %v2330, %v2628
        %v2693 = vmul.f32 %v2332, %v2629
        %v2694 = vmul.f32 %v2334, %v2630
        %v2695 = vmul.f32 %v2336, %v2631
        %v2696 = vmul.f32 %v2338, %v2632
        %v2697 = vmul.f32 %v2340, %v2633
        %v2698 = vmul.f32 %v2342, %v2634
        %v2699 = vmul.f32 %v2344, %v2635
        %v2700 = vmul.f32 %v2346, %v2636
        %v2701 = vmul.f32 %v2348, %v2637
        %v2702 = vmul.f32 %v2350, %v2638
        %v2703 = vmul.f32 %v2352, %v2639
        %v2704 = vmul.f32 %v2354, %v2640
        %v2705 = vmul.f32 %v2356, %v2641
        %v2706 = vmul.f32 %v2358, %v2642
        %v2707 = vmul.f32 %v2360, %v2643
        %v2708 = vmul.f32 %v2362, %v2644
        %v2709 = vmul.f32 %v2364, %v2645
        %v2710 = vmul.f32 %v2366, %v2646
        %v2711 = vmul.f32 %v2368, %v2647
        %v2712 = vmul.f32 %v2370, %v2648
        %v2713 = vmul.f32 %v2372, %v2649
        %v2714 = vmul.f32 %v2374, %v2650
        %v2715 = vmul.f32 %v2376, %v2651
        %v2716 = vmul.f32 %v2378, %v2652
        %v2717 = vmul.f32 %v2380, %v2653
        %v2718 = vmul.f32 %v2382, %v2654
        %v2719 = vmul.f32 %v2384, %v2655
        %v2720 = vmul.f32 %v2386, %v2656
        %v2721 = vmul.f32 %v2388, %v2657
        %v2722 = vmul.f32 %v2390, %v2658
        %v2723 = vmul.f32 %v2392, %v2659
        %v2724 = vmul.f32 %v2394, %v2660
        %v2725 = vmul.f32 %v2396, %v2661
        %v2726 = vmul.f32 %v2398, %v2662
        %v2727 = vmul.f32 %v2400, %v2663
        %v2728 = vmul.f32 %v2402, %v2664
        %v2729 = vmul.f32 %v2404, %v2665
        %v2730 = vmul.f32 %v2406, %v2666
        %v2731 = vmul.f32 %v2408, %v2667
        %v2732 = vmul.f32 %v2410, %v2668
        %v2733 = vmul.f32 %v2412, %v2669
        %v2734 = vmul.f32 %v2414, %v2670
        %v2736 = vsel %vm838, %v2671, 0
        %v2739 = vsel %vm838, %v2672, 0
        %v2742 = vsel %vm838, %v2673, 0
        %v2745 = vsel %vm838, %v2674, 0
        %v2748 = vsel %vm838, %v2675, 0
        %v2751 = vsel %vm838, %v2676, 0
        %v2754 = vsel %vm838, %v2677, 0
        %v2757 = vsel %vm838, %v2678, 0
        %2759 = vmatprep.subr.mxu0 0.0
        %2760 = vmatpush1.msra.mxu0 %v426
        %2761 = vmatprep.subr.mxu0 0.0
        %2762 = vmatpush1.msra.mxu0 %v432
        %2763 = vmatprep.subr.mxu0 0.0
        %2764 = vmatpush1.msra.mxu0 %v438
        %2765 = vmatprep.subr.mxu0 0.0
        %2766 = vmatpush1.msra.mxu0 %v444
        %2767 = vmatprep.subr.mxu0 0.0
        %2768 = vmatpush1.msra.mxu0 %v450
        %2769 = vmatprep.subr.mxu0 0.0
        %2770 = vmatpush1.msra.mxu0 %v456
        %2771 = vmatprep.subr.mxu0 0.0
        %2772 = vmatpush1.msra.mxu0 %v462
        %2773 = vmatprep.subr.mxu0 0.0
        %2774 = vmatpush1.msra.mxu0 %v468
        %2775 = vmatprep.subr.mxu0 0.0
        %2776 = vmatpush1.msra.mxu0 0.0
        %2777 = vmatprep.subr.mxu0 0.0
        %2778 = vmatpush1.msra.mxu0 0.0
        %2779 = vmatprep.subr.mxu0 0.0
        %2780 = vmatpush1.msra.mxu0 0.0
        %2781 = vmatprep.subr.mxu0 0.0
        %2782 = vmatpush1.msra.mxu0 0.0
        %2783 = vmatprep.subr.mxu0 0.0
        %2784 = vmatpush1.msra.mxu0 0.0
        %2785 = vmatprep.subr.mxu0 0.0
        %2786 = vmatpush1.msra.mxu0 0.0
        %2787 = vmatprep.subr.mxu0 0.0
        %2788 = vmatpush1.msra.mxu0 0.0
        %2789 = vmatprep.subr.mxu0 0.0
        %2790 = vmatpush1.msra.mxu0 0.0
        %2791 = vmatprep.subr.mxu0 0.0
        %2792 = vmatpush1.msra.mxu0 0.0
        %2793 = vmatprep.subr.mxu0 0.0
        %2794 = vmatpush1.msra.mxu0 0.0
        %2795 = vmatprep.subr.mxu0 0.0
        %2796 = vmatpush1.msra.mxu0 0.0
        %2797 = vmatprep.subr.mxu0 0.0
        %2798 = vmatpush1.msra.mxu0 0.0
        %2799 = vmatprep.subr.mxu0 0.0
        %2800 = vmatpush1.msra.mxu0 0.0
        %2801 = vmatprep.subr.mxu0 0.0
        %2802 = vmatpush1.msra.mxu0 0.0
        %2803 = vmatprep.subr.mxu0 0.0
        %2804 = vmatpush1.msra.mxu0 0.0
        %2805 = vmatprep.subr.mxu0 0.0
        %2806 = vmatpush1.msra.mxu0 0.0
        %2807 = vmatprep.subr.mxu0 0.0
        %2808 = vmatpush1.msra.mxu0 0.0
        %2809 = vmatprep.subr.mxu0 0.0
        %2810 = vmatpush1.msra.mxu0 0.0
        %2811 = vmatprep.subr.mxu0 0.0
        %2812 = vmatpush1.msra.mxu0 0.0
        %2813 = vmatprep.subr.mxu0 0.0
        %2814 = vmatpush1.msra.mxu0 0.0
        %2815 = vmatprep.subr.mxu0 0.0
        %2816 = vmatpush1.msra.mxu0 0.0
        %2817 = vmatprep.subr.mxu0 0.0
        %2818 = vmatpush1.msra.mxu0 0.0
        %2819 = vmatprep.subr.mxu0 0.0
        %2820 = vmatpush1.msra.mxu0 0.0
        %2821 = vmatprep.subr.mxu0 0.0
        %2822 = vmatpush1.msra.mxu0 0.0
        %2823 = vmatprep.mubr.f32.mxu0 0.0
        %2824 = vmatmul.mubr.f32.gmra.mrb[0].mxu0 %v2736
        %v2825 = vpop.f32.mrb[0].mxu0
        %v2826 = vadd.f32 0.0, %v2825
        %v2827 = vpop.f32.mrb[0].mxu0
        %2828 = vmatprep.mubr.f32.mxu0 0.0
        %2829 = vmatmul.mubr.f32.gmra.mrb[0].mxu0 %v2739
        %v2830 = vpop.f32.mrb[0].mxu0
        %v2831 = vadd.f32 0.0, %v2830
        %v2832 = vpop.f32.mrb[0].mxu0
        %2833 = vmatprep.mubr.f32.mxu0 0.0
        %2834 = vmatmul.mubr.f32.gmra.mrb[0].mxu0 %v2742
        %v2835 = vpop.f32.mrb[0].mxu0
        %v2836 = vadd.f32 0.0, %v2835
        %v2837 = vpop.f32.mrb[0].mxu0
        %2838 = vmatprep.mubr.f32.mxu0 0.0
        %2839 = vmatmul.mubr.f32.gmra.mrb[0].mxu0 %v2745
        %v2840 = vpop.f32.mrb[0].mxu0
        %v2841 = vadd.f32 0.0, %v2840
        %v2842 = vpop.f32.mrb[0].mxu0
        %2843 = vmatprep.mubr.f32.mxu0 0.0
        %2844 = vmatmul.mubr.f32.gmra.mrb[0].mxu0 %v2748
        %v2845 = vpop.f32.mrb[0].mxu0
        %v2846 = vadd.f32 0.0, %v2845
        %v2847 = vpop.f32.mrb[0].mxu0
        %2848 = vmatprep.mubr.f32.mxu0 0.0
        %2849 = vmatmul.mubr.f32.gmra.mrb[0].mxu0 %v2751
        %v2850 = vpop.f32.mrb[0].mxu0
        %v2851 = vadd.f32 0.0, %v2850
        %v2852 = vpop.f32.mrb[0].mxu0
        %2853 = vmatprep.mubr.f32.mxu0 0.0
        %2854 = vmatmul.mubr.f32.gmra.mrb[0].mxu0 %v2754
        %v2855 = vpop.f32.mrb[0].mxu0
        %v2856 = vadd.f32 0.0, %v2855
        %v2857 = vpop.f32.mrb[0].mxu0
        %2858 = vmatprep.mubr.f32.mxu0 0.0
        %2859 = vmatmul.mubr.f32.gmra.mrb[0].mxu0 %v2757
        %v2860 = vpop.f32.mrb[0].mxu0
        %v2861 = vadd.f32 0.0, %v2860
        %v2862 = vpop.f32.mrb[0].mxu0
        %2863 = vdwg.mxu0
        %v2865 = vsel %vm838, %v2679, 0
        %v2868 = vsel %vm838, %v2680, 0
        %v2871 = vsel %vm838, %v2681, 0
        %v2874 = vsel %vm838, %v2682, 0
        %v2877 = vsel %vm838, %v2683, 0
        %v2880 = vsel %vm838, %v2684, 0
        %v2883 = vsel %vm838, %v2685, 0
        %v2886 = vsel %vm838, %v2686, 0
        %2888 = vmatprep.subr.mxu0 0.0
        %2889 = vmatpush1.msra.mxu0 %v474
        %2890 = vmatprep.subr.mxu0 0.0
        %2891 = vmatpush1.msra.mxu0 %v480
        %2892 = vmatprep.subr.mxu0 0.0
        %2893 = vmatpush1.msra.mxu0 %v486
        %2894 = vmatprep.subr.mxu0 0.0
        %2895 = vmatpush1.msra.mxu0 %v492
        %2896 = vmatprep.subr.mxu0 0.0
        %2897 = vmatpush1.msra.mxu0 %v498
        %2898 = vmatprep.subr.mxu0 0.0
        %2899 = vmatpush1.msra.mxu0 %v504
        %2900 = vmatprep.subr.mxu0 0.0
        %2901 = vmatpush1.msra.mxu0 %v510
        %2902 = vmatprep.subr.mxu0 0.0
        %2903 = vmatpush1.msra.mxu0 %v516
        %2904 = vmatprep.subr.mxu0 0.0
        %2905 = vmatpush1.msra.mxu0 0.0
        %2906 = vmatprep.subr.mxu0 0.0
        %2907 = vmatpush1.msra.mxu0 0.0
        %2908 = vmatprep.subr.mxu0 0.0
        %2909 = vmatpush1.msra.mxu0 0.0
        %2910 = vmatprep.subr.mxu0 0.0
        %2911 = vmatpush1.msra.mxu0 0.0
        %2912 = vmatprep.subr.mxu0 0.0
        %2913 = vmatpush1.msra.mxu0 0.0
        %2914 = vmatprep.subr.mxu0 0.0
        %2915 = vmatpush1.msra.mxu0 0.0
        %2916 = vmatprep.subr.mxu0 0.0
        %2917 = vmatpush1.msra.mxu0 0.0
        %2918 = vmatprep.subr.mxu0 0.0
        %2919 = vmatpush1.msra.mxu0 0.0
        %2920 = vmatprep.subr.mxu0 0.0
        %2921 = vmatpush1.msra.mxu0 0.0
        %2922 = vmatprep.subr.mxu0 0.0
        %2923 = vmatpush1.msra.mxu0 0.0
        %2924 = vmatprep.subr.mxu0 0.0
        %2925 = vmatpush1.msra.mxu0 0.0
        %2926 = vmatprep.subr.mxu0 0.0
        %2927 = vmatpush1.msra.mxu0 0.0
        %2928 = vmatprep.subr.mxu0 0.0
        %2929 = vmatpush1.msra.mxu0 0.0
        %2930 = vmatprep.subr.mxu0 0.0
        %2931 = vmatpush1.msra.mxu0 0.0
        %2932 = vmatprep.subr.mxu0 0.0
        %2933 = vmatpush1.msra.mxu0 0.0
        %2934 = vmatprep.subr.mxu0 0.0
        %2935 = vmatpush1.msra.mxu0 0.0
        %2936 = vmatprep.subr.mxu0 0.0
        %2937 = vmatpush1.msra.mxu0 0.0
        %2938 = vmatprep.subr.mxu0 0.0
        %2939 = vmatpush1.msra.mxu0 0.0
        %2940 = vmatprep.subr.mxu0 0.0
        %2941 = vmatpush1.msra.mxu0 0.0
        %2942 = vmatprep.subr.mxu0 0.0
        %2943 = vmatpush1.msra.mxu0 0.0
        %2944 = vmatprep.subr.mxu0 0.0
        %2945 = vmatpush1.msra.mxu0 0.0
        %2946 = vmatprep.subr.mxu0 0.0
        %2947 = vmatpush1.msra.mxu0 0.0
        %2948 = vmatprep.subr.mxu0 0.0
        %2949 = vmatpush1.msra.mxu0 0.0
        %2950 = vmatprep.subr.mxu0 0.0
        %2951 = vmatpush1.msra.mxu0 0.0
        %2952 = vmatprep.mubr.f32.mxu0 0.0
        %2953 = vmatmul.mubr.f32.gmra.mrb[0].mxu0 %v2865
        %v2954 = vpop.f32.mrb[0].mxu0
        %v2955 = vadd.f32 0.0, %v2954
        %v2956 = vpop.f32.mrb[0].mxu0
        %2957 = vmatprep.mubr.f32.mxu0 0.0
        %2958 = vmatmul.mubr.f32.gmra.mrb[0].mxu0 %v2868
        %v2959 = vpop.f32.mrb[0].mxu0
        %v2960 = vadd.f32 0.0, %v2959
        %v2961 = vpop.f32.mrb[0].mxu0
        %2962 = vmatprep.mubr.f32.mxu0 0.0
        %2963 = vmatmul.mubr.f32.gmra.mrb[0].mxu0 %v2871
        %v2964 = vpop.f32.mrb[0].mxu0
        %v2965 = vadd.f32 0.0, %v2964
        %v2966 = vpop.f32.mrb[0].mxu0
        %2967 = vmatprep.mubr.f32.mxu0 0.0
        %2968 = vmatmul.mubr.f32.gmra.mrb[0].mxu0 %v2874
        %v2969 = vpop.f32.mrb[0].mxu0
        %v2970 = vadd.f32 0.0, %v2969
        %v2971 = vpop.f32.mrb[0].mxu0
        %2972 = vmatprep.mubr.f32.mxu0 0.0
        %2973 = vmatmul.mubr.f32.gmra.mrb[0].mxu0 %v2877
        %v2974 = vpop.f32.mrb[0].mxu0
        %v2975 = vadd.f32 0.0, %v2974
        %v2976 = vpop.f32.mrb[0].mxu0
        %2977 = vmatprep.mubr.f32.mxu0 0.0
        %2978 = vmatmul.mubr.f32.gmra.mrb[0].mxu0 %v2880
        %v2979 = vpop.f32.mrb[0].mxu0
        %v2980 = vadd.f32 0.0, %v2979
        %v2981 = vpop.f32.mrb[0].mxu0
        %2982 = vmatprep.mubr.f32.mxu0 0.0
        %2983 = vmatmul.mubr.f32.gmra.mrb[0].mxu0 %v2883
        %v2984 = vpop.f32.mrb[0].mxu0
        %v2985 = vadd.f32 0.0, %v2984
        %v2986 = vpop.f32.mrb[0].mxu0
        %2987 = vmatprep.mubr.f32.mxu0 0.0
        %2988 = vmatmul.mubr.f32.gmra.mrb[0].mxu0 %v2886
        %v2989 = vpop.f32.mrb[0].mxu0
        %v2990 = vadd.f32 0.0, %v2989
        %v2991 = vpop.f32.mrb[0].mxu0
        %2992 = vdwg.mxu0
        %v2994 = vsel %vm838, %v2687, 0
        %v2997 = vsel %vm838, %v2688, 0
        %v3000 = vsel %vm838, %v2689, 0
        %v3003 = vsel %vm838, %v2690, 0
        %v3006 = vsel %vm838, %v2691, 0
        %v3009 = vsel %vm838, %v2692, 0
        %v3012 = vsel %vm838, %v2693, 0
        %v3015 = vsel %vm838, %v2694, 0
        %3017 = vmatprep.subr.mxu0 0.0
        %3018 = vmatpush1.msra.mxu0 %v522
        %3019 = vmatprep.subr.mxu0 0.0
        %3020 = vmatpush1.msra.mxu0 %v528
        %3021 = vmatprep.subr.mxu0 0.0
        %3022 = vmatpush1.msra.mxu0 %v534
        %3023 = vmatprep.subr.mxu0 0.0
        %3024 = vmatpush1.msra.mxu0 %v540
        %3025 = vmatprep.subr.mxu0 0.0
        %3026 = vmatpush1.msra.mxu0 %v546
        %3027 = vmatprep.subr.mxu0 0.0
        %3028 = vmatpush1.msra.mxu0 %v552
        %3029 = vmatprep.subr.mxu0 0.0
        %3030 = vmatpush1.msra.mxu0 %v558
        %3031 = vmatprep.subr.mxu0 0.0
        %3032 = vmatpush1.msra.mxu0 %v564
        %3033 = vmatprep.subr.mxu0 0.0
        %3034 = vmatpush1.msra.mxu0 0.0
        %3035 = vmatprep.subr.mxu0 0.0
        %3036 = vmatpush1.msra.mxu0 0.0
        %3037 = vmatprep.subr.mxu0 0.0
        %3038 = vmatpush1.msra.mxu0 0.0
        %3039 = vmatprep.subr.mxu0 0.0
        %3040 = vmatpush1.msra.mxu0 0.0
        %3041 = vmatprep.subr.mxu0 0.0
        %3042 = vmatpush1.msra.mxu0 0.0
        %3043 = vmatprep.subr.mxu0 0.0
        %3044 = vmatpush1.msra.mxu0 0.0
        %3045 = vmatprep.subr.mxu0 0.0
        %3046 = vmatpush1.msra.mxu0 0.0
        %3047 = vmatprep.subr.mxu0 0.0
        %3048 = vmatpush1.msra.mxu0 0.0
        %3049 = vmatprep.subr.mxu0 0.0
        %3050 = vmatpush1.msra.mxu0 0.0
        %3051 = vmatprep.subr.mxu0 0.0
        %3052 = vmatpush1.msra.mxu0 0.0
        %3053 = vmatprep.subr.mxu0 0.0
        %3054 = vmatpush1.msra.mxu0 0.0
        %3055 = vmatprep.subr.mxu0 0.0
        %3056 = vmatpush1.msra.mxu0 0.0
        %3057 = vmatprep.subr.mxu0 0.0
        %3058 = vmatpush1.msra.mxu0 0.0
        %3059 = vmatprep.subr.mxu0 0.0
        %3060 = vmatpush1.msra.mxu0 0.0
        %3061 = vmatprep.subr.mxu0 0.0
        %3062 = vmatpush1.msra.mxu0 0.0
        %3063 = vmatprep.subr.mxu0 0.0
        %3064 = vmatpush1.msra.mxu0 0.0
        %3065 = vmatprep.subr.mxu0 0.0
        %3066 = vmatpush1.msra.mxu0 0.0
        %3067 = vmatprep.subr.mxu0 0.0
        %3068 = vmatpush1.msra.mxu0 0.0
        %3069 = vmatprep.subr.mxu0 0.0
        %3070 = vmatpush1.msra.mxu0 0.0
        %3071 = vmatprep.subr.mxu0 0.0
        %3072 = vmatpush1.msra.mxu0 0.0
        %3073 = vmatprep.subr.mxu0 0.0
        %3074 = vmatpush1.msra.mxu0 0.0
        %3075 = vmatprep.subr.mxu0 0.0
        %3076 = vmatpush1.msra.mxu0 0.0
        %3077 = vmatprep.subr.mxu0 0.0
        %3078 = vmatpush1.msra.mxu0 0.0
        %3079 = vmatprep.subr.mxu0 0.0
        %3080 = vmatpush1.msra.mxu0 0.0
        %3081 = vmatprep.mubr.f32.mxu0 0.0
        %3082 = vmatmul.mubr.f32.gmra.mrb[0].mxu0 %v2994
        %v3083 = vpop.f32.mrb[0].mxu0
        %v3084 = vadd.f32 0.0, %v3083
        %v3085 = vpop.f32.mrb[0].mxu0
        %3086 = vmatprep.mubr.f32.mxu0 0.0
        %3087 = vmatmul.mubr.f32.gmra.mrb[0].mxu0 %v2997
        %v3088 = vpop.f32.mrb[0].mxu0
        %v3089 = vadd.f32 0.0, %v3088
        %v3090 = vpop.f32.mrb[0].mxu0
        %3091 = vmatprep.mubr.f32.mxu0 0.0
        %3092 = vmatmul.mubr.f32.gmra.mrb[0].mxu0 %v3000
        %v3093 = vpop.f32.mrb[0].mxu0
        %v3094 = vadd.f32 0.0, %v3093
        %v3095 = vpop.f32.mrb[0].mxu0
        %3096 = vmatprep.mubr.f32.mxu0 0.0
        %3097 = vmatmul.mubr.f32.gmra.mrb[0].mxu0 %v3003
        %v3098 = vpop.f32.mrb[0].mxu0
        %v3099 = vadd.f32 0.0, %v3098
        %v3100 = vpop.f32.mrb[0].mxu0
        %3101 = vmatprep.mubr.f32.mxu0 0.0
        %3102 = vmatmul.mubr.f32.gmra.mrb[0].mxu0 %v3006
        %v3103 = vpop.f32.mrb[0].mxu0
        %v3104 = vadd.f32 0.0, %v3103
        %v3105 = vpop.f32.mrb[0].mxu0
        %3106 = vmatprep.mubr.f32.mxu0 0.0
        %3107 = vmatmul.mubr.f32.gmra.mrb[0].mxu0 %v3009
        %v3108 = vpop.f32.mrb[0].mxu0
        %v3109 = vadd.f32 0.0, %v3108
        %v3110 = vpop.f32.mrb[0].mxu0
        %3111 = vmatprep.mubr.f32.mxu0 0.0
        %3112 = vmatmul.mubr.f32.gmra.mrb[0].mxu0 %v3012
        %v3113 = vpop.f32.mrb[0].mxu0
        %v3114 = vadd.f32 0.0, %v3113
        %v3115 = vpop.f32.mrb[0].mxu0
        %3116 = vmatprep.mubr.f32.mxu0 0.0
        %3117 = vmatmul.mubr.f32.gmra.mrb[0].mxu0 %v3015
        %v3118 = vpop.f32.mrb[0].mxu0
        %v3119 = vadd.f32 0.0, %v3118
        %v3120 = vpop.f32.mrb[0].mxu0
        %3121 = vdwg.mxu0
        %v3123 = vsel %vm838, %v2695, 0
        %v3126 = vsel %vm838, %v2696, 0
        %v3129 = vsel %vm838, %v2697, 0
        %v3132 = vsel %vm838, %v2698, 0
        %v3135 = vsel %vm838, %v2699, 0
        %v3138 = vsel %vm838, %v2700, 0
        %v3141 = vsel %vm838, %v2701, 0
        %v3144 = vsel %vm838, %v2702, 0
        %3146 = vmatprep.subr.mxu0 0.0
        %3147 = vmatpush1.msra.mxu0 %v570
        %3148 = vmatprep.subr.mxu0 0.0
        %3149 = vmatpush1.msra.mxu0 %v576
        %3150 = vmatprep.subr.mxu0 0.0
        %3151 = vmatpush1.msra.mxu0 %v582
        %3152 = vmatprep.subr.mxu0 0.0
        %3153 = vmatpush1.msra.mxu0 %v588
        %3154 = vmatprep.subr.mxu0 0.0
        %3155 = vmatpush1.msra.mxu0 %v594
        %3156 = vmatprep.subr.mxu0 0.0
        %3157 = vmatpush1.msra.mxu0 %v600
        %3158 = vmatprep.subr.mxu0 0.0
        %3159 = vmatpush1.msra.mxu0 %v606
        %3160 = vmatprep.subr.mxu0 0.0
        %3161 = vmatpush1.msra.mxu0 %v612
        %3162 = vmatprep.subr.mxu0 0.0
        %3163 = vmatpush1.msra.mxu0 0.0
        %3164 = vmatprep.subr.mxu0 0.0
        %3165 = vmatpush1.msra.mxu0 0.0
        %3166 = vmatprep.subr.mxu0 0.0
        %3167 = vmatpush1.msra.mxu0 0.0
        %3168 = vmatprep.subr.mxu0 0.0
        %3169 = vmatpush1.msra.mxu0 0.0
        %3170 = vmatprep.subr.mxu0 0.0
        %3171 = vmatpush1.msra.mxu0 0.0
        %3172 = vmatprep.subr.mxu0 0.0
        %3173 = vmatpush1.msra.mxu0 0.0
        %3174 = vmatprep.subr.mxu0 0.0
        %3175 = vmatpush1.msra.mxu0 0.0
        %3176 = vmatprep.subr.mxu0 0.0
        %3177 = vmatpush1.msra.mxu0 0.0
        %3178 = vmatprep.subr.mxu0 0.0
        %3179 = vmatpush1.msra.mxu0 0.0
        %3180 = vmatprep.subr.mxu0 0.0
        %3181 = vmatpush1.msra.mxu0 0.0
        %3182 = vmatprep.subr.mxu0 0.0
        %3183 = vmatpush1.msra.mxu0 0.0
        %3184 = vmatprep.subr.mxu0 0.0
        %3185 = vmatpush1.msra.mxu0 0.0
        %3186 = vmatprep.subr.mxu0 0.0
        %3187 = vmatpush1.msra.mxu0 0.0
        %3188 = vmatprep.subr.mxu0 0.0
        %3189 = vmatpush1.msra.mxu0 0.0
        %3190 = vmatprep.subr.mxu0 0.0
        %3191 = vmatpush1.msra.mxu0 0.0
        %3192 = vmatprep.subr.mxu0 0.0
        %3193 = vmatpush1.msra.mxu0 0.0
        %3194 = vmatprep.subr.mxu0 0.0
        %3195 = vmatpush1.msra.mxu0 0.0
        %3196 = vmatprep.subr.mxu0 0.0
        %3197 = vmatpush1.msra.mxu0 0.0
        %3198 = vmatprep.subr.mxu0 0.0
        %3199 = vmatpush1.msra.mxu0 0.0
        %3200 = vmatprep.subr.mxu0 0.0
        %3201 = vmatpush1.msra.mxu0 0.0
        %3202 = vmatprep.subr.mxu0 0.0
        %3203 = vmatpush1.msra.mxu0 0.0
        %3204 = vmatprep.subr.mxu0 0.0
        %3205 = vmatpush1.msra.mxu0 0.0
        %3206 = vmatprep.subr.mxu0 0.0
        %3207 = vmatpush1.msra.mxu0 0.0
        %3208 = vmatprep.subr.mxu0 0.0
        %3209 = vmatpush1.msra.mxu0 0.0
        %3210 = vmatprep.mubr.f32.mxu0 0.0
        %3211 = vmatmul.mubr.f32.gmra.mrb[0].mxu0 %v3123
        %v3212 = vpop.f32.mrb[0].mxu0
        %v3213 = vadd.f32 0.0, %v3212
        %v3214 = vpop.f32.mrb[0].mxu0
        %3215 = vmatprep.mubr.f32.mxu0 0.0
        %3216 = vmatmul.mubr.f32.gmra.mrb[0].mxu0 %v3126
        %v3217 = vpop.f32.mrb[0].mxu0
        %v3218 = vadd.f32 0.0, %v3217
        %v3219 = vpop.f32.mrb[0].mxu0
        %3220 = vmatprep.mubr.f32.mxu0 0.0
        %3221 = vmatmul.mubr.f32.gmra.mrb[0].mxu0 %v3129
        %v3222 = vpop.f32.mrb[0].mxu0
        %v3223 = vadd.f32 0.0, %v3222
        %v3224 = vpop.f32.mrb[0].mxu0
        %3225 = vmatprep.mubr.f32.mxu0 0.0
        %3226 = vmatmul.mubr.f32.gmra.mrb[0].mxu0 %v3132
        %v3227 = vpop.f32.mrb[0].mxu0
        %v3228 = vadd.f32 0.0, %v3227
        %v3229 = vpop.f32.mrb[0].mxu0
        %3230 = vmatprep.mubr.f32.mxu0 0.0
        %3231 = vmatmul.mubr.f32.gmra.mrb[0].mxu0 %v3135
        %v3232 = vpop.f32.mrb[0].mxu0
        %v3233 = vadd.f32 0.0, %v3232
        %v3234 = vpop.f32.mrb[0].mxu0
        %3235 = vmatprep.mubr.f32.mxu0 0.0
        %3236 = vmatmul.mubr.f32.gmra.mrb[0].mxu0 %v3138
        %v3237 = vpop.f32.mrb[0].mxu0
        %v3238 = vadd.f32 0.0, %v3237
        %v3239 = vpop.f32.mrb[0].mxu0
        %3240 = vmatprep.mubr.f32.mxu0 0.0
        %3241 = vmatmul.mubr.f32.gmra.mrb[0].mxu0 %v3141
        %v3242 = vpop.f32.mrb[0].mxu0
        %v3243 = vadd.f32 0.0, %v3242
        %v3244 = vpop.f32.mrb[0].mxu0
        %3245 = vmatprep.mubr.f32.mxu0 0.0
        %3246 = vmatmul.mubr.f32.gmra.mrb[0].mxu0 %v3144
        %v3247 = vpop.f32.mrb[0].mxu0
        %v3248 = vadd.f32 0.0, %v3247
        %v3249 = vpop.f32.mrb[0].mxu0
        %3250 = vdwg.mxu0
        %v3252 = vsel %vm838, %v2703, 0
        %v3255 = vsel %vm838, %v2704, 0
        %v3258 = vsel %vm838, %v2705, 0
        %v3261 = vsel %vm838, %v2706, 0
        %v3264 = vsel %vm838, %v2707, 0
        %v3267 = vsel %vm838, %v2708, 0
        %v3270 = vsel %vm838, %v2709, 0
        %v3273 = vsel %vm838, %v2710, 0
        %3275 = vmatprep.subr.mxu0 0.0
        %3276 = vmatpush1.msra.mxu0 %v618
        %3277 = vmatprep.subr.mxu0 0.0
        %3278 = vmatpush1.msra.mxu0 %v624
        %3279 = vmatprep.subr.mxu0 0.0
        %3280 = vmatpush1.msra.mxu0 %v630
        %3281 = vmatprep.subr.mxu0 0.0
        %3282 = vmatpush1.msra.mxu0 %v636
        %3283 = vmatprep.subr.mxu0 0.0
        %3284 = vmatpush1.msra.mxu0 %v642
        %3285 = vmatprep.subr.mxu0 0.0
        %3286 = vmatpush1.msra.mxu0 %v648
        %3287 = vmatprep.subr.mxu0 0.0
        %3288 = vmatpush1.msra.mxu0 %v654
        %3289 = vmatprep.subr.mxu0 0.0
        %3290 = vmatpush1.msra.mxu0 %v660
        %3291 = vmatprep.subr.mxu0 0.0
        %3292 = vmatpush1.msra.mxu0 0.0
        %3293 = vmatprep.subr.mxu0 0.0
        %3294 = vmatpush1.msra.mxu0 0.0
        %3295 = vmatprep.subr.mxu0 0.0
        %3296 = vmatpush1.msra.mxu0 0.0
        %3297 = vmatprep.subr.mxu0 0.0
        %3298 = vmatpush1.msra.mxu0 0.0
        %3299 = vmatprep.subr.mxu0 0.0
        %3300 = vmatpush1.msra.mxu0 0.0
        %3301 = vmatprep.subr.mxu0 0.0
        %3302 = vmatpush1.msra.mxu0 0.0
        %3303 = vmatprep.subr.mxu0 0.0
        %3304 = vmatpush1.msra.mxu0 0.0
        %3305 = vmatprep.subr.mxu0 0.0
        %3306 = vmatpush1.msra.mxu0 0.0
        %3307 = vmatprep.subr.mxu0 0.0
        %3308 = vmatpush1.msra.mxu0 0.0
        %3309 = vmatprep.subr.mxu0 0.0
        %3310 = vmatpush1.msra.mxu0 0.0
        %3311 = vmatprep.subr.mxu0 0.0
        %3312 = vmatpush1.msra.mxu0 0.0
        %3313 = vmatprep.subr.mxu0 0.0
        %3314 = vmatpush1.msra.mxu0 0.0
        %3315 = vmatprep.subr.mxu0 0.0
        %3316 = vmatpush1.msra.mxu0 0.0
        %3317 = vmatprep.subr.mxu0 0.0
        %3318 = vmatpush1.msra.mxu0 0.0
        %3319 = vmatprep.subr.mxu0 0.0
        %3320 = vmatpush1.msra.mxu0 0.0
        %3321 = vmatprep.subr.mxu0 0.0
        %3322 = vmatpush1.msra.mxu0 0.0
        %3323 = vmatprep.subr.mxu0 0.0
        %3324 = vmatpush1.msra.mxu0 0.0
        %3325 = vmatprep.subr.mxu0 0.0
        %3326 = vmatpush1.msra.mxu0 0.0
        %3327 = vmatprep.subr.mxu0 0.0
        %3328 = vmatpush1.msra.mxu0 0.0
        %3329 = vmatprep.subr.mxu0 0.0
        %3330 = vmatpush1.msra.mxu0 0.0
        %3331 = vmatprep.subr.mxu0 0.0
        %3332 = vmatpush1.msra.mxu0 0.0
        %3333 = vmatprep.subr.mxu0 0.0
        %3334 = vmatpush1.msra.mxu0 0.0
        %3335 = vmatprep.subr.mxu0 0.0
        %3336 = vmatpush1.msra.mxu0 0.0
        %3337 = vmatprep.subr.mxu0 0.0
        %3338 = vmatpush1.msra.mxu0 0.0
        %3339 = vmatprep.mubr.f32.mxu0 0.0
        %3340 = vmatmul.mubr.f32.gmra.mrb[0].mxu0 %v3252
        %v3341 = vpop.f32.mrb[0].mxu0
        %v3342 = vadd.f32 0.0, %v3341
        %v3343 = vpop.f32.mrb[0].mxu0
        %3344 = vmatprep.mubr.f32.mxu0 0.0
        %3345 = vmatmul.mubr.f32.gmra.mrb[0].mxu0 %v3255
        %v3346 = vpop.f32.mrb[0].mxu0
        %v3347 = vadd.f32 0.0, %v3346
        %v3348 = vpop.f32.mrb[0].mxu0
        %3349 = vmatprep.mubr.f32.mxu0 0.0
        %3350 = vmatmul.mubr.f32.gmra.mrb[0].mxu0 %v3258
        %v3351 = vpop.f32.mrb[0].mxu0
        %v3352 = vadd.f32 0.0, %v3351
        %v3353 = vpop.f32.mrb[0].mxu0
        %3354 = vmatprep.mubr.f32.mxu0 0.0
        %3355 = vmatmul.mubr.f32.gmra.mrb[0].mxu0 %v3261
        %v3356 = vpop.f32.mrb[0].mxu0
        %v3357 = vadd.f32 0.0, %v3356
        %v3358 = vpop.f32.mrb[0].mxu0
        %3359 = vmatprep.mubr.f32.mxu0 0.0
        %3360 = vmatmul.mubr.f32.gmra.mrb[0].mxu0 %v3264
        %v3361 = vpop.f32.mrb[0].mxu0
        %v3362 = vadd.f32 0.0, %v3361
        %v3363 = vpop.f32.mrb[0].mxu0
        %3364 = vmatprep.mubr.f32.mxu0 0.0
        %3365 = vmatmul.mubr.f32.gmra.mrb[0].mxu0 %v3267
        %v3366 = vpop.f32.mrb[0].mxu0
        %v3367 = vadd.f32 0.0, %v3366
        %v3368 = vpop.f32.mrb[0].mxu0
        %3369 = vmatprep.mubr.f32.mxu0 0.0
        %3370 = vmatmul.mubr.f32.gmra.mrb[0].mxu0 %v3270
        %v3371 = vpop.f32.mrb[0].mxu0
        %v3372 = vadd.f32 0.0, %v3371
        %v3373 = vpop.f32.mrb[0].mxu0
        %3374 = vmatprep.mubr.f32.mxu0 0.0
        %3375 = vmatmul.mubr.f32.gmra.mrb[0].mxu0 %v3273
        %v3376 = vpop.f32.mrb[0].mxu0
        %v3377 = vadd.f32 0.0, %v3376
        %v3378 = vpop.f32.mrb[0].mxu0
        %3379 = vdwg.mxu0
        %v3381 = vsel %vm838, %v2711, 0
        %v3384 = vsel %vm838, %v2712, 0
        %v3387 = vsel %vm838, %v2713, 0
        %v3390 = vsel %vm838, %v2714, 0
        %v3393 = vsel %vm838, %v2715, 0
        %v3396 = vsel %vm838, %v2716, 0
        %v3399 = vsel %vm838, %v2717, 0
        %v3402 = vsel %vm838, %v2718, 0
        %3404 = vmatprep.subr.mxu0 0.0
        %3405 = vmatpush1.msra.mxu0 %v666
        %3406 = vmatprep.subr.mxu0 0.0
        %3407 = vmatpush1.msra.mxu0 %v672
        %3408 = vmatprep.subr.mxu0 0.0
        %3409 = vmatpush1.msra.mxu0 %v678
        %3410 = vmatprep.subr.mxu0 0.0
        %3411 = vmatpush1.msra.mxu0 %v684
        %3412 = vmatprep.subr.mxu0 0.0
        %3413 = vmatpush1.msra.mxu0 %v690
        %3414 = vmatprep.subr.mxu0 0.0
        %3415 = vmatpush1.msra.mxu0 %v696
        %3416 = vmatprep.subr.mxu0 0.0
        %3417 = vmatpush1.msra.mxu0 %v702
        %3418 = vmatprep.subr.mxu0 0.0
        %3419 = vmatpush1.msra.mxu0 %v708
        %3420 = vmatprep.subr.mxu0 0.0
        %3421 = vmatpush1.msra.mxu0 0.0
        %3422 = vmatprep.subr.mxu0 0.0
        %3423 = vmatpush1.msra.mxu0 0.0
        %3424 = vmatprep.subr.mxu0 0.0
        %3425 = vmatpush1.msra.mxu0 0.0
        %3426 = vmatprep.subr.mxu0 0.0
        %3427 = vmatpush1.msra.mxu0 0.0
        %3428 = vmatprep.subr.mxu0 0.0
        %3429 = vmatpush1.msra.mxu0 0.0
        %3430 = vmatprep.subr.mxu0 0.0
        %3431 = vmatpush1.msra.mxu0 0.0
        %3432 = vmatprep.subr.mxu0 0.0
        %3433 = vmatpush1.msra.mxu0 0.0
        %3434 = vmatprep.subr.mxu0 0.0
        %3435 = vmatpush1.msra.mxu0 0.0
        %3436 = vmatprep.subr.mxu0 0.0
        %3437 = vmatpush1.msra.mxu0 0.0
        %3438 = vmatprep.subr.mxu0 0.0
        %3439 = vmatpush1.msra.mxu0 0.0
        %3440 = vmatprep.subr.mxu0 0.0
        %3441 = vmatpush1.msra.mxu0 0.0
        %3442 = vmatprep.subr.mxu0 0.0
        %3443 = vmatpush1.msra.mxu0 0.0
        %3444 = vmatprep.subr.mxu0 0.0
        %3445 = vmatpush1.msra.mxu0 0.0
        %3446 = vmatprep.subr.mxu0 0.0
        %3447 = vmatpush1.msra.mxu0 0.0
        %3448 = vmatprep.subr.mxu0 0.0
        %3449 = vmatpush1.msra.mxu0 0.0
        %3450 = vmatprep.subr.mxu0 0.0
        %3451 = vmatpush1.msra.mxu0 0.0
        %3452 = vmatprep.subr.mxu0 0.0
        %3453 = vmatpush1.msra.mxu0 0.0
        %3454 = vmatprep.subr.mxu0 0.0
        %3455 = vmatpush1.msra.mxu0 0.0
        %3456 = vmatprep.subr.mxu0 0.0
        %3457 = vmatpush1.msra.mxu0 0.0
        %3458 = vmatprep.subr.mxu0 0.0
        %3459 = vmatpush1.msra.mxu0 0.0
        %3460 = vmatprep.subr.mxu0 0.0
        %3461 = vmatpush1.msra.mxu0 0.0
        %3462 = vmatprep.subr.mxu0 0.0
        %3463 = vmatpush1.msra.mxu0 0.0
        %3464 = vmatprep.subr.mxu0 0.0
        %3465 = vmatpush1.msra.mxu0 0.0
        %3466 = vmatprep.subr.mxu0 0.0
        %3467 = vmatpush1.msra.mxu0 0.0
        %3468 = vmatprep.mubr.f32.mxu0 0.0
        %3469 = vmatmul.mubr.f32.gmra.mrb[0].mxu0 %v3381
        %v3470 = vpop.f32.mrb[0].mxu0
        %v3471 = vadd.f32 0.0, %v3470
        %v3472 = vpop.f32.mrb[0].mxu0
        %3473 = vmatprep.mubr.f32.mxu0 0.0
        %3474 = vmatmul.mubr.f32.gmra.mrb[0].mxu0 %v3384
        %v3475 = vpop.f32.mrb[0].mxu0
        %v3476 = vadd.f32 0.0, %v3475
        %v3477 = vpop.f32.mrb[0].mxu0
        %3478 = vmatprep.mubr.f32.mxu0 0.0
        %3479 = vmatmul.mubr.f32.gmra.mrb[0].mxu0 %v3387
        %v3480 = vpop.f32.mrb[0].mxu0
        %v3481 = vadd.f32 0.0, %v3480
        %v3482 = vpop.f32.mrb[0].mxu0
        %3483 = vmatprep.mubr.f32.mxu0 0.0
        %3484 = vmatmul.mubr.f32.gmra.mrb[0].mxu0 %v3390
        %v3485 = vpop.f32.mrb[0].mxu0
        %v3486 = vadd.f32 0.0, %v3485
        %v3487 = vpop.f32.mrb[0].mxu0
        %3488 = vmatprep.mubr.f32.mxu0 0.0
        %3489 = vmatmul.mubr.f32.gmra.mrb[0].mxu0 %v3393
        %v3490 = vpop.f32.mrb[0].mxu0
        %v3491 = vadd.f32 0.0, %v3490
        %v3492 = vpop.f32.mrb[0].mxu0
        %3493 = vmatprep.mubr.f32.mxu0 0.0
        %3494 = vmatmul.mubr.f32.gmra.mrb[0].mxu0 %v3396
        %v3495 = vpop.f32.mrb[0].mxu0
        %v3496 = vadd.f32 0.0, %v3495
        %v3497 = vpop.f32.mrb[0].mxu0
        %3498 = vmatprep.mubr.f32.mxu0 0.0
        %3499 = vmatmul.mubr.f32.gmra.mrb[0].mxu0 %v3399
        %v3500 = vpop.f32.mrb[0].mxu0
        %v3501 = vadd.f32 0.0, %v3500
        %v3502 = vpop.f32.mrb[0].mxu0
        %3503 = vmatprep.mubr.f32.mxu0 0.0
        %3504 = vmatmul.mubr.f32.gmra.mrb[0].mxu0 %v3402
        %v3505 = vpop.f32.mrb[0].mxu0
        %v3506 = vadd.f32 0.0, %v3505
        %v3507 = vpop.f32.mrb[0].mxu0
        %3508 = vdwg.mxu0
        %v3510 = vsel %vm838, %v2719, 0
        %v3513 = vsel %vm838, %v2720, 0
        %v3516 = vsel %vm838, %v2721, 0
        %v3519 = vsel %vm838, %v2722, 0
        %v3522 = vsel %vm838, %v2723, 0
        %v3525 = vsel %vm838, %v2724, 0
        %v3528 = vsel %vm838, %v2725, 0
        %v3531 = vsel %vm838, %v2726, 0
        %3533 = vmatprep.subr.mxu0 0.0
        %3534 = vmatpush1.msra.mxu0 %v714
        %3535 = vmatprep.subr.mxu0 0.0
        %3536 = vmatpush1.msra.mxu0 %v720
        %3537 = vmatprep.subr.mxu0 0.0
        %3538 = vmatpush1.msra.mxu0 %v726
        %3539 = vmatprep.subr.mxu0 0.0
        %3540 = vmatpush1.msra.mxu0 %v732
        %3541 = vmatprep.subr.mxu0 0.0
        %3542 = vmatpush1.msra.mxu0 %v738
        %3543 = vmatprep.subr.mxu0 0.0
        %3544 = vmatpush1.msra.mxu0 %v744
        %3545 = vmatprep.subr.mxu0 0.0
        %3546 = vmatpush1.msra.mxu0 %v750
        %3547 = vmatprep.subr.mxu0 0.0
        %3548 = vmatpush1.msra.mxu0 %v756
        %3549 = vmatprep.subr.mxu0 0.0
        %3550 = vmatpush1.msra.mxu0 0.0
        %3551 = vmatprep.subr.mxu0 0.0
        %3552 = vmatpush1.msra.mxu0 0.0
        %3553 = vmatprep.subr.mxu0 0.0
        %3554 = vmatpush1.msra.mxu0 0.0
        %3555 = vmatprep.subr.mxu0 0.0
        %3556 = vmatpush1.msra.mxu0 0.0
        %3557 = vmatprep.subr.mxu0 0.0
        %3558 = vmatpush1.msra.mxu0 0.0
        %3559 = vmatprep.subr.mxu0 0.0
        %3560 = vmatpush1.msra.mxu0 0.0
        %3561 = vmatprep.subr.mxu0 0.0
        %3562 = vmatpush1.msra.mxu0 0.0
        %3563 = vmatprep.subr.mxu0 0.0
        %3564 = vmatpush1.msra.mxu0 0.0
        %3565 = vmatprep.subr.mxu0 0.0
        %3566 = vmatpush1.msra.mxu0 0.0
        %3567 = vmatprep.subr.mxu0 0.0
        %3568 = vmatpush1.msra.mxu0 0.0
        %3569 = vmatprep.subr.mxu0 0.0
        %3570 = vmatpush1.msra.mxu0 0.0
        %3571 = vmatprep.subr.mxu0 0.0
        %3572 = vmatpush1.msra.mxu0 0.0
        %3573 = vmatprep.subr.mxu0 0.0
        %3574 = vmatpush1.msra.mxu0 0.0
        %3575 = vmatprep.subr.mxu0 0.0
        %3576 = vmatpush1.msra.mxu0 0.0
        %3577 = vmatprep.subr.mxu0 0.0
        %3578 = vmatpush1.msra.mxu0 0.0
        %3579 = vmatprep.subr.mxu0 0.0
        %3580 = vmatpush1.msra.mxu0 0.0
        %3581 = vmatprep.subr.mxu0 0.0
        %3582 = vmatpush1.msra.mxu0 0.0
        %3583 = vmatprep.subr.mxu0 0.0
        %3584 = vmatpush1.msra.mxu0 0.0
        %3585 = vmatprep.subr.mxu0 0.0
        %3586 = vmatpush1.msra.mxu0 0.0
        %3587 = vmatprep.subr.mxu0 0.0
        %3588 = vmatpush1.msra.mxu0 0.0
        %3589 = vmatprep.subr.mxu0 0.0
        %3590 = vmatpush1.msra.mxu0 0.0
        %3591 = vmatprep.subr.mxu0 0.0
        %3592 = vmatpush1.msra.mxu0 0.0
        %3593 = vmatprep.subr.mxu0 0.0
        %3594 = vmatpush1.msra.mxu0 0.0
        %3595 = vmatprep.subr.mxu0 0.0
        %3596 = vmatpush1.msra.mxu0 0.0
        %3597 = vmatprep.mubr.f32.mxu0 0.0
        %3598 = vmatmul.mubr.f32.gmra.mrb[0].mxu0 %v3510
        %v3599 = vpop.f32.mrb[0].mxu0
        %v3600 = vadd.f32 0.0, %v3599
        %v3601 = vpop.f32.mrb[0].mxu0
        %3602 = vmatprep.mubr.f32.mxu0 0.0
        %3603 = vmatmul.mubr.f32.gmra.mrb[0].mxu0 %v3513
        %v3604 = vpop.f32.mrb[0].mxu0
        %v3605 = vadd.f32 0.0, %v3604
        %v3606 = vpop.f32.mrb[0].mxu0
        %3607 = vmatprep.mubr.f32.mxu0 0.0
        %3608 = vmatmul.mubr.f32.gmra.mrb[0].mxu0 %v3516
        %v3609 = vpop.f32.mrb[0].mxu0
        %v3610 = vadd.f32 0.0, %v3609
        %v3611 = vpop.f32.mrb[0].mxu0
        %3612 = vmatprep.mubr.f32.mxu0 0.0
        %3613 = vmatmul.mubr.f32.gmra.mrb[0].mxu0 %v3519
        %v3614 = vpop.f32.mrb[0].mxu0
        %v3615 = vadd.f32 0.0, %v3614
        %v3616 = vpop.f32.mrb[0].mxu0
        %3617 = vmatprep.mubr.f32.mxu0 0.0
        %3618 = vmatmul.mubr.f32.gmra.mrb[0].mxu0 %v3522
        %v3619 = vpop.f32.mrb[0].mxu0
        %v3620 = vadd.f32 0.0, %v3619
        %v3621 = vpop.f32.mrb[0].mxu0
        %3622 = vmatprep.mubr.f32.mxu0 0.0
        %3623 = vmatmul.mubr.f32.gmra.mrb[0].mxu0 %v3525
        %v3624 = vpop.f32.mrb[0].mxu0
        %v3625 = vadd.f32 0.0, %v3624
        %v3626 = vpop.f32.mrb[0].mxu0
        %3627 = vmatprep.mubr.f32.mxu0 0.0
        %3628 = vmatmul.mubr.f32.gmra.mrb[0].mxu0 %v3528
        %v3629 = vpop.f32.mrb[0].mxu0
        %v3630 = vadd.f32 0.0, %v3629
        %v3631 = vpop.f32.mrb[0].mxu0
        %3632 = vmatprep.mubr.f32.mxu0 0.0
        %3633 = vmatmul.mubr.f32.gmra.mrb[0].mxu0 %v3531
        %v3634 = vpop.f32.mrb[0].mxu0
        %v3635 = vadd.f32 0.0, %v3634
        %v3636 = vpop.f32.mrb[0].mxu0
        %3637 = vdwg.mxu0
        %v3639 = vsel %vm838, %v2727, 0
        %v3642 = vsel %vm838, %v2728, 0
        %v3645 = vsel %vm838, %v2729, 0
        %v3648 = vsel %vm838, %v2730, 0
        %v3651 = vsel %vm838, %v2731, 0
        %v3654 = vsel %vm838, %v2732, 0
        %v3657 = vsel %vm838, %v2733, 0
        %v3660 = vsel %vm838, %v2734, 0
        %3662 = vmatprep.subr.mxu0 0.0
        %3663 = vmatpush1.msra.mxu0 %v762
        %3664 = vmatprep.subr.mxu0 0.0
        %3665 = vmatpush1.msra.mxu0 %v768
        %3666 = vmatprep.subr.mxu0 0.0
        %3667 = vmatpush1.msra.mxu0 %v774
        %3668 = vmatprep.subr.mxu0 0.0
        %3669 = vmatpush1.msra.mxu0 %v780
        %3670 = vmatprep.subr.mxu0 0.0
        %3671 = vmatpush1.msra.mxu0 %v786
        %3672 = vmatprep.subr.mxu0 0.0
        %3673 = vmatpush1.msra.mxu0 %v792
        %3674 = vmatprep.subr.mxu0 0.0
        %3675 = vmatpush1.msra.mxu0 %v798
        %3676 = vmatprep.subr.mxu0 0.0
        %3677 = vmatpush1.msra.mxu0 %v804
        %3678 = vmatprep.subr.mxu0 0.0
        %3679 = vmatpush1.msra.mxu0 0.0
        %3680 = vmatprep.subr.mxu0 0.0
        %3681 = vmatpush1.msra.mxu0 0.0
        %3682 = vmatprep.subr.mxu0 0.0
        %3683 = vmatpush1.msra.mxu0 0.0
        %3684 = vmatprep.subr.mxu0 0.0
        %3685 = vmatpush1.msra.mxu0 0.0
        %3686 = vmatprep.subr.mxu0 0.0
        %3687 = vmatpush1.msra.mxu0 0.0
        %3688 = vmatprep.subr.mxu0 0.0
        %3689 = vmatpush1.msra.mxu0 0.0
        %3690 = vmatprep.subr.mxu0 0.0
        %3691 = vmatpush1.msra.mxu0 0.0
        %3692 = vmatprep.subr.mxu0 0.0
        %3693 = vmatpush1.msra.mxu0 0.0
        %3694 = vmatprep.subr.mxu0 0.0
        %3695 = vmatpush1.msra.mxu0 0.0
        %3696 = vmatprep.subr.mxu0 0.0
        %3697 = vmatpush1.msra.mxu0 0.0
        %3698 = vmatprep.subr.mxu0 0.0
        %3699 = vmatpush1.msra.mxu0 0.0
        %3700 = vmatprep.subr.mxu0 0.0
        %3701 = vmatpush1.msra.mxu0 0.0
        %3702 = vmatprep.subr.mxu0 0.0
        %3703 = vmatpush1.msra.mxu0 0.0
        %3704 = vmatprep.subr.mxu0 0.0
        %3705 = vmatpush1.msra.mxu0 0.0
        %3706 = vmatprep.subr.mxu0 0.0
        %3707 = vmatpush1.msra.mxu0 0.0
        %3708 = vmatprep.subr.mxu0 0.0
        %3709 = vmatpush1.msra.mxu0 0.0
        %3710 = vmatprep.subr.mxu0 0.0
        %3711 = vmatpush1.msra.mxu0 0.0
        %3712 = vmatprep.subr.mxu0 0.0
        %3713 = vmatpush1.msra.mxu0 0.0
        %3714 = vmatprep.subr.mxu0 0.0
        %3715 = vmatpush1.msra.mxu0 0.0
        %3716 = vmatprep.subr.mxu0 0.0
        %3717 = vmatpush1.msra.mxu0 0.0
        %3718 = vmatprep.subr.mxu0 0.0
        %3719 = vmatpush1.msra.mxu0 0.0
        %3720 = vmatprep.subr.mxu0 0.0
        %3721 = vmatpush1.msra.mxu0 0.0
        %3722 = vmatprep.subr.mxu0 0.0
        %3723 = vmatpush1.msra.mxu0 0.0
        %3724 = vmatprep.subr.mxu0 0.0
        %3725 = vmatpush1.msra.mxu0 0.0
        %3726 = vmatprep.mubr.f32.mxu0 0.0
        %3727 = vmatmul.mubr.f32.gmra.mrb[0].mxu0 %v3639
        %v3728 = vpop.f32.mrb[0].mxu0
        %v3729 = vadd.f32 0.0, %v3728
        %v3730 = vpop.f32.mrb[0].mxu0
        %3731 = vmatprep.mubr.f32.mxu0 0.0
        %3732 = vmatmul.mubr.f32.gmra.mrb[0].mxu0 %v3642
        %v3733 = vpop.f32.mrb[0].mxu0
        %v3734 = vadd.f32 0.0, %v3733
        %v3735 = vpop.f32.mrb[0].mxu0
        %3736 = vmatprep.mubr.f32.mxu0 0.0
        %3737 = vmatmul.mubr.f32.gmra.mrb[0].mxu0 %v3645
        %v3738 = vpop.f32.mrb[0].mxu0
        %v3739 = vadd.f32 0.0, %v3738
        %v3740 = vpop.f32.mrb[0].mxu0
        %3741 = vmatprep.mubr.f32.mxu0 0.0
        %3742 = vmatmul.mubr.f32.gmra.mrb[0].mxu0 %v3648
        %v3743 = vpop.f32.mrb[0].mxu0
        %v3744 = vadd.f32 0.0, %v3743
        %v3745 = vpop.f32.mrb[0].mxu0
        %3746 = vmatprep.mubr.f32.mxu0 0.0
        %3747 = vmatmul.mubr.f32.gmra.mrb[0].mxu0 %v3651
        %v3748 = vpop.f32.mrb[0].mxu0
        %v3749 = vadd.f32 0.0, %v3748
        %v3750 = vpop.f32.mrb[0].mxu0
        %3751 = vmatprep.mubr.f32.mxu0 0.0
        %3752 = vmatmul.mubr.f32.gmra.mrb[0].mxu0 %v3654
        %v3753 = vpop.f32.mrb[0].mxu0
        %v3754 = vadd.f32 0.0, %v3753
        %v3755 = vpop.f32.mrb[0].mxu0
        %3756 = vmatprep.mubr.f32.mxu0 0.0
        %3757 = vmatmul.mubr.f32.gmra.mrb[0].mxu0 %v3657
        %v3758 = vpop.f32.mrb[0].mxu0
        %v3759 = vadd.f32 0.0, %v3758
        %v3760 = vpop.f32.mrb[0].mxu0
        %3761 = vmatprep.mubr.f32.mxu0 0.0
        %3762 = vmatmul.mubr.f32.gmra.mrb[0].mxu0 %v3660
        %v3763 = vpop.f32.mrb[0].mxu0
        %v3764 = vadd.f32 0.0, %v3763
        %v3765 = vpop.f32.mrb[0].mxu0
        %3766 = vdwg.mxu0
        %3767 = vst.msk [vmem:[%s162] sm:$0xff] %vm838, %v2826
        %3768 = vst.msk [vmem:[%s162 + $0x8] sm:$0xff] %vm838, %v2831
        %3769 = vst.msk [vmem:[%s162 + $0x10] sm:$0xff] %vm838, %v2836
        %3770 = vst.msk [vmem:[%s162 + $0x18] sm:$0xff] %vm838, %v2841
        %3771 = vst.msk [vmem:[%s162 + $0x20] sm:$0xff] %vm838, %v2846
        %3772 = vst.msk [vmem:[%s162 + $0x28] sm:$0xff] %vm838, %v2851
        %3773 = vst.msk [vmem:[%s162 + $0x30] sm:$0xff] %vm838, %v2856
        %3774 = vst.msk [vmem:[%s162 + $0x38] sm:$0xff] %vm838, %v2861
        %3775 = vst.msk [vmem:[%s162 + $0x40] sm:$0xff] %vm838, %v2955
        %3776 = vst.msk [vmem:[%s162 + $0x48] sm:$0xff] %vm838, %v2960
        %3777 = vst.msk [vmem:[%s162 + $0x50] sm:$0xff] %vm838, %v2965
        %3778 = vst.msk [vmem:[%s162 + $0x58] sm:$0xff] %vm838, %v2970
        %3779 = vst.msk [vmem:[%s162 + $0x60] sm:$0xff] %vm838, %v2975
        %3780 = vst.msk [vmem:[%s162 + $0x68] sm:$0xff] %vm838, %v2980
        %3781 = vst.msk [vmem:[%s162 + $0x70] sm:$0xff] %vm838, %v2985
        %3782 = vst.msk [vmem:[%s162 + $0x78] sm:$0xff] %vm838, %v2990
        %3783 = vst.msk [vmem:[%s162 + $0x80] sm:$0xff] %vm838, %v3084
        %3784 = vst.msk [vmem:[%s162 + $0x88] sm:$0xff] %vm838, %v3089
        %3785 = vst.msk [vmem:[%s162 + $0x90] sm:$0xff] %vm838, %v3094
        %3786 = vst.msk [vmem:[%s162 + $0x98] sm:$0xff] %vm838, %v3099
        %3787 = vst.msk [vmem:[%s162 + $0xa0] sm:$0xff] %vm838, %v3104
        %3788 = vst.msk [vmem:[%s162 + $0xa8] sm:$0xff] %vm838, %v3109
        %3789 = vst.msk [vmem:[%s162 + $0xb0] sm:$0xff] %vm838, %v3114
        %3790 = vst.msk [vmem:[%s162 + $0xb8] sm:$0xff] %vm838, %v3119
        %3791 = vst.msk [vmem:[%s162 + $0xc0] sm:$0xff] %vm838, %v3213
        %3792 = vst.msk [vmem:[%s162 + $0xc8] sm:$0xff] %vm838, %v3218
        %3793 = vst.msk [vmem:[%s162 + $0xd0] sm:$0xff] %vm838, %v3223
        %3794 = vst.msk [vmem:[%s162 + $0xd8] sm:$0xff] %vm838, %v3228
        %3795 = vst.msk [vmem:[%s162 + $0xe0] sm:$0xff] %vm838, %v3233
        %3796 = vst.msk [vmem:[%s162 + $0xe8] sm:$0xff] %vm838, %v3238
        %3797 = vst.msk [vmem:[%s162 + $0xf0] sm:$0xff] %vm838, %v3243
        %3798 = vst.msk [vmem:[%s162 + $0xf8] sm:$0xff] %vm838, %v3248
        %3799 = vst.msk [vmem:[%s162 + $0x100] sm:$0xff] %vm838, %v3342
        %3800 = vst.msk [vmem:[%s162 + $0x108] sm:$0xff] %vm838, %v3347
        %3801 = vst.msk [vmem:[%s162 + $0x110] sm:$0xff] %vm838, %v3352
        %3802 = vst.msk [vmem:[%s162 + $0x118] sm:$0xff] %vm838, %v3357
        %3803 = vst.msk [vmem:[%s162 + $0x120] sm:$0xff] %vm838, %v3362
        %3804 = vst.msk [vmem:[%s162 + $0x128] sm:$0xff] %vm838, %v3367
        %3805 = vst.msk [vmem:[%s162 + $0x130] sm:$0xff] %vm838, %v3372
        %3806 = vst.msk [vmem:[%s162 + $0x138] sm:$0xff] %vm838, %v3377
        %3807 = vst.msk [vmem:[%s162 + $0x140] sm:$0xff] %vm838, %v3471
        %3808 = vst.msk [vmem:[%s162 + $0x148] sm:$0xff] %vm838, %v3476
        %3809 = vst.msk [vmem:[%s162 + $0x150] sm:$0xff] %vm838, %v3481
        %3810 = vst.msk [vmem:[%s162 + $0x158] sm:$0xff] %vm838, %v3486
        %3811 = vst.msk [vmem:[%s162 + $0x160] sm:$0xff] %vm838, %v3491
        %3812 = vst.msk [vmem:[%s162 + $0x168] sm:$0xff] %vm838, %v3496
        %3813 = vst.msk [vmem:[%s162 + $0x170] sm:$0xff] %vm838, %v3501
        %3814 = vst.msk [vmem:[%s162 + $0x178] sm:$0xff] %vm838, %v3506
        %3815 = vst.msk [vmem:[%s162 + $0x180] sm:$0xff] %vm838, %v3600
        %3816 = vst.msk [vmem:[%s162 + $0x188] sm:$0xff] %vm838, %v3605
        %3817 = vst.msk [vmem:[%s162 + $0x190] sm:$0xff] %vm838, %v3610
        %3818 = vst.msk [vmem:[%s162 + $0x198] sm:$0xff] %vm838, %v3615
        %3819 = vst.msk [vmem:[%s162 + $0x1a0] sm:$0xff] %vm838, %v3620
        %3820 = vst.msk [vmem:[%s162 + $0x1a8] sm:$0xff] %vm838, %v3625
        %3821 = vst.msk [vmem:[%s162 + $0x1b0] sm:$0xff] %vm838, %v3630
        %3822 = vst.msk [vmem:[%s162 + $0x1b8] sm:$0xff] %vm838, %v3635
        %3823 = vst.msk [vmem:[%s162 + $0x1c0] sm:$0xff] %vm838, %v3729
        %3824 = vst.msk [vmem:[%s162 + $0x1c8] sm:$0xff] %vm838, %v3734
        %3825 = vst.msk [vmem:[%s162 + $0x1d0] sm:$0xff] %vm838, %v3739
        %3826 = vst.msk [vmem:[%s162 + $0x1d8] sm:$0xff] %vm838, %v3744
        %3827 = vst.msk [vmem:[%s162 + $0x1e0] sm:$0xff] %vm838, %v3749
        %3828 = vst.msk [vmem:[%s162 + $0x1e8] sm:$0xff] %vm838, %v3754
        %3829 = vst.msk [vmem:[%s162 + $0x1f0] sm:$0xff] %vm838, %v3759
        %3830 = vst.msk [vmem:[%s162 + $0x1f8] sm:$0xff] %vm838, %v3764
        %s3831 = sand.u32 %s74, 1
        %s3832 = scalar_lea.sflag [#allocation4], %s3831
        %s3833 = sand.u32 %s74, 1
        %s3834 = smul.addr %s3833, 512
        %s3835 = scalar_lea.vmem [#allocation5], %s3834
        // Predicated region
        $region33: #{mmult_batched.1} parent=27 // pred_check
          %p3836 = pneg %p84
        $region34: #{mmult_batched.1} parent=27 // pred_check_branch
          %3838 = sbr.rel (%p3836) target = $region36
        $region35: #{mmult_batched.1} parent=27 // pred_region
          %s3839 = smul.u32 8, %s19
          %s3841 = ssub.s32 8192, 8192
          %3842 = vsyncadd %s3832, %s3841
          %s3843 = smul.addr %s3839, 8
          %s3844 = smul.addr %s3843, 128
          %s3845 = scalar_lea.hbm %s2, %s3844
          %s3846 = sshll.u32 %s3835, 4
          %s3847 = int_to_ptr.vmem [resolvable:$true] %s3846
          %3852 = dma.vmem_to_hbm [thread:$0]  %s3847, 8192, %s3845, %s3832, 128, 128, 8
        $region36: #{mmult_batched.1} parent=27 // pred_fallthru
          _
      $region28: #{mmult_batched.1} parent=5 // pred_fallthru
        _
      %p3853 = scmp.le.s32.totalorder 2, %s14
      // Predicated region
      $region37: #{mmult_batched.1} parent=5 // pred_check
        %p3854 = pneg %p3853
      $region38: #{mmult_batched.1} parent=5 // pred_check_branch
        %3856 = sbr.rel (%p3854) target = $region40
      $region39: #{mmult_batched.1} parent=5 // pred_region
        %s3857 = ssub.s32 %s14, 2
        // Predicated region
        $region41: #{mmult_batched.1} parent=39 // pred_check
          %p3858 = pneg %p90
        $region42: #{mmult_batched.1} parent=39 // pred_check_branch
          %3860 = sbr.rel (%p3858) target = $region44
        $region43: #{mmult_batched.1} parent=39 // pred_region
          %s3861 = sand.u32 %s75, 1
          %s3862 = scalar_lea.sflag [#allocation4], %s3861
          %s3863 = sand.u32 %s75, 1
          %s3864 = smul.addr %s3863, 512
          %s3865 = scalar_lea.vmem [#allocation5], %s3864
          %3866 = dma.done %s3862, 8192
        $region44: #{mmult_batched.1} parent=39 // pred_fallthru
          _
      $region40: #{mmult_batched.1} parent=5 // pred_fallthru
        _
    $region6: #{mmult_batched.1} parent=1 // loop_footer
      %s18 = sadd.s32 1, %s14
    $region7: #{mmult_batched.1} parent=1 // loop_footer_branch
      %13 = sbr.rel target = $region3
    $region8: #{mmult_batched.1} parent=1 // loop_exit
      _
    %3867 = vsyncpa [#allocation3], 1
    %s3868 = scalar_lea.sflag [#allocation3], 1
    %3869 = vsyncpa %s3868, 1
    %3870 = vsyncpa [#allocation4], 1
    %s3871 = scalar_lea.sflag [#allocation4], 1
    %3872 = vsyncpa %s3871, 1

</llo_original>
